<compile_context>
chip_gen: v6e
topology: v6e:2x2x1
jax: 0.10.0
libtpu: 0.0.40
codegen_flags: <defaults>
</compile_context>

<pallas_src>
import jax
import jax.numpy as jnp
from jax.experimental import pallas as pl
from jax.experimental.pallas import tpu as pltpu

C = 64  # fixed by the module: nn.Conv2d(64, 64, kernel_size=3, ...)


def _conv3x3(src, w, b, H, W, Cc):
    """3x3 SAME conv as one deep im2col MXU matmul.

    src: (H+2, W+2, Cc) f32 with a zero 1-px border
    w  : (9*Cc, Cc)     bf16 (HWIO weights flattened over (kh, kw, cin))
    b  : (1, Cc)        f32
    returns (H*W, Cc)   f32
    """
    cols = [src[kh:kh + H, kw:kw + W, :].reshape(H * W, Cc)
            for kh in range(3) for kw in range(3)]
    patches = jnp.concatenate(cols, axis=-1).astype(jnp.bfloat16)   # (H*W, 9*Cc)
    return jnp.dot(patches, w, preferred_element_type=jnp.float32) + b


def tunnel_kernel(x_ref, w1_ref, b1_ref, w2_ref, b2_ref, o_ref, act_ref, mid_ref):
    # x_ref  : (1, Cc, H*W)   lane-dense input slab for image n       (f32)
    # w*_ref : (1, 9*Cc, Cc)  conv weights of ResBlock l              (bf16)
    # b*_ref : (1, 1, Cc)     conv biases of ResBlock l               (f32)
    # o_ref  : (1, Cc, H*W)   lane-dense output slab for image n      (f32)
    # act_ref: (H+2, W+2, Cc) padded activation, resident across l    (f32)
    # mid_ref: (H+2, W+2, Cc) padded conv1 intermediate               (f32)
    Hp, Wp, Cc = act_ref.shape
    H, W = Hp - 2, Wp - 2
    l = pl.program_id(1)
    num_blocks = pl.num_programs(1)

    @pl.when(l == 0)
    def _load_image():
        # Zero the scratches once per image (only the border is relied on to
        # stay zero; the interiors are rewritten every step), then drop x into
        # the padded activation scratch.
        act_ref[...] = jnp.zeros_like(act_ref)
        mid_ref[...] = jnp.zeros_like(mid_ref)
        x_hwc = jnp.transpose(x_ref[0]).reshape(H, W, Cc)   # (C,HW)->(HW,C)->(H,W,C)
        act_ref[pl.ds(1, H), pl.ds(1, W), :] = x_hwc

    act = act_ref[...]                                   # padded, zero border
    res = act[1:1 + H, 1:1 + W, :].reshape(H * W, Cc)    # un-relu'd x (residual)

    # relu(pad(x)) == pad(relu(x)) because the border is zero.
    h = jnp.maximum(act, 0.0)

    out1 = _conv3x3(h, w1_ref[0], b1_ref[0], H, W, Cc)               # conv1
    mid_ref[pl.ds(1, H), pl.ds(1, W), :] = jnp.maximum(out1, 0.0).reshape(H, W, Cc)

    out2 = _conv3x3(mid_ref[...], w2_ref[0], b2_ref[0], H, W, Cc)    # conv2
    new_act = out2 + res                                             # residual add

    @pl.when(l < num_blocks - 1)
    def _carry():       # feed the next ResBlock without touching HBM
        act_ref[pl.ds(1, H), pl.ds(1, W), :] = new_act.reshape(H, W, Cc)

    @pl.when(l == num_blocks - 1)
    def _store():       # lane-dense (C, H*W) store; wrapper reshapes to NCHW
        o_ref[0] = jnp.transpose(new_act).astype(o_ref.dtype)


def tunnel_forward(x_nchw, params):
    """x_nchw: (N, 64, H, W) like the PyTorch module.  Returns (N, 64, H, W)."""
    N, Cc, H, W = x_nchw.shape
    L = len(params)

    # Stack per-block weights: (L, 9*C, C) bf16 for the MXU, biases (L, 1, C) f32.
    w1s = jnp.stack([w1.reshape(9 * Cc, Cc) for (w1, _, _, _) in params]).astype(jnp.bfloat16)
    b1s = jnp.stack([b1.reshape(1, Cc) for (_, b1, _, _) in params])
    w2s = jnp.stack([w2.reshape(9 * Cc, Cc) for (_, _, w2, _) in params]).astype(jnp.bfloat16)
    b2s = jnp.stack([b2.reshape(1, Cc) for (_, _, _, b2) in params])

    x_flat = x_nchw.reshape(N, Cc, H * W)        # pure reshape, no transpose/pad

    out_flat = pl.pallas_call(
        tunnel_kernel,
        out_shape=jax.ShapeDtypeStruct((N, Cc, H * W), x_nchw.dtype),
        grid_spec=pltpu.PrefetchScalarGridSpec(
            num_scalar_prefetch=0,
            grid=(N, L),                          # L innermost: blocks run in order
            in_specs=[
                pl.BlockSpec((1, Cc, H * W), lambda n, l: (n, 0, 0)),
                pl.BlockSpec((1, 9 * Cc, Cc), lambda n, l: (l, 0, 0)),
                pl.BlockSpec((1, 1, Cc), lambda n, l: (l, 0, 0)),
                pl.BlockSpec((1, 9 * Cc, Cc), lambda n, l: (l, 0, 0)),
                pl.BlockSpec((1, 1, Cc), lambda n, l: (l, 0, 0)),
            ],
            out_specs=pl.BlockSpec((1, Cc, H * W), lambda n, l: (n, 0, 0)),
            scratch_shapes=[
                pltpu.VMEM((H + 2, W + 2, Cc), jnp.float32),   # activation (resident)
                pltpu.VMEM((H + 2, W + 2, Cc), jnp.float32),   # conv1 intermediate
            ],
        ),
        compiler_params=pltpu.CompilerParams(
            dimension_semantics=("parallel", "arbitrary"),
            vmem_limit_bytes=32 * 1024 * 1024,
        ),
    )(x_flat, w1s, b1s, w2s, b2s)

    return out_flat.reshape(N, Cc, H, W)


def init_tunnel_params(key, length=1, scale=0.05):
    """Deterministic synthetic params; conv weights in HWIO layout (3,3,C,C) f32."""
    params = []
    for _ in range(length):
        k1, k2, k3, k4, key = jax.random.split(key, 5)
        w1 = scale * jax.random.normal(k1, (3, 3, C, C), jnp.float32)
        b1 = scale * jax.random.normal(k2, (C,), jnp.float32)
        w2 = scale * jax.random.normal(k3, (3, 3, C, C), jnp.float32)
        b2 = scale * jax.random.normal(k4, (C,), jnp.float32)
        params.append((w1, b1, w2, b2))
    return params


# ---- pure-JAX reference (correctness check only) ----
def tunnel_ref(x_nchw, params):
    def conv(h, w, b):
        y = jax.lax.conv_general_dilated(
            h, w, window_strides=(1, 1), padding="SAME",
            dimension_numbers=("NHWC", "HWIO", "NHWC"))
        return y + b.reshape(1, 1, 1, -1)

    x = jnp.transpose(x_nchw, (0, 2, 3, 1))
    for (w1, b1, w2, b2) in params:
        o1 = jax.nn.relu(conv(jax.nn.relu(x), w1, b1))
        x = conv(o1, w2, b2) + x
    return jnp.transpose(x, (0, 3, 1, 2))


if __name__ == "__main__":
    key = jax.random.PRNGKey(0)
    kx, kp = jax.random.split(key)

    N, H, W = 2, 16, 16
    x = jax.random.normal(kx, (N, C, H, W), jnp.float32)   # NCHW like PyTorch

    for length in (1, 2):   # L=2 exercises the in-VMEM carry between ResBlocks
        params = init_tunnel_params(jax.random.fold_in(kp, length), length=length)
        out = jax.block_until_ready(tunnel_forward(x, params))
        ref = jax.block_until_ready(tunnel_ref(x, params))
        assert out.shape == (N, C, H, W)
        # bf16 MXU inputs (f32 accumulation) -> looser tolerance than pure f32.
        if not jnp.allclose(out, ref, atol=5e-2, rtol=5e-2):
            raise AssertionError(
                f"mismatch vs reference at L={length}: "
                f"max abs err {float(jnp.max(jnp.abs(out - ref)))}")

    print("KERNEL_OK")
</pallas_src>

<mosaic_0001>
module attributes {stable_mosaic.version = 11 : i64} {
  func.func @tunnel_kernel(%arg0: i32, %arg1: i32, %arg2: memref<1x64x256xf32, #tpu.memory_space<vmem>>, %arg3: memref<1x576x64xbf16, #tpu.memory_space<vmem>>, %arg4: memref<1x1x64xf32, #tpu.memory_space<vmem>>, %arg5: memref<1x576x64xbf16, #tpu.memory_space<vmem>>, %arg6: memref<1x1x64xf32, #tpu.memory_space<vmem>>, %arg7: memref<1x64x256xf32, #tpu.memory_space<vmem>>, %arg8: memref<18x18x64xf32, #tpu.memory_space<vmem>>, %arg9: memref<18x18x64xf32, #tpu.memory_space<vmem>>) attributes {dimension_semantics = [#tpu.dimension_semantics<parallel>, #tpu.dimension_semantics<arbitrary>], iteration_bounds = array<i64: 2, 1>, scalar_prefetch = 0 : i64, scratch_operands = 2 : i64, tpu.core_type = #tpu.core_type<tc>, window_params = [{transform_indices = @transform_0, window_bounds = array<i64: 1, 64, 256>}, {transform_indices = @transform_1, window_bounds = array<i64: 1, 576, 64>}, {transform_indices = @transform_2, window_bounds = array<i64: 1, 1, 64>}, {transform_indices = @transform_3, window_bounds = array<i64: 1, 576, 64>}, {transform_indices = @transform_4, window_bounds = array<i64: 1, 1, 64>}, {transform_indices = @transform_5, window_bounds = array<i64: 1, 64, 256>}]} {
    %c0_i32 = arith.constant 0 : i32
    %0 = arith.cmpi eq, %arg1, %c0_i32 : i32
    %1 = arith.extui %0 : i1 to i32
    %c0_i32_0 = arith.constant 0 : i32
    %2 = arith.cmpi ne, %1, %c0_i32_0 : i32
    scf.if %2 {
      %cst_27 = arith.constant 0.000000e+00 : f32
      %74 = vector.broadcast %cst_27 : f32 to vector<18x18x64xf32>
      %c0_28 = arith.constant 0 : index
      %c0_29 = arith.constant 0 : index
      %c0_30 = arith.constant 0 : index
      %75 = vector.load %arg8[%c0_28, %c0_29, %c0_30] : memref<18x18x64xf32, #tpu.memory_space<vmem>>, vector<18x18x64xf32>
      tpu.vector_store %arg8[%c0_28, %c0_29, %c0_30], %74 {strides = array<i32>} : memref<18x18x64xf32, #tpu.memory_space<vmem>>, vector<18x18x64xf32>,
      %cst_31 = arith.constant 0.000000e+00 : f32
      %76 = vector.broadcast %cst_31 : f32 to vector<18x18x64xf32>
      %c0_32 = arith.constant 0 : index
      %c0_33 = arith.constant 0 : index
      %c0_34 = arith.constant 0 : index
      %77 = vector.load %arg9[%c0_32, %c0_33, %c0_34] : memref<18x18x64xf32, #tpu.memory_space<vmem>>, vector<18x18x64xf32>
      tpu.vector_store %arg9[%c0_32, %c0_33, %c0_34], %76 {strides = array<i32>} : memref<18x18x64xf32, #tpu.memory_space<vmem>>, vector<18x18x64xf32>,
      %c0_35 = arith.constant 0 : index
      %c0_36 = arith.constant 0 : index
      %c0_37 = arith.constant 0 : index
      %78 = vector.load %arg2[%c0_35, %c0_36, %c0_37] : memref<1x64x256xf32, #tpu.memory_space<vmem>>, vector<1x64x256xf32>
      %79 = vector.shape_cast %78 : vector<1x64x256xf32> to vector<64x256xf32>
      %80 = tpu.transpose %79, [1, 0] : vector<64x256xf32> -> vector<256x64xf32>
      %81 = vector.shape_cast %80 : vector<256x64xf32> to vector<16x16x64xf32>
      %c1_38 = arith.constant 1 : index
      %c1_39 = arith.constant 1 : index
      %c0_40 = arith.constant 0 : index
      %82 = vector.load %arg8[%c1_38, %c1_39, %c0_40] : memref<18x18x64xf32, #tpu.memory_space<vmem>>, vector<16x16x64xf32>
      tpu.vector_store %arg8[%c1_38, %c1_39, %c0_40], %81 {strides = array<i32>} : memref<18x18x64xf32, #tpu.memory_space<vmem>>, vector<16x16x64xf32>,
    } else {
    }
    %c0 = arith.constant 0 : index
    %c0_1 = arith.constant 0 : index
    %c0_2 = arith.constant 0 : index
    %3 = vector.load %arg8[%c0, %c0_1, %c0_2] : memref<18x18x64xf32, #tpu.memory_space<vmem>>, vector<18x18x64xf32>
    %4 = vector.extract_strided_slice %3 {offsets = [1, 1, 0], sizes = [16, 16, 64], strides = [1, 1, 1]} : vector<18x18x64xf32> to vector<16x16x64xf32>
    %5 = vector.shape_cast %4 : vector<16x16x64xf32> to vector<256x64xf32>
    %cst = arith.constant 0.000000e+00 : f32
    %6 = vector.broadcast %cst : f32 to vector<18x18x64xf32>
    %7 = arith.maximumf %3, %6 : vector<18x18x64xf32>
    %c0_3 = arith.constant 0 : index
    %c0_4 = arith.constant 0 : index
    %c0_5 = arith.constant 0 : index
    %8 = vector.load %arg3[%c0_3, %c0_4, %c0_5] : memref<1x576x64xbf16, #tpu.memory_space<vmem>>, vector<1x576x64xbf16>
    %9 = vector.shape_cast %8 : vector<1x576x64xbf16> to vector<576x64xbf16>
    %c0_6 = arith.constant 0 : index
    %c0_7 = arith.constant 0 : index
    %c0_8 = arith.constant 0 : index
    %10 = vector.load %arg4[%c0_6, %c0_7, %c0_8] : memref<1x1x64xf32, #tpu.memory_space<vmem>>, vector<1x1x64xf32>
    %11 = vector.shape_cast %10 : vector<1x1x64xf32> to vector<1x64xf32>
    %12 = vector.extract_strided_slice %7 {offsets = [0, 0, 0], sizes = [16, 16, 64], strides = [1, 1, 1]} : vector<18x18x64xf32> to vector<16x16x64xf32>
    %13 = vector.shape_cast %12 : vector<16x16x64xf32> to vector<256x64xf32>
    %14 = vector.extract_strided_slice %7 {offsets = [0, 1, 0], sizes = [16, 16, 64], strides = [1, 1, 1]} : vector<18x18x64xf32> to vector<16x16x64xf32>
    %15 = vector.shape_cast %14 : vector<16x16x64xf32> to vector<256x64xf32>
    %16 = vector.extract_strided_slice %7 {offsets = [0, 2, 0], sizes = [16, 16, 64], strides = [1, 1, 1]} : vector<18x18x64xf32> to vector<16x16x64xf32>
    %17 = vector.shape_cast %16 : vector<16x16x64xf32> to vector<256x64xf32>
    %18 = vector.extract_strided_slice %7 {offsets = [1, 0, 0], sizes = [16, 16, 64], strides = [1, 1, 1]} : vector<18x18x64xf32> to vector<16x16x64xf32>
    %19 = vector.shape_cast %18 : vector<16x16x64xf32> to vector<256x64xf32>
    %20 = vector.extract_strided_slice %7 {offsets = [1, 1, 0], sizes = [16, 16, 64], strides = [1, 1, 1]} : vector<18x18x64xf32> to vector<16x16x64xf32>
    %21 = vector.shape_cast %20 : vector<16x16x64xf32> to vector<256x64xf32>
    %22 = vector.extract_strided_slice %7 {offsets = [1, 2, 0], sizes = [16, 16, 64], strides = [1, 1, 1]} : vector<18x18x64xf32> to vector<16x16x64xf32>
    %23 = vector.shape_cast %22 : vector<16x16x64xf32> to vector<256x64xf32>
    %24 = vector.extract_strided_slice %7 {offsets = [2, 0, 0], sizes = [16, 16, 64], strides = [1, 1, 1]} : vector<18x18x64xf32> to vector<16x16x64xf32>
    %25 = vector.shape_cast %24 : vector<16x16x64xf32> to vector<256x64xf32>
    %26 = vector.extract_strided_slice %7 {offsets = [2, 1, 0], sizes = [16, 16, 64], strides = [1, 1, 1]} : vector<18x18x64xf32> to vector<16x16x64xf32>
    %27 = vector.shape_cast %26 : vector<16x16x64xf32> to vector<256x64xf32>
    %28 = vector.extract_strided_slice %7 {offsets = [2, 2, 0], sizes = [16, 16, 64], strides = [1, 1, 1]} : vector<18x18x64xf32> to vector<16x16x64xf32>
    %29 = vector.shape_cast %28 : vector<16x16x64xf32> to vector<256x64xf32>
    %30 = tpu.concatenate %13, %15, %17, %19, %21, %23, %25, %27, %29 in 1 : vector<256x64xf32>, vector<256x64xf32>, vector<256x64xf32>, vector<256x64xf32>, vector<256x64xf32>, vector<256x64xf32>, vector<256x64xf32>, vector<256x64xf32>, vector<256x64xf32> -> vector<256x576xf32>
    %31 = arith.truncf %30 : vector<256x576xf32> to vector<256x576xbf16>
    %cst_9 = arith.constant dense<0.000000e+00> : vector<256x64xf32>
    %32 = tpu.matmul %31, %9, %cst_9 {dimension_numbers = #tpu.dot_dimension_numbers<[1], [0], [0], [1], [0, 0, 1, 1], [], []>} : vector<256x576xbf16>, vector<576x64xbf16>, vector<256x64xf32> -> vector<256x64xf32>
    %33 = vector.broadcast %11 : vector<1x64xf32> to vector<256x64xf32>
    %34 = arith.addf %32, %33 : vector<256x64xf32>
    %cst_10 = arith.constant 0.000000e+00 : f32
    %35 = vector.broadcast %cst_10 : f32 to vector<256x64xf32>
    %36 = arith.maximumf %34, %35 : vector<256x64xf32>
    %37 = vector.shape_cast %36 : vector<256x64xf32> to vector<16x16x64xf32>
    %c1 = arith.constant 1 : index
    %c1_11 = arith.constant 1 : index
    %c0_12 = arith.constant 0 : index
    %38 = vector.load %arg9[%c1, %c1_11, %c0_12] : memref<18x18x64xf32, #tpu.memory_space<vmem>>, vector<16x16x64xf32>
    tpu.vector_store %arg9[%c1, %c1_11, %c0_12], %37 {strides = array<i32>} : memref<18x18x64xf32, #tpu.memory_space<vmem>>, vector<16x16x64xf32>,
    %c0_13 = arith.constant 0 : index
    %c0_14 = arith.constant 0 : index
    %c0_15 = arith.constant 0 : index
    %39 = vector.load %arg9[%c0_13, %c0_14, %c0_15] : memref<18x18x64xf32, #tpu.memory_space<vmem>>, vector<18x18x64xf32>
    %c0_16 = arith.constant 0 : index
    %c0_17 = arith.constant 0 : index
    %c0_18 = arith.constant 0 : index
    %40 = vector.load %arg5[%c0_16, %c0_17, %c0_18] : memref<1x576x64xbf16, #tpu.memory_space<vmem>>, vector<1x576x64xbf16>
    %41 = vector.shape_cast %40 : vector<1x576x64xbf16> to vector<576x64xbf16>
    %c0_19 = arith.constant 0 : index
    %c0_20 = arith.constant 0 : index
    %c0_21 = arith.constant 0 : index
    %42 = vector.load %arg6[%c0_19, %c0_20, %c0_21] : memref<1x1x64xf32, #tpu.memory_space<vmem>>, vector<1x1x64xf32>
    %43 = vector.shape_cast %42 : vector<1x1x64xf32> to vector<1x64xf32>
    %44 = vector.extract_strided_slice %39 {offsets = [0, 0, 0], sizes = [16, 16, 64], strides = [1, 1, 1]} : vector<18x18x64xf32> to vector<16x16x64xf32>
    %45 = vector.shape_cast %44 : vector<16x16x64xf32> to vector<256x64xf32>
    %46 = vector.extract_strided_slice %39 {offsets = [0, 1, 0], sizes = [16, 16, 64], strides = [1, 1, 1]} : vector<18x18x64xf32> to vector<16x16x64xf32>
    %47 = vector.shape_cast %46 : vector<16x16x64xf32> to vector<256x64xf32>
    %48 = vector.extract_strided_slice %39 {offsets = [0, 2, 0], sizes = [16, 16, 64], strides = [1, 1, 1]} : vector<18x18x64xf32> to vector<16x16x64xf32>
    %49 = vector.shape_cast %48 : vector<16x16x64xf32> to vector<256x64xf32>
    %50 = vector.extract_strided_slice %39 {offsets = [1, 0, 0], sizes = [16, 16, 64], strides = [1, 1, 1]} : vector<18x18x64xf32> to vector<16x16x64xf32>
    %51 = vector.shape_cast %50 : vector<16x16x64xf32> to vector<256x64xf32>
    %52 = vector.extract_strided_slice %39 {offsets = [1, 1, 0], sizes = [16, 16, 64], strides = [1, 1, 1]} : vector<18x18x64xf32> to vector<16x16x64xf32>
    %53 = vector.shape_cast %52 : vector<16x16x64xf32> to vector<256x64xf32>
    %54 = vector.extract_strided_slice %39 {offsets = [1, 2, 0], sizes = [16, 16, 64], strides = [1, 1, 1]} : vector<18x18x64xf32> to vector<16x16x64xf32>
    %55 = vector.shape_cast %54 : vector<16x16x64xf32> to vector<256x64xf32>
    %56 = vector.extract_strided_slice %39 {offsets = [2, 0, 0], sizes = [16, 16, 64], strides = [1, 1, 1]} : vector<18x18x64xf32> to vector<16x16x64xf32>
    %57 = vector.shape_cast %56 : vector<16x16x64xf32> to vector<256x64xf32>
    %58 = vector.extract_strided_slice %39 {offsets = [2, 1, 0], sizes = [16, 16, 64], strides = [1, 1, 1]} : vector<18x18x64xf32> to vector<16x16x64xf32>
    %59 = vector.shape_cast %58 : vector<16x16x64xf32> to vector<256x64xf32>
    %60 = vector.extract_strided_slice %39 {offsets = [2, 2, 0], sizes = [16, 16, 64], strides = [1, 1, 1]} : vector<18x18x64xf32> to vector<16x16x64xf32>
    %61 = vector.shape_cast %60 : vector<16x16x64xf32> to vector<256x64xf32>
    %62 = tpu.concatenate %45, %47, %49, %51, %53, %55, %57, %59, %61 in 1 : vector<256x64xf32>, vector<256x64xf32>, vector<256x64xf32>, vector<256x64xf32>, vector<256x64xf32>, vector<256x64xf32>, vector<256x64xf32>, vector<256x64xf32>, vector<256x64xf32> -> vector<256x576xf32>
    %63 = arith.truncf %62 : vector<256x576xf32> to vector<256x576xbf16>
    %cst_22 = arith.constant dense<0.000000e+00> : vector<256x64xf32>
    %64 = tpu.matmul %63, %41, %cst_22 {dimension_numbers = #tpu.dot_dimension_numbers<[1], [0], [0], [1], [0, 0, 1, 1], [], []>} : vector<256x576xbf16>, vector<576x64xbf16>, vector<256x64xf32> -> vector<256x64xf32>
    %65 = vector.broadcast %43 : vector<1x64xf32> to vector<256x64xf32>
    %66 = arith.addf %64, %65 : vector<256x64xf32>
    %67 = arith.addf %66, %5 : vector<256x64xf32>
    %c0_i32_23 = arith.constant 0 : i32
    %68 = arith.cmpi slt, %arg1, %c0_i32_23 : i32
    %69 = arith.extui %68 : i1 to i32
    %c0_i32_24 = arith.constant 0 : i32
    %70 = arith.cmpi ne, %69, %c0_i32_24 : i32
    scf.if %70 {
      %74 = vector.shape_cast %67 : vector<256x64xf32> to vector<16x16x64xf32>
      %c1_27 = arith.constant 1 : index
      %c1_28 = arith.constant 1 : index
      %c0_29 = arith.constant 0 : index
      %75 = vector.load %arg8[%c1_27, %c1_28, %c0_29] : memref<18x18x64xf32, #tpu.memory_space<vmem>>, vector<16x16x64xf32>
      tpu.vector_store %arg8[%c1_27, %c1_28, %c0_29], %74 {strides = array<i32>} : memref<18x18x64xf32, #tpu.memory_space<vmem>>, vector<16x16x64xf32>,
    } else {
    }
    %c0_i32_25 = arith.constant 0 : i32
    %71 = arith.cmpi eq, %arg1, %c0_i32_25 : i32
    %72 = arith.extui %71 : i1 to i32
    %c0_i32_26 = arith.constant 0 : i32
    %73 = arith.cmpi ne, %72, %c0_i32_26 : i32
    scf.if %73 {
      %74 = tpu.transpose %67, [1, 0] : vector<256x64xf32> -> vector<64x256xf32>
      %c0_27 = arith.constant 0 : index
      %c0_28 = arith.constant 0 : index
      %c0_29 = arith.constant 0 : index
      %75 = vector.load %arg7[%c0_27, %c0_28, %c0_29] : memref<1x64x256xf32, #tpu.memory_space<vmem>>, vector<1x64x256xf32>
      %76 = vector.shape_cast %75 : vector<1x64x256xf32> to vector<64x256xf32>
      %77 = vector.shape_cast %74 : vector<64x256xf32> to vector<1x64x256xf32>
      tpu.vector_store %arg7[%c0_27, %c0_28, %c0_29], %77 {strides = array<i32>} : memref<1x64x256xf32, #tpu.memory_space<vmem>>, vector<1x64x256xf32>,
    } else {
    }
    return
  }
  func.func @transform_0(%arg0: i32, %arg1: i32) -> (i32, i32, i32) {
    %c0_i32 = arith.constant 0 : i32
    %c0_i32_0 = arith.constant 0 : i32
    %c0_i32_1 = arith.constant 0 : i32
    return %arg0, %c0_i32, %c0_i32_0 : i32, i32, i32
  }
  func.func @transform_1(%arg0: i32, %arg1: i32) -> (i32, i32, i32) {
    %c0_i32 = arith.constant 0 : i32
    %c0_i32_0 = arith.constant 0 : i32
    %c0_i32_1 = arith.constant 0 : i32
    return %arg1, %c0_i32, %c0_i32_0 : i32, i32, i32
  }
  func.func @transform_2(%arg0: i32, %arg1: i32) -> (i32, i32, i32) {
    %c0_i32 = arith.constant 0 : i32
    %c0_i32_0 = arith.constant 0 : i32
    %c0_i32_1 = arith.constant 0 : i32
    return %arg1, %c0_i32, %c0_i32_0 : i32, i32, i32
  }
  func.func @transform_3(%arg0: i32, %arg1: i32) -> (i32, i32, i32) {
    %c0_i32 = arith.constant 0 : i32
    %c0_i32_0 = arith.constant 0 : i32
    %c0_i32_1 = arith.constant 0 : i32
    return %arg1, %c0_i32, %c0_i32_0 : i32, i32, i32
  }
  func.func @transform_4(%arg0: i32, %arg1: i32) -> (i32, i32, i32) {
    %c0_i32 = arith.constant 0 : i32
    %c0_i32_0 = arith.constant 0 : i32
    %c0_i32_1 = arith.constant 0 : i32
    return %arg1, %c0_i32, %c0_i32_0 : i32, i32, i32
  }
  func.func @transform_5(%arg0: i32, %arg1: i32) -> (i32, i32, i32) {
    %c0_i32 = arith.constant 0 : i32
    %c0_i32_0 = arith.constant 0 : i32
    %c0_i32_1 = arith.constant 0 : i32
    return %arg0, %c0_i32, %c0_i32_0 : i32, i32, i32
  }
}

</mosaic_0001>

<llo_original>
// kernel: tpu_custom_call.1
$region0: #{tpu_custom_call.1}
  #allocation0 [shape = 'u32[]', space=smem, size = 0x4, offset = 0x4, fixed_abs, tag = 'smem constant byte address 0x4 - core index']
  #allocation1 [shape = 'u32[144,128]{1,0:T(1,128)}', space=vmem, size = 0x12000, scoped, tag = 'internal scratch']
  #allocation2 [shape = 'f32[18,18,64]{2,1,0:T(8,128)}', space=vmem, size = 0x36000, scoped, tag = 'scratch operand']
  #allocation3 [shape = 'f32[18,18,64]{2,1,0:T(8,128)}', space=vmem, size = 0x36000, scoped, tag = 'scratch operand']
  %s0 = inlined_call_operand.vmem [shape: f32[2,64,256], index: 0, kind: input, shape index: {}]
  %s1 = inlined_call_operand.vmem [shape: bf16[1,576,64], index: 1, kind: input, shape index: {}]
  %s2 = inlined_call_operand.vmem [shape: f32[1,1,64], index: 2, kind: input, shape index: {}]
  %s3 = inlined_call_operand.vmem [shape: bf16[1,576,64], index: 3, kind: input, shape index: {}]
  %s4 = inlined_call_operand.vmem [shape: f32[1,1,64], index: 4, kind: input, shape index: {}]
  %s5 = inlined_call_operand.hbm [shape: f32[2,64,256], index: 5, kind: output, shape index: {}]
  %s6 = sld [smem:[#allocation0]]
  $region65: #{tpu_custom_call.1} parent=0
    _
  %s8 = ssub.s32 1, %s6
  %s9 = scalar_select 0, %s8, %s6
  $region1: #{tpu_custom_call.1} parent=0
    #allocation4 [shape = 'u8[131072]{0}', space=vmem, size = 0x20000, scoped, tag = 'output window, operand 0']
    #allocation5 [shape = 's32[2]{0}', space=sflag, size = 0x8, scoped, tag = 'scoped memory for tpu_custom_call.1']
    %10 = vsyncpa [#allocation5], 0
    %s11 = scalar_lea.sflag [#allocation5], 1
    %12 = vsyncpa %s11, 0
    loop: start=0, step=1, limit=4
    $region2: #{tpu_custom_call.1} parent=1 // loop_pre_header
      _
    $region3: #{tpu_custom_call.1} parent=1 // loop_header
      %s14 = sphi 0, %s18
      %p15 = scmp.ge.s32.totalorder %s14, 4
      %s21 = sphi 0, %s33
      %s22 = sphi 0, %s29
      %s23 = sphi 0, %s21
      %s24 = sphi 0, %s22
      %s25 = sphi 0, %s23
      %s26 = sphi 0, %s24
      %s36 = sphi 0, %s38
      %s39 = sphi 0, %s36
      %s40 = sphi 0, %s39
      %s56 = sphi 0, %s40
      %s62 = sphi 0, %s64
      %s65 = sphi 0, %s62
      %s66 = sphi 0, %s65
      %s82 = sphi 0, %s66
      %s88 = sphi 0, %s90
      %s91 = sphi 0, %s88
      %s92 = sphi 0, %s91
      %s108 = sphi 0, %s92
      %s114 = sphi 0, %s116
      %s117 = sphi 0, %s114
      %s118 = sphi 0, %s117
      %s134 = sphi 0, %s118
      %s140 = sphi 0, %s142
      %s143 = sphi 0, %s140
      %s144 = sphi 0, %s143
      %s160 = sphi 0, %s144
      %s166 = sphi 0, %s168
      %s169 = sphi 0, %s166
      %s170 = sphi 0, %s169
      %s186 = sphi 0, %s170
    $region4: #{tpu_custom_call.1} parent=1 // loop_header_branch
      %17 = sbr.rel (%p15) target = $region8
    $region5: #{tpu_custom_call.1} parent=1 // loop_body
      %s19 = ssub.s32 %s14, 1
      %s20 = ssub.s32 %s14, 2
      %s27 = sadd.s32 1, %s22
      %p28 = scmp.ge.s32.totalorder %s27, 1
      %s29 = scalar_select %p28, 0, %s27
      %s30 = sadd.s32 1, %s21
      %s31 = scalar_select %p28, %s30, %s21
      %p32 = scmp.ge.s32.totalorder %s31, 2
      %s33 = scalar_select %p32, 0, %s31
      %s34 = ssub.s32 %s21, %s33
      %p35 = scmp.eq.s32.totalorder %s34, 0
      %s37 = sadd.s32 %s36, 1
      %s38 = scalar_select %p35, %s36, %s37
      %p41 = pneg %p35
      %p42 = scmp.eq.s32.totalorder %s14, 1
      %p43 = por %p41, %p42
      %p44 = scmp.ne.s32.totalorder %s36, %s39
      %p45 = scmp.eq.s32.totalorder %s14, 0
      %p46 = por %p44, %p45
      %p47 = scmp.ne.s32.totalorder %s36, %s39
      %p48 = scmp.eq.s32.totalorder %s19, 1
      %p49 = por %p47, %p48
      %p50 = scmp.ne.s32.totalorder %s39, %s40
      %p51 = scmp.eq.s32.totalorder %s19, 0
      %p52 = por %p50, %p51
      %p53 = scmp.ne.s32.totalorder %s39, %s40
      %p54 = scmp.eq.s32.totalorder %s20, 1
      %p55 = por %p53, %p54
      %p57 = scmp.ne.s32.totalorder %s40, %s56
      %p58 = scmp.eq.s32.totalorder %s20, 0
      %p59 = por %p57, %p58
      %s60 = ssub.s32 %s22, %s29
      %p61 = scmp.eq.s32.totalorder %s60, 0
      %s63 = sadd.s32 %s62, 1
      %s64 = scalar_select %p61, %s62, %s63
      %p67 = pneg %p61
      %p68 = scmp.eq.s32.totalorder %s14, 1
      %p69 = por %p67, %p68
      %p70 = scmp.ne.s32.totalorder %s62, %s65
      %p71 = scmp.eq.s32.totalorder %s14, 0
      %p72 = por %p70, %p71
      %p73 = scmp.ne.s32.totalorder %s62, %s65
      %p74 = scmp.eq.s32.totalorder %s19, 1
      %p75 = por %p73, %p74
      %p76 = scmp.ne.s32.totalorder %s65, %s66
      %p77 = scmp.eq.s32.totalorder %s19, 0
      %p78 = por %p76, %p77
      %p79 = scmp.ne.s32.totalorder %s65, %s66
      %p80 = scmp.eq.s32.totalorder %s20, 1
      %p81 = por %p79, %p80
      %p83 = scmp.ne.s32.totalorder %s66, %s82
      %p84 = scmp.eq.s32.totalorder %s20, 0
      %p85 = por %p83, %p84
      %s86 = ssub.s32 %s22, %s29
      %p87 = scmp.eq.s32.totalorder %s86, 0
      %s89 = sadd.s32 %s88, 1
      %s90 = scalar_select %p87, %s88, %s89
      %p93 = pneg %p87
      %p94 = scmp.eq.s32.totalorder %s14, 1
      %p95 = por %p93, %p94
      %p96 = scmp.ne.s32.totalorder %s88, %s91
      %p97 = scmp.eq.s32.totalorder %s14, 0
      %p98 = por %p96, %p97
      %p99 = scmp.ne.s32.totalorder %s88, %s91
      %p100 = scmp.eq.s32.totalorder %s19, 1
      %p101 = por %p99, %p100
      %p102 = scmp.ne.s32.totalorder %s91, %s92
      %p103 = scmp.eq.s32.totalorder %s19, 0
      %p104 = por %p102, %p103
      %p105 = scmp.ne.s32.totalorder %s91, %s92
      %p106 = scmp.eq.s32.totalorder %s20, 1
      %p107 = por %p105, %p106
      %p109 = scmp.ne.s32.totalorder %s92, %s108
      %p110 = scmp.eq.s32.totalorder %s20, 0
      %p111 = por %p109, %p110
      %s112 = ssub.s32 %s22, %s29
      %p113 = scmp.eq.s32.totalorder %s112, 0
      %s115 = sadd.s32 %s114, 1
      %s116 = scalar_select %p113, %s114, %s115
      %p119 = pneg %p113
      %p120 = scmp.eq.s32.totalorder %s14, 1
      %p121 = por %p119, %p120
      %p122 = scmp.ne.s32.totalorder %s114, %s117
      %p123 = scmp.eq.s32.totalorder %s14, 0
      %p124 = por %p122, %p123
      %p125 = scmp.ne.s32.totalorder %s114, %s117
      %p126 = scmp.eq.s32.totalorder %s19, 1
      %p127 = por %p125, %p126
      %p128 = scmp.ne.s32.totalorder %s117, %s118
      %p129 = scmp.eq.s32.totalorder %s19, 0
      %p130 = por %p128, %p129
      %p131 = scmp.ne.s32.totalorder %s117, %s118
      %p132 = scmp.eq.s32.totalorder %s20, 1
      %p133 = por %p131, %p132
      %p135 = scmp.ne.s32.totalorder %s118, %s134
      %p136 = scmp.eq.s32.totalorder %s20, 0
      %p137 = por %p135, %p136
      %s138 = ssub.s32 %s22, %s29
      %p139 = scmp.eq.s32.totalorder %s138, 0
      %s141 = sadd.s32 %s140, 1
      %s142 = scalar_select %p139, %s140, %s141
      %p145 = pneg %p139
      %p146 = scmp.eq.s32.totalorder %s14, 1
      %p147 = por %p145, %p146
      %p148 = scmp.ne.s32.totalorder %s140, %s143
      %p149 = scmp.eq.s32.totalorder %s14, 0
      %p150 = por %p148, %p149
      %p151 = scmp.ne.s32.totalorder %s140, %s143
      %p152 = scmp.eq.s32.totalorder %s19, 1
      %p153 = por %p151, %p152
      %p154 = scmp.ne.s32.totalorder %s143, %s144
      %p155 = scmp.eq.s32.totalorder %s19, 0
      %p156 = por %p154, %p155
      %p157 = scmp.ne.s32.totalorder %s143, %s144
      %p158 = scmp.eq.s32.totalorder %s20, 1
      %p159 = por %p157, %p158
      %p161 = scmp.ne.s32.totalorder %s144, %s160
      %p162 = scmp.eq.s32.totalorder %s20, 0
      %p163 = por %p161, %p162
      %s164 = ssub.s32 %s21, %s33
      %p165 = scmp.eq.s32.totalorder %s164, 0
      %s167 = sadd.s32 %s166, 1
      %s168 = scalar_select %p165, %s166, %s167
      %p171 = pneg %p165
      %p172 = scmp.eq.s32.totalorder %s14, 1
      %p173 = por %p171, %p172
      %p174 = scmp.ne.s32.totalorder %s166, %s169
      %p175 = scmp.eq.s32.totalorder %s14, 0
      %p176 = por %p174, %p175
      %p177 = scmp.ne.s32.totalorder %s166, %s169
      %p178 = scmp.eq.s32.totalorder %s19, 1
      %p179 = por %p177, %p178
      %p180 = scmp.ne.s32.totalorder %s169, %s170
      %p181 = scmp.eq.s32.totalorder %s19, 0
      %p182 = por %p180, %p181
      %p183 = scmp.ne.s32.totalorder %s169, %s170
      %p184 = scmp.eq.s32.totalorder %s20, 1
      %p185 = por %p183, %p184
      %p187 = scmp.ne.s32.totalorder %s170, %s186
      %p188 = scmp.eq.s32.totalorder %s20, 0
      %p189 = por %p187, %p188
      %p190 = scmp.le.s32.totalorder 1, %s14
      %p191 = scmp.lt.s32.totalorder %s14, 3
      %p192 = pnand %p190, %p191
      %p193 = pneg %p192
      // Predicated region
      $region9: #{tpu_custom_call.1} parent=5 // pred_check
        _
      $region10: #{tpu_custom_call.1} parent=5 // pred_check_branch
        %195 = sbr.rel (%p192) target = $region12
      $region11: #{tpu_custom_call.1} parent=5 // pred_region
        %s196 = ssub.s32 %s14, 1
        // Predicated region
        $region13: #{tpu_custom_call.1} parent=11 // pred_check
          %p197 = pneg %p78
        $region14: #{tpu_custom_call.1} parent=11 // pred_check_branch
          %199 = sbr.rel (%p197) target = $region16
        $region15: #{tpu_custom_call.1} parent=11 // pred_region
          %p200 = scmp.lt.s32.totalorder %s24, 0
          %s201 = scalar_select %p200, %s24, 0
          %s202 = smul.addr %s201, 72
          %s203 = smul.addr %s202, 4
          %s204 = scalar_lea.vmem %s1, %s203
        $region16: #{tpu_custom_call.1} parent=11 // pred_fallthru
          _
        // Predicated region
        $region17: #{tpu_custom_call.1} parent=11 // pred_check
          %p205 = pneg %p104
        $region18: #{tpu_custom_call.1} parent=11 // pred_check_branch
          %207 = sbr.rel (%p205) target = $region20
        $region19: #{tpu_custom_call.1} parent=11 // pred_region
          %p208 = scmp.lt.s32.totalorder %s24, 0
          %s209 = scalar_select %p208, %s24, 0
          %s210 = scalar_lea.vmem %s2, %s209
        $region20: #{tpu_custom_call.1} parent=11 // pred_fallthru
          _
        // Predicated region
        $region21: #{tpu_custom_call.1} parent=11 // pred_check
          %p211 = pneg %p130
        $region22: #{tpu_custom_call.1} parent=11 // pred_check_branch
          %213 = sbr.rel (%p211) target = $region24
        $region23: #{tpu_custom_call.1} parent=11 // pred_region
          %p214 = scmp.lt.s32.totalorder %s24, 0
          %s215 = scalar_select %p214, %s24, 0
          %s216 = smul.addr %s215, 72
          %s217 = smul.addr %s216, 4
          %s218 = scalar_lea.vmem %s3, %s217
        $region24: #{tpu_custom_call.1} parent=11 // pred_fallthru
          _
        // Predicated region
        $region25: #{tpu_custom_call.1} parent=11 // pred_check
          %p219 = pneg %p156
        $region26: #{tpu_custom_call.1} parent=11 // pred_check_branch
          %221 = sbr.rel (%p219) target = $region28
        $region27: #{tpu_custom_call.1} parent=11 // pred_region
          %p222 = scmp.lt.s32.totalorder %s24, 0
          %s223 = scalar_select %p222, %s24, 0
          %s224 = scalar_lea.vmem %s4, %s223
        $region28: #{tpu_custom_call.1} parent=11 // pred_fallthru
          _
      $region12: #{tpu_custom_call.1} parent=5 // pred_fallthru
        _
      %p225 = scmp.lt.s32.totalorder %s14, 2
      // Predicated region
      $region29: #{tpu_custom_call.1} parent=5 // pred_check
        %p226 = pneg %p225
      $region30: #{tpu_custom_call.1} parent=5 // pred_check_branch
        %228 = sbr.rel (%p226) target = $region32
      $region31: #{tpu_custom_call.1} parent=5 // pred_region
        // Predicated region
        $region33: #{tpu_custom_call.1} parent=31 // pred_check
          %p229 = pneg %p46
        $region34: #{tpu_custom_call.1} parent=31 // pred_check_branch
          %231 = sbr.rel (%p229) target = $region36
        $region35: #{tpu_custom_call.1} parent=31 // pred_region
          %p232 = scmp.lt.s32.totalorder %s21, 1
          %s233 = scalar_select %p232, %s21, 1
          %s234 = smul.addr %s233, 16
          %s235 = smul.addr %s234, 8
          %s236 = scalar_lea.vmem %s0, %s235
        $region36: #{tpu_custom_call.1} parent=31 // pred_fallthru
          _
      $region32: #{tpu_custom_call.1} parent=5 // pred_fallthru
        _
      %p237 = scmp.le.s32.totalorder 1, %s14
      %p238 = scmp.lt.s32.totalorder %s14, 3
      %p239 = pnand %p237, %p238
      %p240 = pneg %p239
      // Predicated region
      $region37: #{tpu_custom_call.1} parent=5 // pred_check
        _
      $region38: #{tpu_custom_call.1} parent=5 // pred_check_branch
        %242 = sbr.rel (%p239) target = $region40
      $region39: #{tpu_custom_call.1} parent=5 // pred_region
        %s243 = ssub.s32 %s14, 1
        %p244 = scmp.lt.s32.totalorder %s23, 1
        %s245 = scalar_select %p244, %s23, 1
        %s246 = smul.addr %s245, 16
        %s247 = smul.addr %s246, 8
        %s248 = scalar_lea.vmem %s0, %s247
        %p249 = pneg %p52
        %p250 = pneg %p49
        %p251 = scmp.lt.s32.totalorder %s24, 0
        %s252 = scalar_select %p251, %s24, 0
        %s253 = smul.addr %s252, 72
        %s254 = smul.addr %s253, 4
        %s255 = scalar_lea.vmem %s1, %s254
        %p256 = pneg %p78
        %p257 = pneg %p75
        %p258 = scmp.lt.s32.totalorder %s24, 0
        %s259 = scalar_select %p258, %s24, 0
        %s260 = scalar_lea.vmem %s2, %s259
        %p261 = pneg %p104
        %p262 = pneg %p101
        %p263 = scmp.lt.s32.totalorder %s24, 0
        %s264 = scalar_select %p263, %s24, 0
        %s265 = smul.addr %s264, 72
        %s266 = smul.addr %s265, 4
        %s267 = scalar_lea.vmem %s3, %s266
        %p268 = pneg %p130
        %p269 = pneg %p127
        %p270 = scmp.lt.s32.totalorder %s24, 0
        %s271 = scalar_select %p270, %s24, 0
        %s272 = scalar_lea.vmem %s4, %s271
        %p273 = pneg %p156
        %p274 = pneg %p153
        %p275 = pneg %p182
        %p276 = pneg %p179
        %s277 = sand.u32 %s169, 1
        %s278 = scalar_lea.sflag [#allocation5], %s277
        %s279 = sand.u32 %s169, 1
        %s280 = smul.addr %s279, 128
        %s281 = scalar_lea.vmem [#allocation4], %s280
        %p282 = scmp.lt.s32.totalorder %s23, 1
        %s283 = scalar_select %p282, %s23, 1
        %s284 = smul.addr %s283, 16
        %s285 = smul.addr %s284, 8
        %s286 = scalar_lea.vmem %s0, %s285
        %p287 = scmp.lt.s32.totalorder %s24, 0
        %s288 = scalar_select %p287, %s24, 0
        %s289 = smul.addr %s288, 72
        %s290 = smul.addr %s289, 4
        %s291 = scalar_lea.vmem %s1, %s290
        %p292 = scmp.lt.s32.totalorder %s24, 0
        %s293 = scalar_select %p292, %s24, 0
        %s294 = scalar_lea.vmem %s2, %s293
        %p295 = scmp.lt.s32.totalorder %s24, 0
        %s296 = scalar_select %p295, %s24, 0
        %s297 = smul.addr %s296, 72
        %s298 = smul.addr %s297, 4
        %s299 = scalar_lea.vmem %s3, %s298
        %p300 = scmp.lt.s32.totalorder %s24, 0
        %s301 = scalar_select %p300, %s24, 0
        %s302 = scalar_lea.vmem %s4, %s301
        %p304 = scmp.eq.s32.totalorder %s24, 0
        // Predicated region
        $region41: #{tpu_custom_call.1} parent=39 // pred_check
          %p305 = pneg %p304
        $region42: #{tpu_custom_call.1} parent=39 // pred_check_branch
          %307 = sbr.rel (%p305) target = $region44
        $region43: #{tpu_custom_call.1} parent=39 // pred_region
          %vm308 = vcmask 523264
          %309 = vst.msk [vmem:[#allocation2] sm:$0xff] %vm308, 0.0
          %310 = vst.msk [vmem:[#allocation2 + $0x8] sm:$0xff] %vm308, 0.0
          %vm311 = vcmask 517120
          %312 = vst.msk [vmem:[#allocation2 + $0x10] sm:$0x3] %vm311, 0.0
          %313 = vst.msk [vmem:[#allocation2 + $0x18] sm:$0xff] %vm308, 0.0
          %314 = vst.msk [vmem:[#allocation2 + $0x20] sm:$0xff] %vm308, 0.0
          %315 = vst.msk [vmem:[#allocation2 + $0x28] sm:$0x3] %vm311, 0.0
          %316 = vst.msk [vmem:[#allocation2 + $0x30] sm:$0xff] %vm308, 0.0
          %317 = vst.msk [vmem:[#allocation2 + $0x38] sm:$0xff] %vm308, 0.0
          %318 = vst.msk [vmem:[#allocation2 + $0x40] sm:$0x3] %vm311, 0.0
          %319 = vst.msk [vmem:[#allocation2 + $0x48] sm:$0xff] %vm308, 0.0
          %320 = vst.msk [vmem:[#allocation2 + $0x50] sm:$0xff] %vm308, 0.0
          %321 = vst.msk [vmem:[#allocation2 + $0x58] sm:$0x3] %vm311, 0.0
          %322 = vst.msk [vmem:[#allocation2 + $0x60] sm:$0xff] %vm308, 0.0
          %323 = vst.msk [vmem:[#allocation2 + $0x68] sm:$0xff] %vm308, 0.0
          %324 = vst.msk [vmem:[#allocation2 + $0x70] sm:$0x3] %vm311, 0.0
          %325 = vst.msk [vmem:[#allocation2 + $0x78] sm:$0xff] %vm308, 0.0
          %326 = vst.msk [vmem:[#allocation2 + $0x80] sm:$0xff] %vm308, 0.0
          %327 = vst.msk [vmem:[#allocation2 + $0x88] sm:$0x3] %vm311, 0.0
          %328 = vst.msk [vmem:[#allocation2 + $0x90] sm:$0xff] %vm308, 0.0
          %329 = vst.msk [vmem:[#allocation2 + $0x98] sm:$0xff] %vm308, 0.0
          %330 = vst.msk [vmem:[#allocation2 + $0xa0] sm:$0x3] %vm311, 0.0
          %331 = vst.msk [vmem:[#allocation2 + $0xa8] sm:$0xff] %vm308, 0.0
          %332 = vst.msk [vmem:[#allocation2 + $0xb0] sm:$0xff] %vm308, 0.0
          %333 = vst.msk [vmem:[#allocation2 + $0xb8] sm:$0x3] %vm311, 0.0
          %334 = vst.msk [vmem:[#allocation2 + $0xc0] sm:$0xff] %vm308, 0.0
          %335 = vst.msk [vmem:[#allocation2 + $0xc8] sm:$0xff] %vm308, 0.0
          %336 = vst.msk [vmem:[#allocation2 + $0xd0] sm:$0x3] %vm311, 0.0
          %337 = vst.msk [vmem:[#allocation2 + $0xd8] sm:$0xff] %vm308, 0.0
          %338 = vst.msk [vmem:[#allocation2 + $0xe0] sm:$0xff] %vm308, 0.0
          %339 = vst.msk [vmem:[#allocation2 + $0xe8] sm:$0x3] %vm311, 0.0
          %340 = vst.msk [vmem:[#allocation2 + $0xf0] sm:$0xff] %vm308, 0.0
          %341 = vst.msk [vmem:[#allocation2 + $0xf8] sm:$0xff] %vm308, 0.0
          %342 = vst.msk [vmem:[#allocation2 + $0x100] sm:$0x3] %vm311, 0.0
          %343 = vst.msk [vmem:[#allocation2 + $0x108] sm:$0xff] %vm308, 0.0
          %344 = vst.msk [vmem:[#allocation2 + $0x110] sm:$0xff] %vm308, 0.0
          %345 = vst.msk [vmem:[#allocation2 + $0x118] sm:$0x3] %vm311, 0.0
          %346 = vst.msk [vmem:[#allocation2 + $0x120] sm:$0xff] %vm308, 0.0
          %347 = vst.msk [vmem:[#allocation2 + $0x128] sm:$0xff] %vm308, 0.0
          %348 = vst.msk [vmem:[#allocation2 + $0x130] sm:$0x3] %vm311, 0.0
          %349 = vst.msk [vmem:[#allocation2 + $0x138] sm:$0xff] %vm308, 0.0
          %350 = vst.msk [vmem:[#allocation2 + $0x140] sm:$0xff] %vm308, 0.0
          %351 = vst.msk [vmem:[#allocation2 + $0x148] sm:$0x3] %vm311, 0.0
          %352 = vst.msk [vmem:[#allocation2 + $0x150] sm:$0xff] %vm308, 0.0
          %353 = vst.msk [vmem:[#allocation2 + $0x158] sm:$0xff] %vm308, 0.0
          %354 = vst.msk [vmem:[#allocation2 + $0x160] sm:$0x3] %vm311, 0.0
          %355 = vst.msk [vmem:[#allocation2 + $0x168] sm:$0xff] %vm308, 0.0
          %356 = vst.msk [vmem:[#allocation2 + $0x170] sm:$0xff] %vm308, 0.0
          %357 = vst.msk [vmem:[#allocation2 + $0x178] sm:$0x3] %vm311, 0.0
          %358 = vst.msk [vmem:[#allocation2 + $0x180] sm:$0xff] %vm308, 0.0
          %359 = vst.msk [vmem:[#allocation2 + $0x188] sm:$0xff] %vm308, 0.0
          %360 = vst.msk [vmem:[#allocation2 + $0x190] sm:$0x3] %vm311, 0.0
          %361 = vst.msk [vmem:[#allocation2 + $0x198] sm:$0xff] %vm308, 0.0
          %362 = vst.msk [vmem:[#allocation2 + $0x1a0] sm:$0xff] %vm308, 0.0
          %363 = vst.msk [vmem:[#allocation2 + $0x1a8] sm:$0x3] %vm311, 0.0
          %364 = vst.msk [vmem:[#allocation3] sm:$0xff] %vm308, 0.0
          %365 = vst.msk [vmem:[#allocation3 + $0x8] sm:$0xff] %vm308, 0.0
          %366 = vst.msk [vmem:[#allocation3 + $0x10] sm:$0x3] %vm311, 0.0
          %367 = vst.msk [vmem:[#allocation3 + $0x18] sm:$0xff] %vm308, 0.0
          %368 = vst.msk [vmem:[#allocation3 + $0x20] sm:$0xff] %vm308, 0.0
          %369 = vst.msk [vmem:[#allocation3 + $0x28] sm:$0x3] %vm311, 0.0
          %370 = vst.msk [vmem:[#allocation3 + $0x30] sm:$0xff] %vm308, 0.0
          %371 = vst.msk [vmem:[#allocation3 + $0x38] sm:$0xff] %vm308, 0.0
          %372 = vst.msk [vmem:[#allocation3 + $0x40] sm:$0x3] %vm311, 0.0
          %373 = vst.msk [vmem:[#allocation3 + $0x48] sm:$0xff] %vm308, 0.0
          %374 = vst.msk [vmem:[#allocation3 + $0x50] sm:$0xff] %vm308, 0.0
          %375 = vst.msk [vmem:[#allocation3 + $0x58] sm:$0x3] %vm311, 0.0
          %376 = vst.msk [vmem:[#allocation3 + $0x60] sm:$0xff] %vm308, 0.0
          %377 = vst.msk [vmem:[#allocation3 + $0x68] sm:$0xff] %vm308, 0.0
          %378 = vst.msk [vmem:[#allocation3 + $0x70] sm:$0x3] %vm311, 0.0
          %379 = vst.msk [vmem:[#allocation3 + $0x78] sm:$0xff] %vm308, 0.0
          %380 = vst.msk [vmem:[#allocation3 + $0x80] sm:$0xff] %vm308, 0.0
          %381 = vst.msk [vmem:[#allocation3 + $0x88] sm:$0x3] %vm311, 0.0
          %382 = vst.msk [vmem:[#allocation3 + $0x90] sm:$0xff] %vm308, 0.0
          %383 = vst.msk [vmem:[#allocation3 + $0x98] sm:$0xff] %vm308, 0.0
          %384 = vst.msk [vmem:[#allocation3 + $0xa0] sm:$0x3] %vm311, 0.0
          %385 = vst.msk [vmem:[#allocation3 + $0xa8] sm:$0xff] %vm308, 0.0
          %386 = vst.msk [vmem:[#allocation3 + $0xb0] sm:$0xff] %vm308, 0.0
          %387 = vst.msk [vmem:[#allocation3 + $0xb8] sm:$0x3] %vm311, 0.0
          %388 = vst.msk [vmem:[#allocation3 + $0xc0] sm:$0xff] %vm308, 0.0
          %389 = vst.msk [vmem:[#allocation3 + $0xc8] sm:$0xff] %vm308, 0.0
          %390 = vst.msk [vmem:[#allocation3 + $0xd0] sm:$0x3] %vm311, 0.0
          %391 = vst.msk [vmem:[#allocation3 + $0xd8] sm:$0xff] %vm308, 0.0
          %392 = vst.msk [vmem:[#allocation3 + $0xe0] sm:$0xff] %vm308, 0.0
          %393 = vst.msk [vmem:[#allocation3 + $0xe8] sm:$0x3] %vm311, 0.0
          %394 = vst.msk [vmem:[#allocation3 + $0xf0] sm:$0xff] %vm308, 0.0
          %395 = vst.msk [vmem:[#allocation3 + $0xf8] sm:$0xff] %vm308, 0.0
          %396 = vst.msk [vmem:[#allocation3 + $0x100] sm:$0x3] %vm311, 0.0
          %397 = vst.msk [vmem:[#allocation3 + $0x108] sm:$0xff] %vm308, 0.0
          %398 = vst.msk [vmem:[#allocation3 + $0x110] sm:$0xff] %vm308, 0.0
          %399 = vst.msk [vmem:[#allocation3 + $0x118] sm:$0x3] %vm311, 0.0
          %400 = vst.msk [vmem:[#allocation3 + $0x120] sm:$0xff] %vm308, 0.0
          %401 = vst.msk [vmem:[#allocation3 + $0x128] sm:$0xff] %vm308, 0.0
          %402 = vst.msk [vmem:[#allocation3 + $0x130] sm:$0x3] %vm311, 0.0
          %403 = vst.msk [vmem:[#allocation3 + $0x138] sm:$0xff] %vm308, 0.0
          %404 = vst.msk [vmem:[#allocation3 + $0x140] sm:$0xff] %vm308, 0.0
          %405 = vst.msk [vmem:[#allocation3 + $0x148] sm:$0x3] %vm311, 0.0
          %406 = vst.msk [vmem:[#allocation3 + $0x150] sm:$0xff] %vm308, 0.0
          %407 = vst.msk [vmem:[#allocation3 + $0x158] sm:$0xff] %vm308, 0.0
          %408 = vst.msk [vmem:[#allocation3 + $0x160] sm:$0x3] %vm311, 0.0
          %409 = vst.msk [vmem:[#allocation3 + $0x168] sm:$0xff] %vm308, 0.0
          %410 = vst.msk [vmem:[#allocation3 + $0x170] sm:$0xff] %vm308, 0.0
          %411 = vst.msk [vmem:[#allocation3 + $0x178] sm:$0x3] %vm311, 0.0
          %412 = vst.msk [vmem:[#allocation3 + $0x180] sm:$0xff] %vm308, 0.0
          %413 = vst.msk [vmem:[#allocation3 + $0x188] sm:$0xff] %vm308, 0.0
          %414 = vst.msk [vmem:[#allocation3 + $0x190] sm:$0x3] %vm311, 0.0
          %415 = vst.msk [vmem:[#allocation3 + $0x198] sm:$0xff] %vm308, 0.0
          %416 = vst.msk [vmem:[#allocation3 + $0x1a0] sm:$0xff] %vm308, 0.0
          %417 = vst.msk [vmem:[#allocation3 + $0x1a8] sm:$0x3] %vm311, 0.0
          %v418 = vld [vmem:[%s286] sm:$0xff]
          %v419 = vld [vmem:[%s286 + $0x8] sm:$0xff]
          %v420 = vld [vmem:[%s286 + $0x10] sm:$0xff]
          %v421 = vld [vmem:[%s286 + $0x18] sm:$0xff]
          %v422 = vld [vmem:[%s286 + $0x20] sm:$0xff]
          %v423 = vld [vmem:[%s286 + $0x28] sm:$0xff]
          %v424 = vld [vmem:[%s286 + $0x30] sm:$0xff]
          %v425 = vld [vmem:[%s286 + $0x38] sm:$0xff]
          %v426 = vld [vmem:[%s286 + $0x40] sm:$0xff]
          %v427 = vld [vmem:[%s286 + $0x48] sm:$0xff]
          %v428 = vld [vmem:[%s286 + $0x50] sm:$0xff]
          %v429 = vld [vmem:[%s286 + $0x58] sm:$0xff]
          %v430 = vld [vmem:[%s286 + $0x60] sm:$0xff]
          %v431 = vld [vmem:[%s286 + $0x68] sm:$0xff]
          %v432 = vld [vmem:[%s286 + $0x70] sm:$0xff]
          %v433 = vld [vmem:[%s286 + $0x78] sm:$0xff]
          %434 = vxpose.xlu0.b32.start [1/16] %v418, 128
          %435 = vxpose.xlu0.b32.cont [2/16] %v420, 128
          %436 = vxpose.xlu0.b32.cont [3/16] %v422, 128
          %437 = vxpose.xlu0.b32.cont [4/16] %v424, 128
          %438 = vxpose.xlu0.b32.cont [5/16] %v426, 128
          %439 = vxpose.xlu0.b32.cont [6/16] %v428, 128
          %440 = vxpose.xlu0.b32.cont [7/16] %v430, 128
          %441 = vxpose.xlu0.b32.cont [8/16] %v432, 128
          %442 = vxpose.xlu0.b32.cont [9/16] 0.0, 128
          %443 = vxpose.xlu0.b32.cont [10/16] 0.0, 128
          %444 = vxpose.xlu0.b32.cont [11/16] 0.0, 128
          %445 = vxpose.xlu0.b32.cont [12/16] 0.0, 128
          %446 = vxpose.xlu0.b32.cont [13/16] 0.0, 128
          %447 = vxpose.xlu0.b32.cont [14/16] 0.0, 128
          %448 = vxpose.xlu0.b32.cont [15/16] 0.0, 128
          %449 = vxpose.xlu0.b32.end [16/16] 0.0, 128
          %v450 = vpop.trf.xlu0
          %v451 = vpop.trf.xlu0
          %v452 = vpop.trf.xlu0
          %v453 = vpop.trf.xlu0
          %v454 = vpop.trf.xlu0
          %v455 = vpop.trf.xlu0
          %v456 = vpop.trf.xlu0
          %v457 = vpop.trf.xlu0
          %v458 = vpop.trf.xlu0
          %v459 = vpop.trf.xlu0
          %v460 = vpop.trf.xlu0
          %v461 = vpop.trf.xlu0
          %v462 = vpop.trf.xlu0
          %v463 = vpop.trf.xlu0
          %v464 = vpop.trf.xlu0
          %v465 = vpop.trf.xlu0
          %466 = vxpose.xlu0.b32.start [1/16] %v419, 128
          %467 = vxpose.xlu0.b32.cont [2/16] %v421, 128
          %468 = vxpose.xlu0.b32.cont [3/16] %v423, 128
          %469 = vxpose.xlu0.b32.cont [4/16] %v425, 128
          %470 = vxpose.xlu0.b32.cont [5/16] %v427, 128
          %471 = vxpose.xlu0.b32.cont [6/16] %v429, 128
          %472 = vxpose.xlu0.b32.cont [7/16] %v431, 128
          %473 = vxpose.xlu0.b32.cont [8/16] %v433, 128
          %474 = vxpose.xlu0.b32.cont [9/16] 0.0, 128
          %475 = vxpose.xlu0.b32.cont [10/16] 0.0, 128
          %476 = vxpose.xlu0.b32.cont [11/16] 0.0, 128
          %477 = vxpose.xlu0.b32.cont [12/16] 0.0, 128
          %478 = vxpose.xlu0.b32.cont [13/16] 0.0, 128
          %479 = vxpose.xlu0.b32.cont [14/16] 0.0, 128
          %480 = vxpose.xlu0.b32.cont [15/16] 0.0, 128
          %481 = vxpose.xlu0.b32.end [16/16] 0.0, 128
          %v482 = vpop.trf.xlu0
          %v483 = vpop.trf.xlu0
          %v484 = vpop.trf.xlu0
          %v485 = vpop.trf.xlu0
          %v486 = vpop.trf.xlu0
          %v487 = vpop.trf.xlu0
          %v488 = vpop.trf.xlu0
          %v489 = vpop.trf.xlu0
          %v490 = vpop.trf.xlu0
          %v491 = vpop.trf.xlu0
          %v492 = vpop.trf.xlu0
          %v493 = vpop.trf.xlu0
          %v494 = vpop.trf.xlu0
          %v495 = vpop.trf.xlu0
          %v496 = vpop.trf.xlu0
          %v497 = vpop.trf.xlu0
          %s498 = scalar_lea.vmem [#allocation2], 24
          %499 = vst.msk [vmem:[%s498 + $0x1] sm:$0xff] %vm308, %v450
          %500 = vst.msk [vmem:[%s498 + $0x9] sm:$0xff] %vm308, %v451
          %501 = vst.msk [vmem:[%s498 + $0x19] sm:$0xff] %vm308, %v452
          %502 = vst.msk [vmem:[%s498 + $0x21] sm:$0xff] %vm308, %v453
          %503 = vst.msk [vmem:[%s498 + $0x31] sm:$0xff] %vm308, %v454
          %504 = vst.msk [vmem:[%s498 + $0x39] sm:$0xff] %vm308, %v455
          %505 = vst.msk [vmem:[%s498 + $0x49] sm:$0xff] %vm308, %v456
          %506 = vst.msk [vmem:[%s498 + $0x51] sm:$0xff] %vm308, %v457
          %507 = vst.msk [vmem:[%s498 + $0x61] sm:$0xff] %vm308, %v458
          %508 = vst.msk [vmem:[%s498 + $0x69] sm:$0xff] %vm308, %v459
          %509 = vst.msk [vmem:[%s498 + $0x79] sm:$0xff] %vm308, %v460
          %510 = vst.msk [vmem:[%s498 + $0x81] sm:$0xff] %vm308, %v461
          %511 = vst.msk [vmem:[%s498 + $0x91] sm:$0xff] %vm308, %v462
          %512 = vst.msk [vmem:[%s498 + $0x99] sm:$0xff] %vm308, %v463
          %513 = vst.msk [vmem:[%s498 + $0xa9] sm:$0xff] %vm308, %v464
          %514 = vst.msk [vmem:[%s498 + $0xb1] sm:$0xff] %vm308, %v465
          %515 = vst.msk [vmem:[%s498 + $0xc1] sm:$0xff] %vm308, %v482
          %516 = vst.msk [vmem:[%s498 + $0xc9] sm:$0xff] %vm308, %v483
          %517 = vst.msk [vmem:[%s498 + $0xd9] sm:$0xff] %vm308, %v484
          %518 = vst.msk [vmem:[%s498 + $0xe1] sm:$0xff] %vm308, %v485
          %519 = vst.msk [vmem:[%s498 + $0xf1] sm:$0xff] %vm308, %v486
          %520 = vst.msk [vmem:[%s498 + $0xf9] sm:$0xff] %vm308, %v487
          %521 = vst.msk [vmem:[%s498 + $0x109] sm:$0xff] %vm308, %v488
          %522 = vst.msk [vmem:[%s498 + $0x111] sm:$0xff] %vm308, %v489
          %523 = vst.msk [vmem:[%s498 + $0x121] sm:$0xff] %vm308, %v490
          %524 = vst.msk [vmem:[%s498 + $0x129] sm:$0xff] %vm308, %v491
          %525 = vst.msk [vmem:[%s498 + $0x139] sm:$0xff] %vm308, %v492
          %526 = vst.msk [vmem:[%s498 + $0x141] sm:$0xff] %vm308, %v493
          %527 = vst.msk [vmem:[%s498 + $0x151] sm:$0xff] %vm308, %v494
          %528 = vst.msk [vmem:[%s498 + $0x159] sm:$0xff] %vm308, %v495
          %529 = vst.msk [vmem:[%s498 + $0x169] sm:$0xff] %vm308, %v496
          %530 = vst.msk [vmem:[%s498 + $0x171] sm:$0xff] %vm308, %v497
        $region44: #{tpu_custom_call.1} parent=39 // pred_fallthru
          _
        %v531 = vld [vmem:[#allocation2] sm:$0xff]
        %v532 = vld [vmem:[#allocation2 + $0x8] sm:$0xff]
        %v533 = vld [vmem:[#allocation2 + $0x10] sm:$0x3]
        %v534 = vld [vmem:[#allocation2 + $0x18] sm:$0xff]
        %v535 = vld [vmem:[#allocation2 + $0x20] sm:$0xff]
        %v536 = vld [vmem:[#allocation2 + $0x28] sm:$0x3]
        %v537 = vld [vmem:[#allocation2 + $0x30] sm:$0xff]
        %v538 = vld [vmem:[#allocation2 + $0x38] sm:$0xff]
        %v539 = vld [vmem:[#allocation2 + $0x40] sm:$0x3]
        %v540 = vld [vmem:[#allocation2 + $0x48] sm:$0xff]
        %v541 = vld [vmem:[#allocation2 + $0x50] sm:$0xff]
        %v542 = vld [vmem:[#allocation2 + $0x58] sm:$0x3]
        %v543 = vld [vmem:[#allocation2 + $0x60] sm:$0xff]
        %v544 = vld [vmem:[#allocation2 + $0x68] sm:$0xff]
        %v545 = vld [vmem:[#allocation2 + $0x70] sm:$0x3]
        %v546 = vld [vmem:[#allocation2 + $0x78] sm:$0xff]
        %v547 = vld [vmem:[#allocation2 + $0x80] sm:$0xff]
        %v548 = vld [vmem:[#allocation2 + $0x88] sm:$0x3]
        %v549 = vld [vmem:[#allocation2 + $0x90] sm:$0xff]
        %v550 = vld [vmem:[#allocation2 + $0x98] sm:$0xff]
        %v551 = vld [vmem:[#allocation2 + $0xa0] sm:$0x3]
        %v552 = vld [vmem:[#allocation2 + $0xa8] sm:$0xff]
        %v553 = vld [vmem:[#allocation2 + $0xb0] sm:$0xff]
        %v554 = vld [vmem:[#allocation2 + $0xb8] sm:$0x3]
        %v555 = vld [vmem:[#allocation2 + $0xc0] sm:$0xff]
        %v556 = vld [vmem:[#allocation2 + $0xc8] sm:$0xff]
        %v557 = vld [vmem:[#allocation2 + $0xd0] sm:$0x3]
        %v558 = vld [vmem:[#allocation2 + $0xd8] sm:$0xff]
        %v559 = vld [vmem:[#allocation2 + $0xe0] sm:$0xff]
        %v560 = vld [vmem:[#allocation2 + $0xe8] sm:$0x3]
        %v561 = vld [vmem:[#allocation2 + $0xf0] sm:$0xff]
        %v562 = vld [vmem:[#allocation2 + $0xf8] sm:$0xff]
        %v563 = vld [vmem:[#allocation2 + $0x100] sm:$0x3]
        %v564 = vld [vmem:[#allocation2 + $0x108] sm:$0xff]
        %v565 = vld [vmem:[#allocation2 + $0x110] sm:$0xff]
        %v566 = vld [vmem:[#allocation2 + $0x118] sm:$0x3]
        %v567 = vld [vmem:[#allocation2 + $0x120] sm:$0xff]
        %v568 = vld [vmem:[#allocation2 + $0x128] sm:$0xff]
        %v569 = vld [vmem:[#allocation2 + $0x130] sm:$0x3]
        %v570 = vld [vmem:[#allocation2 + $0x138] sm:$0xff]
        %v571 = vld [vmem:[#allocation2 + $0x140] sm:$0xff]
        %v572 = vld [vmem:[#allocation2 + $0x148] sm:$0x3]
        %v573 = vld [vmem:[#allocation2 + $0x150] sm:$0xff]
        %v574 = vld [vmem:[#allocation2 + $0x158] sm:$0xff]
        %v575 = vld [vmem:[#allocation2 + $0x160] sm:$0x3]
        %v576 = vld [vmem:[#allocation2 + $0x168] sm:$0xff]
        %v577 = vld [vmem:[#allocation2 + $0x170] sm:$0xff]
        %v578 = vld [vmem:[#allocation2 + $0x178] sm:$0x3]
        %v579 = vld [vmem:[#allocation2 + $0x180] sm:$0xff]
        %v580 = vld [vmem:[#allocation2 + $0x188] sm:$0xff]
        %v581 = vld [vmem:[#allocation2 + $0x190] sm:$0x3]
        %v582 = vld [vmem:[#allocation2 + $0x198] sm:$0xff]
        %v583 = vld [vmem:[#allocation2 + $0x1a0] sm:$0xff]
        %v584 = vld [vmem:[#allocation2 + $0x1a8] sm:$0x3]
        %vm633 = vcmask 1046528
        %v634 = vrot.slane %v534, 1
        %v635 = vrot.slane %v535, 1
        %v636 = vsel %vm633, %v634, %v635
        %v637 = vrot.slane %v536, 1
        %v638 = vsel %vm633, %v635, %v637
        %v639 = vrot.slane %v537, 1
        %v640 = vrot.slane %v538, 1
        %v641 = vsel %vm633, %v639, %v640
        %v642 = vrot.slane %v539, 1
        %v643 = vsel %vm633, %v640, %v642
        %v644 = vrot.slane %v540, 1
        %v645 = vrot.slane %v541, 1
        %v646 = vsel %vm633, %v644, %v645
        %v647 = vrot.slane %v542, 1
        %v648 = vsel %vm633, %v645, %v647
        %v649 = vrot.slane %v543, 1
        %v650 = vrot.slane %v544, 1
        %v651 = vsel %vm633, %v649, %v650
        %v652 = vrot.slane %v545, 1
        %v653 = vsel %vm633, %v650, %v652
        %v654 = vrot.slane %v546, 1
        %v655 = vrot.slane %v547, 1
        %v656 = vsel %vm633, %v654, %v655
        %v657 = vrot.slane %v548, 1
        %v658 = vsel %vm633, %v655, %v657
        %v659 = vrot.slane %v549, 1
        %v660 = vrot.slane %v550, 1
        %v661 = vsel %vm633, %v659, %v660
        %v662 = vrot.slane %v551, 1
        %v663 = vsel %vm633, %v660, %v662
        %v664 = vrot.slane %v552, 1
        %v665 = vrot.slane %v553, 1
        %v666 = vsel %vm633, %v664, %v665
        %v667 = vrot.slane %v554, 1
        %v668 = vsel %vm633, %v665, %v667
        %v669 = vrot.slane %v555, 1
        %v670 = vrot.slane %v556, 1
        %v671 = vsel %vm633, %v669, %v670
        %v672 = vrot.slane %v557, 1
        %v673 = vsel %vm633, %v670, %v672
        %v674 = vrot.slane %v558, 1
        %v675 = vrot.slane %v559, 1
        %v676 = vsel %vm633, %v674, %v675
        %v677 = vrot.slane %v560, 1
        %v678 = vsel %vm633, %v675, %v677
        %v679 = vrot.slane %v561, 1
        %v680 = vrot.slane %v562, 1
        %v681 = vsel %vm633, %v679, %v680
        %v682 = vrot.slane %v563, 1
        %v683 = vsel %vm633, %v680, %v682
        %v684 = vrot.slane %v564, 1
        %v685 = vrot.slane %v565, 1
        %v686 = vsel %vm633, %v684, %v685
        %v687 = vrot.slane %v566, 1
        %v688 = vsel %vm633, %v685, %v687
        %v689 = vrot.slane %v567, 1
        %v690 = vrot.slane %v568, 1
        %v691 = vsel %vm633, %v689, %v690
        %v692 = vrot.slane %v569, 1
        %v693 = vsel %vm633, %v690, %v692
        %v694 = vrot.slane %v570, 1
        %v695 = vrot.slane %v571, 1
        %v696 = vsel %vm633, %v694, %v695
        %v697 = vrot.slane %v572, 1
        %v698 = vsel %vm633, %v695, %v697
        %v699 = vrot.slane %v573, 1
        %v700 = vrot.slane %v574, 1
        %v701 = vsel %vm633, %v699, %v700
        %v702 = vrot.slane %v575, 1
        %v703 = vsel %vm633, %v700, %v702
        %v704 = vrot.slane %v576, 1
        %v705 = vrot.slane %v577, 1
        %v706 = vsel %vm633, %v704, %v705
        %v707 = vrot.slane %v578, 1
        %v708 = vsel %vm633, %v705, %v707
        %v709 = vrot.slane %v579, 1
        %v710 = vrot.slane %v580, 1
        %v711 = vsel %vm633, %v709, %v710
        %v712 = vrot.slane %v581, 1
        %v713 = vsel %vm633, %v710, %v712
        %v746 = vmax.f32 %v531, 0.0
        %v747 = vmax.f32 %v532, 0.0
        %v748 = vmax.f32 %v533, 0.0
        %v749 = vmax.f32 %v534, 0.0
        %v750 = vmax.f32 %v535, 0.0
        %v751 = vmax.f32 %v536, 0.0
        %v752 = vmax.f32 %v537, 0.0
        %v753 = vmax.f32 %v538, 0.0
        %v754 = vmax.f32 %v539, 0.0
        %v755 = vmax.f32 %v540, 0.0
        %v756 = vmax.f32 %v541, 0.0
        %v757 = vmax.f32 %v542, 0.0
        %v758 = vmax.f32 %v543, 0.0
        %v759 = vmax.f32 %v544, 0.0
        %v760 = vmax.f32 %v545, 0.0
        %v761 = vmax.f32 %v546, 0.0
        %v762 = vmax.f32 %v547, 0.0
        %v763 = vmax.f32 %v548, 0.0
        %v764 = vmax.f32 %v549, 0.0
        %v765 = vmax.f32 %v550, 0.0
        %v766 = vmax.f32 %v551, 0.0
        %v767 = vmax.f32 %v552, 0.0
        %v768 = vmax.f32 %v553, 0.0
        %v769 = vmax.f32 %v554, 0.0
        %v770 = vmax.f32 %v555, 0.0
        %v771 = vmax.f32 %v556, 0.0
        %v772 = vmax.f32 %v557, 0.0
        %v773 = vmax.f32 %v558, 0.0
        %v774 = vmax.f32 %v559, 0.0
        %v775 = vmax.f32 %v560, 0.0
        %v776 = vmax.f32 %v561, 0.0
        %v777 = vmax.f32 %v562, 0.0
        %v778 = vmax.f32 %v563, 0.0
        %v779 = vmax.f32 %v564, 0.0
        %v780 = vmax.f32 %v565, 0.0
        %v781 = vmax.f32 %v566, 0.0
        %v782 = vmax.f32 %v567, 0.0
        %v783 = vmax.f32 %v568, 0.0
        %v784 = vmax.f32 %v569, 0.0
        %v785 = vmax.f32 %v570, 0.0
        %v786 = vmax.f32 %v571, 0.0
        %v787 = vmax.f32 %v572, 0.0
        %v788 = vmax.f32 %v573, 0.0
        %v789 = vmax.f32 %v574, 0.0
        %v790 = vmax.f32 %v575, 0.0
        %v791 = vmax.f32 %v576, 0.0
        %v792 = vmax.f32 %v577, 0.0
        %v793 = vmax.f32 %v578, 0.0
        %v794 = vmax.f32 %v579, 0.0
        %v795 = vmax.f32 %v580, 0.0
        %v796 = vmax.f32 %v581, 0.0
        %v797 = vmax.f32 %v582, 0.0
        %v798 = vmax.f32 %v583, 0.0
        %v799 = vmax.f32 %v584, 0.0
        %v800 = vld [vmem:[%s291] sm:$0xf]
        %v801 = vld [vmem:[%s291 + $0x4] sm:$0xf]
        %v802 = vld [vmem:[%s291 + $0x8] sm:$0xf]
        %v803 = vld [vmem:[%s291 + $0xc] sm:$0xf]
        %v804 = vld [vmem:[%s291 + $0x10] sm:$0xf]
        %v805 = vld [vmem:[%s291 + $0x14] sm:$0xf]
        %v806 = vld [vmem:[%s291 + $0x18] sm:$0xf]
        %v807 = vld [vmem:[%s291 + $0x1c] sm:$0xf]
        %v808 = vld [vmem:[%s291 + $0x20] sm:$0xf]
        %v809 = vld [vmem:[%s291 + $0x24] sm:$0xf]
        %v810 = vld [vmem:[%s291 + $0x28] sm:$0xf]
        %v811 = vld [vmem:[%s291 + $0x2c] sm:$0xf]
        %v812 = vld [vmem:[%s291 + $0x30] sm:$0xf]
        %v813 = vld [vmem:[%s291 + $0x34] sm:$0xf]
        %v814 = vld [vmem:[%s291 + $0x38] sm:$0xf]
        %v815 = vld [vmem:[%s291 + $0x3c] sm:$0xf]
        %v816 = vld [vmem:[%s291 + $0x40] sm:$0xf]
        %v817 = vld [vmem:[%s291 + $0x44] sm:$0xf]
        %v818 = vld [vmem:[%s291 + $0x48] sm:$0xf]
        %v819 = vld [vmem:[%s291 + $0x4c] sm:$0xf]
        %v820 = vld [vmem:[%s291 + $0x50] sm:$0xf]
        %v821 = vld [vmem:[%s291 + $0x54] sm:$0xf]
        %v822 = vld [vmem:[%s291 + $0x58] sm:$0xf]
        %v823 = vld [vmem:[%s291 + $0x5c] sm:$0xf]
        %v824 = vld [vmem:[%s291 + $0x60] sm:$0xf]
        %v825 = vld [vmem:[%s291 + $0x64] sm:$0xf]
        %v826 = vld [vmem:[%s291 + $0x68] sm:$0xf]
        %v827 = vld [vmem:[%s291 + $0x6c] sm:$0xf]
        %v828 = vld [vmem:[%s291 + $0x70] sm:$0xf]
        %v829 = vld [vmem:[%s291 + $0x74] sm:$0xf]
        %v830 = vld [vmem:[%s291 + $0x78] sm:$0xf]
        %v831 = vld [vmem:[%s291 + $0x7c] sm:$0xf]
        %v832 = vld [vmem:[%s291 + $0x80] sm:$0xf]
        %v833 = vld [vmem:[%s291 + $0x84] sm:$0xf]
        %v834 = vld [vmem:[%s291 + $0x88] sm:$0xf]
        %v835 = vld [vmem:[%s291 + $0x8c] sm:$0xf]
        %v836 = vld [vmem:[%s291 + $0x90] sm:$0xf]
        %v837 = vld [vmem:[%s291 + $0x94] sm:$0xf]
        %v838 = vld [vmem:[%s291 + $0x98] sm:$0xf]
        %v839 = vld [vmem:[%s291 + $0x9c] sm:$0xf]
        %v840 = vld [vmem:[%s291 + $0xa0] sm:$0xf]
        %v841 = vld [vmem:[%s291 + $0xa4] sm:$0xf]
        %v842 = vld [vmem:[%s291 + $0xa8] sm:$0xf]
        %v843 = vld [vmem:[%s291 + $0xac] sm:$0xf]
        %v844 = vld [vmem:[%s291 + $0xb0] sm:$0xf]
        %v845 = vld [vmem:[%s291 + $0xb4] sm:$0xf]
        %v846 = vld [vmem:[%s291 + $0xb8] sm:$0xf]
        %v847 = vld [vmem:[%s291 + $0xbc] sm:$0xf]
        %v848 = vld [vmem:[%s291 + $0xc0] sm:$0xf]
        %v849 = vld [vmem:[%s291 + $0xc4] sm:$0xf]
        %v850 = vld [vmem:[%s291 + $0xc8] sm:$0xf]
        %v851 = vld [vmem:[%s291 + $0xcc] sm:$0xf]
        %v852 = vld [vmem:[%s291 + $0xd0] sm:$0xf]
        %v853 = vld [vmem:[%s291 + $0xd4] sm:$0xf]
        %v854 = vld [vmem:[%s291 + $0xd8] sm:$0xf]
        %v855 = vld [vmem:[%s291 + $0xdc] sm:$0xf]
        %v856 = vld [vmem:[%s291 + $0xe0] sm:$0xf]
        %v857 = vld [vmem:[%s291 + $0xe4] sm:$0xf]
        %v858 = vld [vmem:[%s291 + $0xe8] sm:$0xf]
        %v859 = vld [vmem:[%s291 + $0xec] sm:$0xf]
        %v860 = vld [vmem:[%s291 + $0xf0] sm:$0xf]
        %v861 = vld [vmem:[%s291 + $0xf4] sm:$0xf]
        %v862 = vld [vmem:[%s291 + $0xf8] sm:$0xf]
        %v863 = vld [vmem:[%s291 + $0xfc] sm:$0xf]
        %v864 = vld [vmem:[%s291 + $0x100] sm:$0xf]
        %v865 = vld [vmem:[%s291 + $0x104] sm:$0xf]
        %v866 = vld [vmem:[%s291 + $0x108] sm:$0xf]
        %v867 = vld [vmem:[%s291 + $0x10c] sm:$0xf]
        %v868 = vld [vmem:[%s291 + $0x110] sm:$0xf]
        %v869 = vld [vmem:[%s291 + $0x114] sm:$0xf]
        %v870 = vld [vmem:[%s291 + $0x118] sm:$0xf]
        %v871 = vld [vmem:[%s291 + $0x11c] sm:$0xf]
        %v872 = vld [vmem:[%s294] sm:$0x1]
        %v921 = vrot.slane %v746, 1
        %v922 = vrot.slane %v747, 1
        %v923 = vsel %vm633, %v921, %v922
        %v924 = vrot.slane %v748, 1
        %v925 = vsel %vm633, %v922, %v924
        %v926 = vrot.slane %v749, 1
        %v927 = vrot.slane %v750, 1
        %v928 = vsel %vm633, %v926, %v927
        %v929 = vrot.slane %v751, 1
        %v930 = vsel %vm633, %v927, %v929
        %v931 = vrot.slane %v752, 1
        %v932 = vrot.slane %v753, 1
        %v933 = vsel %vm633, %v931, %v932
        %v934 = vrot.slane %v754, 1
        %v935 = vsel %vm633, %v932, %v934
        %v936 = vrot.slane %v755, 1
        %v937 = vrot.slane %v756, 1
        %v938 = vsel %vm633, %v936, %v937
        %v939 = vrot.slane %v757, 1
        %v940 = vsel %vm633, %v937, %v939
        %v941 = vrot.slane %v758, 1
        %v942 = vrot.slane %v759, 1
        %v943 = vsel %vm633, %v941, %v942
        %v944 = vrot.slane %v760, 1
        %v945 = vsel %vm633, %v942, %v944
        %v946 = vrot.slane %v761, 1
        %v947 = vrot.slane %v762, 1
        %v948 = vsel %vm633, %v946, %v947
        %v949 = vrot.slane %v763, 1
        %v950 = vsel %vm633, %v947, %v949
        %v951 = vrot.slane %v764, 1
        %v952 = vrot.slane %v765, 1
        %v953 = vsel %vm633, %v951, %v952
        %v954 = vrot.slane %v766, 1
        %v955 = vsel %vm633, %v952, %v954
        %v956 = vrot.slane %v767, 1
        %v957 = vrot.slane %v768, 1
        %v958 = vsel %vm633, %v956, %v957
        %v959 = vrot.slane %v769, 1
        %v960 = vsel %vm633, %v957, %v959
        %v961 = vrot.slane %v770, 1
        %v962 = vrot.slane %v771, 1
        %v963 = vsel %vm633, %v961, %v962
        %v964 = vrot.slane %v772, 1
        %v965 = vsel %vm633, %v962, %v964
        %v966 = vrot.slane %v773, 1
        %v967 = vrot.slane %v774, 1
        %v968 = vsel %vm633, %v966, %v967
        %v969 = vrot.slane %v775, 1
        %v970 = vsel %vm633, %v967, %v969
        %v971 = vrot.slane %v776, 1
        %v972 = vrot.slane %v777, 1
        %v973 = vsel %vm633, %v971, %v972
        %v974 = vrot.slane %v778, 1
        %v975 = vsel %vm633, %v972, %v974
        %v976 = vrot.slane %v779, 1
        %v977 = vrot.slane %v780, 1
        %v978 = vsel %vm633, %v976, %v977
        %v979 = vrot.slane %v781, 1
        %v980 = vsel %vm633, %v977, %v979
        %v981 = vrot.slane %v782, 1
        %v982 = vrot.slane %v783, 1
        %v983 = vsel %vm633, %v981, %v982
        %v984 = vrot.slane %v784, 1
        %v985 = vsel %vm633, %v982, %v984
        %v986 = vrot.slane %v785, 1
        %v987 = vrot.slane %v786, 1
        %v988 = vsel %vm633, %v986, %v987
        %v989 = vrot.slane %v787, 1
        %v990 = vsel %vm633, %v987, %v989
        %v991 = vrot.slane %v788, 1
        %v992 = vrot.slane %v789, 1
        %v993 = vsel %vm633, %v991, %v992
        %v994 = vrot.slane %v790, 1
        %v995 = vsel %vm633, %v992, %v994
        %v996 = vrot.slane %v791, 1
        %v997 = vrot.slane %v792, 1
        %v998 = vsel %vm633, %v996, %v997
        %v999 = vrot.slane %v793, 1
        %v1000 = vsel %vm633, %v997, %v999
        %vm1001 = vcmask 1045504
        %v1002 = vrot.slane %v746, 2
        %v1003 = vrot.slane %v747, 2
        %v1004 = vsel %vm1001, %v1002, %v1003
        %v1005 = vrot.slane %v748, 2
        %v1006 = vsel %vm1001, %v1003, %v1005
        %v1007 = vrot.slane %v749, 2
        %v1008 = vrot.slane %v750, 2
        %v1009 = vsel %vm1001, %v1007, %v1008
        %v1010 = vrot.slane %v751, 2
        %v1011 = vsel %vm1001, %v1008, %v1010
        %v1012 = vrot.slane %v752, 2
        %v1013 = vrot.slane %v753, 2
        %v1014 = vsel %vm1001, %v1012, %v1013
        %v1015 = vrot.slane %v754, 2
        %v1016 = vsel %vm1001, %v1013, %v1015
        %v1017 = vrot.slane %v755, 2
        %v1018 = vrot.slane %v756, 2
        %v1019 = vsel %vm1001, %v1017, %v1018
        %v1020 = vrot.slane %v757, 2
        %v1021 = vsel %vm1001, %v1018, %v1020
        %v1022 = vrot.slane %v758, 2
        %v1023 = vrot.slane %v759, 2
        %v1024 = vsel %vm1001, %v1022, %v1023
        %v1025 = vrot.slane %v760, 2
        %v1026 = vsel %vm1001, %v1023, %v1025
        %v1027 = vrot.slane %v761, 2
        %v1028 = vrot.slane %v762, 2
        %v1029 = vsel %vm1001, %v1027, %v1028
        %v1030 = vrot.slane %v763, 2
        %v1031 = vsel %vm1001, %v1028, %v1030
        %v1032 = vrot.slane %v764, 2
        %v1033 = vrot.slane %v765, 2
        %v1034 = vsel %vm1001, %v1032, %v1033
        %v1035 = vrot.slane %v766, 2
        %v1036 = vsel %vm1001, %v1033, %v1035
        %v1037 = vrot.slane %v767, 2
        %v1038 = vrot.slane %v768, 2
        %v1039 = vsel %vm1001, %v1037, %v1038
        %v1040 = vrot.slane %v769, 2
        %v1041 = vsel %vm1001, %v1038, %v1040
        %v1042 = vrot.slane %v770, 2
        %v1043 = vrot.slane %v771, 2
        %v1044 = vsel %vm1001, %v1042, %v1043
        %v1045 = vrot.slane %v772, 2
        %v1046 = vsel %vm1001, %v1043, %v1045
        %v1047 = vrot.slane %v773, 2
        %v1048 = vrot.slane %v774, 2
        %v1049 = vsel %vm1001, %v1047, %v1048
        %v1050 = vrot.slane %v775, 2
        %v1051 = vsel %vm1001, %v1048, %v1050
        %v1052 = vrot.slane %v776, 2
        %v1053 = vrot.slane %v777, 2
        %v1054 = vsel %vm1001, %v1052, %v1053
        %v1055 = vrot.slane %v778, 2
        %v1056 = vsel %vm1001, %v1053, %v1055
        %v1057 = vrot.slane %v779, 2
        %v1058 = vrot.slane %v780, 2
        %v1059 = vsel %vm1001, %v1057, %v1058
        %v1060 = vrot.slane %v781, 2
        %v1061 = vsel %vm1001, %v1058, %v1060
        %v1062 = vrot.slane %v782, 2
        %v1063 = vrot.slane %v783, 2
        %v1064 = vsel %vm1001, %v1062, %v1063
        %v1065 = vrot.slane %v784, 2
        %v1066 = vsel %vm1001, %v1063, %v1065
        %v1067 = vrot.slane %v785, 2
        %v1068 = vrot.slane %v786, 2
        %v1069 = vsel %vm1001, %v1067, %v1068
        %v1070 = vrot.slane %v787, 2
        %v1071 = vsel %vm1001, %v1068, %v1070
        %v1072 = vrot.slane %v788, 2
        %v1073 = vrot.slane %v789, 2
        %v1074 = vsel %vm1001, %v1072, %v1073
        %v1075 = vrot.slane %v790, 2
        %v1076 = vsel %vm1001, %v1073, %v1075
        %v1077 = vrot.slane %v791, 2
        %v1078 = vrot.slane %v792, 2
        %v1079 = vsel %vm1001, %v1077, %v1078
        %v1080 = vrot.slane %v793, 2
        %v1081 = vsel %vm1001, %v1078, %v1080
        %v1117 = vrot.slane %v794, 1
        %v1118 = vrot.slane %v795, 1
        %v1119 = vsel %vm633, %v1117, %v1118
        %v1120 = vrot.slane %v796, 1
        %v1121 = vsel %vm633, %v1118, %v1120
        %v1154 = vrot.slane %v794, 2
        %v1155 = vrot.slane %v795, 2
        %v1156 = vsel %vm1001, %v1154, %v1155
        %v1157 = vrot.slane %v796, 2
        %v1158 = vsel %vm1001, %v1155, %v1157
        %v1162 = vrot.slane %v797, 1
        %v1163 = vrot.slane %v798, 1
        %v1164 = vsel %vm633, %v1162, %v1163
        %v1165 = vrot.slane %v799, 1
        %v1166 = vsel %vm633, %v1163, %v1165
        %v1167 = vrot.slane %v797, 2
        %v1168 = vrot.slane %v798, 2
        %v1169 = vsel %vm1001, %v1167, %v1168
        %v1170 = vrot.slane %v799, 2
        %v1171 = vsel %vm1001, %v1168, %v1170
        %1176 = vrot.lane.b32.xlu0 %v923, 64
        %v1177 = vpop.permute.xlu0 %1176
        %1178 = vrot.lane.b32.xlu0 %v925, 64
        %v1179 = vpop.permute.xlu0 %1178
        %1180 = vrot.lane.b32.xlu0 %v928, 64
        %v1181 = vpop.permute.xlu0 %1180
        %1182 = vrot.lane.b32.xlu0 %v930, 64
        %v1183 = vpop.permute.xlu0 %1182
        %1184 = vrot.lane.b32.xlu0 %v933, 64
        %v1185 = vpop.permute.xlu0 %1184
        %1186 = vrot.lane.b32.xlu0 %v935, 64
        %v1187 = vpop.permute.xlu0 %1186
        %1188 = vrot.lane.b32.xlu0 %v938, 64
        %v1189 = vpop.permute.xlu0 %1188
        %1190 = vrot.lane.b32.xlu0 %v940, 64
        %v1191 = vpop.permute.xlu0 %1190
        %1192 = vrot.lane.b32.xlu0 %v943, 64
        %v1193 = vpop.permute.xlu0 %1192
        %1194 = vrot.lane.b32.xlu0 %v945, 64
        %v1195 = vpop.permute.xlu0 %1194
        %1196 = vrot.lane.b32.xlu0 %v948, 64
        %v1197 = vpop.permute.xlu0 %1196
        %1198 = vrot.lane.b32.xlu0 %v950, 64
        %v1199 = vpop.permute.xlu0 %1198
        %1200 = vrot.lane.b32.xlu0 %v953, 64
        %v1201 = vpop.permute.xlu0 %1200
        %1202 = vrot.lane.b32.xlu0 %v955, 64
        %v1203 = vpop.permute.xlu0 %1202
        %1204 = vrot.lane.b32.xlu0 %v958, 64
        %v1205 = vpop.permute.xlu0 %1204
        %1206 = vrot.lane.b32.xlu0 %v960, 64
        %v1207 = vpop.permute.xlu0 %1206
        %1208 = vrot.lane.b32.xlu0 %v963, 64
        %v1209 = vpop.permute.xlu0 %1208
        %1210 = vrot.lane.b32.xlu0 %v965, 64
        %v1211 = vpop.permute.xlu0 %1210
        %1212 = vrot.lane.b32.xlu0 %v968, 64
        %v1213 = vpop.permute.xlu0 %1212
        %1214 = vrot.lane.b32.xlu0 %v970, 64
        %v1215 = vpop.permute.xlu0 %1214
        %1216 = vrot.lane.b32.xlu0 %v973, 64
        %v1217 = vpop.permute.xlu0 %1216
        %1218 = vrot.lane.b32.xlu0 %v975, 64
        %v1219 = vpop.permute.xlu0 %1218
        %1220 = vrot.lane.b32.xlu0 %v978, 64
        %v1221 = vpop.permute.xlu0 %1220
        %1222 = vrot.lane.b32.xlu0 %v980, 64
        %v1223 = vpop.permute.xlu0 %1222
        %1224 = vrot.lane.b32.xlu0 %v983, 64
        %v1225 = vpop.permute.xlu0 %1224
        %1226 = vrot.lane.b32.xlu0 %v985, 64
        %v1227 = vpop.permute.xlu0 %1226
        %1228 = vrot.lane.b32.xlu0 %v988, 64
        %v1229 = vpop.permute.xlu0 %1228
        %1230 = vrot.lane.b32.xlu0 %v990, 64
        %v1231 = vpop.permute.xlu0 %1230
        %1232 = vrot.lane.b32.xlu0 %v993, 64
        %v1233 = vpop.permute.xlu0 %1232
        %1234 = vrot.lane.b32.xlu0 %v995, 64
        %v1235 = vpop.permute.xlu0 %1234
        %1236 = vrot.lane.b32.xlu0 %v998, 64
        %v1237 = vpop.permute.xlu0 %1236
        %1238 = vrot.lane.b32.xlu0 %v1000, 64
        %v1239 = vpop.permute.xlu0 %1238
        %1272 = vrot.lane.b32.xlu0 %v749, 64
        %v1273 = vpop.permute.xlu0 %1272
        %1274 = vrot.lane.b32.xlu0 %v750, 64
        %v1275 = vpop.permute.xlu0 %1274
        %1276 = vrot.lane.b32.xlu0 %v752, 64
        %v1277 = vpop.permute.xlu0 %1276
        %1278 = vrot.lane.b32.xlu0 %v753, 64
        %v1279 = vpop.permute.xlu0 %1278
        %1280 = vrot.lane.b32.xlu0 %v755, 64
        %v1281 = vpop.permute.xlu0 %1280
        %1282 = vrot.lane.b32.xlu0 %v756, 64
        %v1283 = vpop.permute.xlu0 %1282
        %1284 = vrot.lane.b32.xlu0 %v758, 64
        %v1285 = vpop.permute.xlu0 %1284
        %1286 = vrot.lane.b32.xlu0 %v759, 64
        %v1287 = vpop.permute.xlu0 %1286
        %1288 = vrot.lane.b32.xlu0 %v761, 64
        %v1289 = vpop.permute.xlu0 %1288
        %1290 = vrot.lane.b32.xlu0 %v762, 64
        %v1291 = vpop.permute.xlu0 %1290
        %1292 = vrot.lane.b32.xlu0 %v764, 64
        %v1293 = vpop.permute.xlu0 %1292
        %1294 = vrot.lane.b32.xlu0 %v765, 64
        %v1295 = vpop.permute.xlu0 %1294
        %1296 = vrot.lane.b32.xlu0 %v767, 64
        %v1297 = vpop.permute.xlu0 %1296
        %1298 = vrot.lane.b32.xlu0 %v768, 64
        %v1299 = vpop.permute.xlu0 %1298
        %1300 = vrot.lane.b32.xlu0 %v770, 64
        %v1301 = vpop.permute.xlu0 %1300
        %1302 = vrot.lane.b32.xlu0 %v771, 64
        %v1303 = vpop.permute.xlu0 %1302
        %1304 = vrot.lane.b32.xlu0 %v773, 64
        %v1305 = vpop.permute.xlu0 %1304
        %1306 = vrot.lane.b32.xlu0 %v774, 64
        %v1307 = vpop.permute.xlu0 %1306
        %1308 = vrot.lane.b32.xlu0 %v776, 64
        %v1309 = vpop.permute.xlu0 %1308
        %1310 = vrot.lane.b32.xlu0 %v777, 64
        %v1311 = vpop.permute.xlu0 %1310
        %1312 = vrot.lane.b32.xlu0 %v779, 64
        %v1313 = vpop.permute.xlu0 %1312
        %1314 = vrot.lane.b32.xlu0 %v780, 64
        %v1315 = vpop.permute.xlu0 %1314
        %1316 = vrot.lane.b32.xlu0 %v782, 64
        %v1317 = vpop.permute.xlu0 %1316
        %1318 = vrot.lane.b32.xlu0 %v783, 64
        %v1319 = vpop.permute.xlu0 %1318
        %1320 = vrot.lane.b32.xlu0 %v785, 64
        %v1321 = vpop.permute.xlu0 %1320
        %1322 = vrot.lane.b32.xlu0 %v786, 64
        %v1323 = vpop.permute.xlu0 %1322
        %1324 = vrot.lane.b32.xlu0 %v788, 64
        %v1325 = vpop.permute.xlu0 %1324
        %1326 = vrot.lane.b32.xlu0 %v789, 64
        %v1327 = vpop.permute.xlu0 %1326
        %1328 = vrot.lane.b32.xlu0 %v791, 64
        %v1329 = vpop.permute.xlu0 %1328
        %1330 = vrot.lane.b32.xlu0 %v792, 64
        %v1331 = vpop.permute.xlu0 %1330
        %1332 = vrot.lane.b32.xlu0 %v794, 64
        %v1333 = vpop.permute.xlu0 %1332
        %1334 = vrot.lane.b32.xlu0 %v795, 64
        %v1335 = vpop.permute.xlu0 %1334
        %1368 = vrot.lane.b32.xlu0 %v1009, 64
        %v1369 = vpop.permute.xlu0 %1368
        %1370 = vrot.lane.b32.xlu0 %v1011, 64
        %v1371 = vpop.permute.xlu0 %1370
        %1372 = vrot.lane.b32.xlu0 %v1014, 64
        %v1373 = vpop.permute.xlu0 %1372
        %1374 = vrot.lane.b32.xlu0 %v1016, 64
        %v1375 = vpop.permute.xlu0 %1374
        %1376 = vrot.lane.b32.xlu0 %v1019, 64
        %v1377 = vpop.permute.xlu0 %1376
        %1378 = vrot.lane.b32.xlu0 %v1021, 64
        %v1379 = vpop.permute.xlu0 %1378
        %1380 = vrot.lane.b32.xlu0 %v1024, 64
        %v1381 = vpop.permute.xlu0 %1380
        %1382 = vrot.lane.b32.xlu0 %v1026, 64
        %v1383 = vpop.permute.xlu0 %1382
        %1384 = vrot.lane.b32.xlu0 %v1029, 64
        %v1385 = vpop.permute.xlu0 %1384
        %1386 = vrot.lane.b32.xlu0 %v1031, 64
        %v1387 = vpop.permute.xlu0 %1386
        %1388 = vrot.lane.b32.xlu0 %v1034, 64
        %v1389 = vpop.permute.xlu0 %1388
        %1390 = vrot.lane.b32.xlu0 %v1036, 64
        %v1391 = vpop.permute.xlu0 %1390
        %1392 = vrot.lane.b32.xlu0 %v1039, 64
        %v1393 = vpop.permute.xlu0 %1392
        %1394 = vrot.lane.b32.xlu0 %v1041, 64
        %v1395 = vpop.permute.xlu0 %1394
        %1396 = vrot.lane.b32.xlu0 %v1044, 64
        %v1397 = vpop.permute.xlu0 %1396
        %1398 = vrot.lane.b32.xlu0 %v1046, 64
        %v1399 = vpop.permute.xlu0 %1398
        %1400 = vrot.lane.b32.xlu0 %v1049, 64
        %v1401 = vpop.permute.xlu0 %1400
        %1402 = vrot.lane.b32.xlu0 %v1051, 64
        %v1403 = vpop.permute.xlu0 %1402
        %1404 = vrot.lane.b32.xlu0 %v1054, 64
        %v1405 = vpop.permute.xlu0 %1404
        %1406 = vrot.lane.b32.xlu0 %v1056, 64
        %v1407 = vpop.permute.xlu0 %1406
        %1408 = vrot.lane.b32.xlu0 %v1059, 64
        %v1409 = vpop.permute.xlu0 %1408
        %1410 = vrot.lane.b32.xlu0 %v1061, 64
        %v1411 = vpop.permute.xlu0 %1410
        %1412 = vrot.lane.b32.xlu0 %v1064, 64
        %v1413 = vpop.permute.xlu0 %1412
        %1414 = vrot.lane.b32.xlu0 %v1066, 64
        %v1415 = vpop.permute.xlu0 %1414
        %1416 = vrot.lane.b32.xlu0 %v1069, 64
        %v1417 = vpop.permute.xlu0 %1416
        %1418 = vrot.lane.b32.xlu0 %v1071, 64
        %v1419 = vpop.permute.xlu0 %1418
        %1420 = vrot.lane.b32.xlu0 %v1074, 64
        %v1421 = vpop.permute.xlu0 %1420
        %1422 = vrot.lane.b32.xlu0 %v1076, 64
        %v1423 = vpop.permute.xlu0 %1422
        %1424 = vrot.lane.b32.xlu0 %v1079, 64
        %v1425 = vpop.permute.xlu0 %1424
        %1426 = vrot.lane.b32.xlu0 %v1081, 64
        %v1427 = vpop.permute.xlu0 %1426
        %1428 = vrot.lane.b32.xlu0 %v1156, 64
        %v1429 = vpop.permute.xlu0 %1428
        %1430 = vrot.lane.b32.xlu0 %v1158, 64
        %v1431 = vpop.permute.xlu0 %1430
        %1464 = vrot.lane.b32.xlu0 %v1119, 64
        %v1465 = vpop.permute.xlu0 %1464
        %1466 = vrot.lane.b32.xlu0 %v1121, 64
        %v1467 = vpop.permute.xlu0 %1466
        %1468 = vrot.lane.b32.xlu0 %v1164, 64
        %v1469 = vpop.permute.xlu0 %1468
        %1470 = vrot.lane.b32.xlu0 %v1166, 64
        %v1471 = vpop.permute.xlu0 %1470
        %vm1476 = vcmask 523264
        %v1477 = vsel %vm1476, %v746, %v1177
        %v1478 = vsel %vm1476, %v747, %v1179
        %v1479 = vsel %vm1476, %v749, %v1181
        %v1480 = vsel %vm1476, %v750, %v1183
        %v1481 = vsel %vm1476, %v752, %v1185
        %v1482 = vsel %vm1476, %v753, %v1187
        %v1483 = vsel %vm1476, %v755, %v1189
        %v1484 = vsel %vm1476, %v756, %v1191
        %v1485 = vsel %vm1476, %v758, %v1193
        %v1486 = vsel %vm1476, %v759, %v1195
        %v1487 = vsel %vm1476, %v761, %v1197
        %v1488 = vsel %vm1476, %v762, %v1199
        %v1489 = vsel %vm1476, %v764, %v1201
        %v1490 = vsel %vm1476, %v765, %v1203
        %v1491 = vsel %vm1476, %v767, %v1205
        %v1492 = vsel %vm1476, %v768, %v1207
        %v1493 = vsel %vm1476, %v770, %v1209
        %v1494 = vsel %vm1476, %v771, %v1211
        %v1495 = vsel %vm1476, %v773, %v1213
        %v1496 = vsel %vm1476, %v774, %v1215
        %v1497 = vsel %vm1476, %v776, %v1217
        %v1498 = vsel %vm1476, %v777, %v1219
        %v1499 = vsel %vm1476, %v779, %v1221
        %v1500 = vsel %vm1476, %v780, %v1223
        %v1501 = vsel %vm1476, %v782, %v1225
        %v1502 = vsel %vm1476, %v783, %v1227
        %v1503 = vsel %vm1476, %v785, %v1229
        %v1504 = vsel %vm1476, %v786, %v1231
        %v1505 = vsel %vm1476, %v788, %v1233
        %v1506 = vsel %vm1476, %v789, %v1235
        %v1507 = vsel %vm1476, %v791, %v1237
        %v1508 = vsel %vm1476, %v792, %v1239
        %v1509 = vsel %vm1476, %v1004, %v1273
        %v1510 = vsel %vm1476, %v1006, %v1275
        %v1511 = vsel %vm1476, %v1009, %v1277
        %v1512 = vsel %vm1476, %v1011, %v1279
        %v1513 = vsel %vm1476, %v1014, %v1281
        %v1514 = vsel %vm1476, %v1016, %v1283
        %v1515 = vsel %vm1476, %v1019, %v1285
        %v1516 = vsel %vm1476, %v1021, %v1287
        %v1517 = vsel %vm1476, %v1024, %v1289
        %v1518 = vsel %vm1476, %v1026, %v1291
        %v1519 = vsel %vm1476, %v1029, %v1293
        %v1520 = vsel %vm1476, %v1031, %v1295
        %v1521 = vsel %vm1476, %v1034, %v1297
        %v1522 = vsel %vm1476, %v1036, %v1299
        %v1523 = vsel %vm1476, %v1039, %v1301
        %v1524 = vsel %vm1476, %v1041, %v1303
        %v1525 = vsel %vm1476, %v1044, %v1305
        %v1526 = vsel %vm1476, %v1046, %v1307
        %v1527 = vsel %vm1476, %v1049, %v1309
        %v1528 = vsel %vm1476, %v1051, %v1311
        %v1529 = vsel %vm1476, %v1054, %v1313
        %v1530 = vsel %vm1476, %v1056, %v1315
        %v1531 = vsel %vm1476, %v1059, %v1317
        %v1532 = vsel %vm1476, %v1061, %v1319
        %v1533 = vsel %vm1476, %v1064, %v1321
        %v1534 = vsel %vm1476, %v1066, %v1323
        %v1535 = vsel %vm1476, %v1069, %v1325
        %v1536 = vsel %vm1476, %v1071, %v1327
        %v1537 = vsel %vm1476, %v1074, %v1329
        %v1538 = vsel %vm1476, %v1076, %v1331
        %v1539 = vsel %vm1476, %v1079, %v1333
        %v1540 = vsel %vm1476, %v1081, %v1335
        %v1541 = vsel %vm1476, %v928, %v1369
        %v1542 = vsel %vm1476, %v930, %v1371
        %v1543 = vsel %vm1476, %v933, %v1373
        %v1544 = vsel %vm1476, %v935, %v1375
        %v1545 = vsel %vm1476, %v938, %v1377
        %v1546 = vsel %vm1476, %v940, %v1379
        %v1547 = vsel %vm1476, %v943, %v1381
        %v1548 = vsel %vm1476, %v945, %v1383
        %v1549 = vsel %vm1476, %v948, %v1385
        %v1550 = vsel %vm1476, %v950, %v1387
        %v1551 = vsel %vm1476, %v953, %v1389
        %v1552 = vsel %vm1476, %v955, %v1391
        %v1553 = vsel %vm1476, %v958, %v1393
        %v1554 = vsel %vm1476, %v960, %v1395
        %v1555 = vsel %vm1476, %v963, %v1397
        %v1556 = vsel %vm1476, %v965, %v1399
        %v1557 = vsel %vm1476, %v968, %v1401
        %v1558 = vsel %vm1476, %v970, %v1403
        %v1559 = vsel %vm1476, %v973, %v1405
        %v1560 = vsel %vm1476, %v975, %v1407
        %v1561 = vsel %vm1476, %v978, %v1409
        %v1562 = vsel %vm1476, %v980, %v1411
        %v1563 = vsel %vm1476, %v983, %v1413
        %v1564 = vsel %vm1476, %v985, %v1415
        %v1565 = vsel %vm1476, %v988, %v1417
        %v1566 = vsel %vm1476, %v990, %v1419
        %v1567 = vsel %vm1476, %v993, %v1421
        %v1568 = vsel %vm1476, %v995, %v1423
        %v1569 = vsel %vm1476, %v998, %v1425
        %v1570 = vsel %vm1476, %v1000, %v1427
        %v1571 = vsel %vm1476, %v1119, %v1429
        %v1572 = vsel %vm1476, %v1121, %v1431
        %v1573 = vsel %vm1476, %v794, %v1465
        %v1574 = vsel %vm1476, %v795, %v1467
        %v1575 = vsel %vm1476, %v797, %v1469
        %v1576 = vsel %vm1476, %v798, %v1471
        %v1577 = vpack.c.bf16 %v1478, %v1477
        %v1578 = vpack.c.bf16 %v1510, %v1509
        %v1579 = vpack.c.bf16 %v1542, %v1541
        %v1580 = vpack.c.bf16 %v1482, %v1481
        %v1581 = vpack.c.bf16 %v1016, %v1014
        %v1582 = vpack.c.bf16 %v1480, %v1479
        %v1583 = vpack.c.bf16 %v1512, %v1511
        %v1584 = vpack.c.bf16 %v1544, %v1543
        %v1585 = vpack.c.bf16 %v1484, %v1483
        %v1586 = vpack.c.bf16 %v1021, %v1019
        %v1587 = vpack.c.bf16 %v1514, %v1513
        %v1588 = vpack.c.bf16 %v1546, %v1545
        %v1589 = vpack.c.bf16 %v1486, %v1485
        %v1590 = vpack.c.bf16 %v1026, %v1024
        %v1591 = vpack.c.bf16 %v1516, %v1515
        %v1592 = vpack.c.bf16 %v1548, %v1547
        %v1593 = vpack.c.bf16 %v1488, %v1487
        %v1594 = vpack.c.bf16 %v1031, %v1029
        %v1595 = vpack.c.bf16 %v1518, %v1517
        %v1596 = vpack.c.bf16 %v1550, %v1549
        %v1597 = vpack.c.bf16 %v1490, %v1489
        %v1598 = vpack.c.bf16 %v1036, %v1034
        %v1599 = vpack.c.bf16 %v1520, %v1519
        %v1600 = vpack.c.bf16 %v1552, %v1551
        %v1601 = vpack.c.bf16 %v1492, %v1491
        %v1602 = vpack.c.bf16 %v1041, %v1039
        %v1603 = vpack.c.bf16 %v1522, %v1521
        %v1604 = vpack.c.bf16 %v1554, %v1553
        %v1605 = vpack.c.bf16 %v1494, %v1493
        %v1606 = vpack.c.bf16 %v1046, %v1044
        %v1607 = vpack.c.bf16 %v1524, %v1523
        %v1608 = vpack.c.bf16 %v1556, %v1555
        %v1609 = vpack.c.bf16 %v1496, %v1495
        %v1610 = vpack.c.bf16 %v1051, %v1049
        %v1611 = vpack.c.bf16 %v1526, %v1525
        %v1612 = vpack.c.bf16 %v1558, %v1557
        %v1613 = vpack.c.bf16 %v1498, %v1497
        %v1614 = vpack.c.bf16 %v1056, %v1054
        %v1615 = vpack.c.bf16 %v1528, %v1527
        %v1616 = vpack.c.bf16 %v1560, %v1559
        %v1617 = vpack.c.bf16 %v1500, %v1499
        %v1618 = vpack.c.bf16 %v1061, %v1059
        %v1619 = vpack.c.bf16 %v1530, %v1529
        %v1620 = vpack.c.bf16 %v1562, %v1561
        %v1621 = vpack.c.bf16 %v1502, %v1501
        %v1622 = vpack.c.bf16 %v1066, %v1064
        %v1623 = vpack.c.bf16 %v1532, %v1531
        %v1624 = vpack.c.bf16 %v1564, %v1563
        %v1625 = vpack.c.bf16 %v1504, %v1503
        %v1626 = vpack.c.bf16 %v1071, %v1069
        %v1627 = vpack.c.bf16 %v1534, %v1533
        %v1628 = vpack.c.bf16 %v1566, %v1565
        %v1629 = vpack.c.bf16 %v1506, %v1505
        %v1630 = vpack.c.bf16 %v1076, %v1074
        %v1631 = vpack.c.bf16 %v1536, %v1535
        %v1632 = vpack.c.bf16 %v1568, %v1567
        %v1633 = vpack.c.bf16 %v1508, %v1507
        %v1634 = vpack.c.bf16 %v1081, %v1079
        %v1635 = vpack.c.bf16 %v1538, %v1537
        %v1636 = vpack.c.bf16 %v1570, %v1569
        %v1637 = vpack.c.bf16 %v1574, %v1573
        %v1638 = vpack.c.bf16 %v1158, %v1156
        %v1639 = vpack.c.bf16 %v1540, %v1539
        %v1640 = vpack.c.bf16 %v1572, %v1571
        %v1641 = vpack.c.bf16 %v1576, %v1575
        %v1642 = vpack.c.bf16 %v1171, %v1169
        %v1644 = vlaneseq
        %v1645 = vshrl.u32 %v1644, 7
        %v1646 = vsub.s32 0, %v1645
        %v1647 = vrot.slane %v872, %v1646
        %v1721 = vunpack.c.l.b16 %v800
        %v1722 = vunpack.c.l.b16 %v801
        %v1723 = vunpack.c.l.b16 %v802
        %v1724 = vunpack.c.l.b16 %v803
        %v1725 = vunpack.c.l.b16 %v804
        %v1726 = vunpack.c.l.b16 %v805
        %v1727 = vunpack.c.l.b16 %v806
        %v1728 = vunpack.c.l.b16 %v807
        %v1729 = vunpack.c.l.b16 %v808
        %v1730 = vunpack.c.l.b16 %v809
        %v1731 = vunpack.c.l.b16 %v810
        %v1732 = vunpack.c.l.b16 %v811
        %v1733 = vunpack.c.l.b16 %v812
        %v1734 = vunpack.c.l.b16 %v813
        %v1735 = vunpack.c.l.b16 %v814
        %v1736 = vunpack.c.l.b16 %v815
        %v1737 = vunpack.c.l.b16 %v816
        %v1738 = vunpack.c.l.b16 %v817
        %v1739 = vunpack.c.l.b16 %v818
        %v1740 = vunpack.c.l.b16 %v819
        %v1741 = vunpack.c.l.b16 %v820
        %v1742 = vunpack.c.l.b16 %v821
        %v1743 = vunpack.c.l.b16 %v822
        %v1744 = vunpack.c.l.b16 %v823
        %v1745 = vunpack.c.l.b16 %v824
        %v1746 = vunpack.c.l.b16 %v825
        %v1747 = vunpack.c.l.b16 %v826
        %v1748 = vunpack.c.l.b16 %v827
        %v1749 = vunpack.c.l.b16 %v828
        %v1750 = vunpack.c.l.b16 %v829
        %v1751 = vunpack.c.l.b16 %v830
        %v1752 = vunpack.c.l.b16 %v831
        %v1753 = vunpack.c.l.b16 %v832
        %v1754 = vunpack.c.l.b16 %v833
        %v1755 = vunpack.c.l.b16 %v834
        %v1756 = vunpack.c.l.b16 %v835
        %v1757 = vunpack.c.l.b16 %v836
        %v1758 = vunpack.c.l.b16 %v837
        %v1759 = vunpack.c.l.b16 %v838
        %v1760 = vunpack.c.l.b16 %v839
        %v1761 = vunpack.c.l.b16 %v840
        %v1762 = vunpack.c.l.b16 %v841
        %v1763 = vunpack.c.l.b16 %v842
        %v1764 = vunpack.c.l.b16 %v843
        %v1765 = vunpack.c.l.b16 %v844
        %v1766 = vunpack.c.l.b16 %v845
        %v1767 = vunpack.c.l.b16 %v846
        %v1768 = vunpack.c.l.b16 %v847
        %v1769 = vunpack.c.l.b16 %v848
        %v1770 = vunpack.c.l.b16 %v849
        %v1771 = vunpack.c.l.b16 %v850
        %v1772 = vunpack.c.l.b16 %v851
        %v1773 = vunpack.c.l.b16 %v852
        %v1774 = vunpack.c.l.b16 %v853
        %v1775 = vunpack.c.l.b16 %v854
        %v1776 = vunpack.c.l.b16 %v855
        %v1777 = vunpack.c.l.b16 %v856
        %v1778 = vunpack.c.l.b16 %v857
        %v1779 = vunpack.c.l.b16 %v858
        %v1780 = vunpack.c.l.b16 %v859
        %v1781 = vunpack.c.l.b16 %v860
        %v1782 = vunpack.c.l.b16 %v861
        %v1783 = vunpack.c.l.b16 %v862
        %v1784 = vunpack.c.l.b16 %v863
        %v1785 = vunpack.c.l.b16 %v864
        %v1786 = vunpack.c.l.b16 %v865
        %v1787 = vunpack.c.l.b16 %v866
        %v1788 = vunpack.c.l.b16 %v867
        %v1789 = vunpack.c.l.b16 %v868
        %v1790 = vunpack.c.l.b16 %v869
        %v1791 = vunpack.c.l.b16 %v870
        %v1792 = vunpack.c.l.b16 %v871
        %v1793 = vpack.c.b16 %v1722, %v1721
        %v1794 = vpack.c.b16 %v1724, %v1723
        %v1795 = vpack.c.b16 %v1726, %v1725
        %v1796 = vpack.c.b16 %v1728, %v1727
        %v1797 = vpack.c.b16 %v1730, %v1729
        %v1798 = vpack.c.b16 %v1732, %v1731
        %v1799 = vpack.c.b16 %v1734, %v1733
        %v1800 = vpack.c.b16 %v1736, %v1735
        %v1801 = vpack.c.b16 %v1738, %v1737
        %v1802 = vpack.c.b16 %v1740, %v1739
        %v1803 = vpack.c.b16 %v1742, %v1741
        %v1804 = vpack.c.b16 %v1744, %v1743
        %v1805 = vpack.c.b16 %v1746, %v1745
        %v1806 = vpack.c.b16 %v1748, %v1747
        %v1807 = vpack.c.b16 %v1750, %v1749
        %v1808 = vpack.c.b16 %v1752, %v1751
        %v1809 = vpack.c.b16 %v1754, %v1753
        %v1810 = vpack.c.b16 %v1756, %v1755
        %v1811 = vpack.c.b16 %v1758, %v1757
        %v1812 = vpack.c.b16 %v1760, %v1759
        %v1813 = vpack.c.b16 %v1762, %v1761
        %v1814 = vpack.c.b16 %v1764, %v1763
        %v1815 = vpack.c.b16 %v1766, %v1765
        %v1816 = vpack.c.b16 %v1768, %v1767
        %v1817 = vpack.c.b16 %v1770, %v1769
        %v1818 = vpack.c.b16 %v1772, %v1771
        %v1819 = vpack.c.b16 %v1774, %v1773
        %v1820 = vpack.c.b16 %v1776, %v1775
        %v1821 = vpack.c.b16 %v1778, %v1777
        %v1822 = vpack.c.b16 %v1780, %v1779
        %v1823 = vpack.c.b16 %v1782, %v1781
        %v1824 = vpack.c.b16 %v1784, %v1783
        %v1825 = vpack.c.b16 %v1786, %v1785
        %v1826 = vpack.c.b16 %v1788, %v1787
        %v1827 = vpack.c.b16 %v1790, %v1789
        %v1828 = vpack.c.b16 %v1792, %v1791
        %v1866 = vsel %vm1476, %v1581, 0
        %v1869 = vsel %vm1476, %v1586, 0
        %v1872 = vsel %vm1476, %v1590, 0
        %v1875 = vsel %vm1476, %v1594, 0
        %v1878 = vsel %vm1476, %v1598, 0
        %v1881 = vsel %vm1476, %v1602, 0
        %v1884 = vsel %vm1476, %v1606, 0
        %v1887 = vsel %vm1476, %v1610, 0
        %v1890 = vsel %vm1476, %v1614, 0
        %v1893 = vsel %vm1476, %v1618, 0
        %v1896 = vsel %vm1476, %v1622, 0
        %v1899 = vsel %vm1476, %v1626, 0
        %v1902 = vsel %vm1476, %v1630, 0
        %v1905 = vsel %vm1476, %v1634, 0
        %v1908 = vsel %vm1476, %v1638, 0
        %v1911 = vsel %vm1476, %v1642, 0
        %1913 = vmatprep.subr.bf16.mxu0 0
        %1914 = vmatpush1.bf16.msra.mxu0 %v1800
        %1915 = vmatprep.subr.bf16.mxu0 0
        %1916 = vmatpush1.bf16.msra.mxu0 %v1799
        %1917 = vmatprep.subr.bf16.mxu0 0
        %1918 = vmatpush1.bf16.msra.mxu0 %v1798
        %1919 = vmatprep.subr.bf16.mxu0 0
        %1920 = vmatpush1.bf16.msra.mxu0 %v1797
        %1921 = vmatprep.subr.bf16.mxu0 0
        %1922 = vmatpush1.bf16.msra.mxu0 %v1796
        %1923 = vmatprep.subr.bf16.mxu0 0
        %1924 = vmatpush1.bf16.msra.mxu0 %v1795
        %1925 = vmatprep.subr.bf16.mxu0 0
        %1926 = vmatpush1.bf16.msra.mxu0 %v1794
        %1927 = vmatprep.subr.bf16.mxu0 0
        %1928 = vmatpush1.bf16.msra.mxu0 %v1793
        %1929 = vmatprep.subr.bf16.mxu0 0
        %1930 = vmatpush2.bf16.msra.mxu0 %v1808
        %1931 = vmatprep.subr.bf16.mxu0 0
        %1932 = vmatpush2.bf16.msra.mxu0 %v1807
        %1933 = vmatprep.subr.bf16.mxu0 0
        %1934 = vmatpush2.bf16.msra.mxu0 %v1806
        %1935 = vmatprep.subr.bf16.mxu0 0
        %1936 = vmatpush2.bf16.msra.mxu0 %v1805
        %1937 = vmatprep.subr.bf16.mxu0 0
        %1938 = vmatpush2.bf16.msra.mxu0 %v1804
        %1939 = vmatprep.subr.bf16.mxu0 0
        %1940 = vmatpush2.bf16.msra.mxu0 %v1803
        %1941 = vmatprep.subr.bf16.mxu0 0
        %1942 = vmatpush2.bf16.msra.mxu0 %v1802
        %1943 = vmatprep.subr.bf16.mxu0 0
        %1944 = vmatpush2.bf16.msra.mxu0 %v1801
        %1945 = vmatprep.mubr.bf16.mxu0 %v1578
        %1946 = vmatmul.mubr.bf16.gmra.mxu0 %v1577
        %v1947 = vpop.f32.mrf.mxu0
        %v1948 = vadd.f32 %v1647, %v1947
        %v1949 = vpop.f32.mrf.mxu0
        %v1950 = vpop.f32.mrf.mxu0
        %v1951 = vadd.f32 %v1647, %v1950
        %v1952 = vpop.f32.mrf.mxu0
        %1953 = vmatprep.mubr.bf16.mxu0 %v1583
        %1954 = vmatmul.mubr.bf16.gmra.mxu0 %v1582
        %v1955 = vpop.f32.mrf.mxu0
        %v1956 = vadd.f32 %v1647, %v1955
        %v1957 = vpop.f32.mrf.mxu0
        %v1958 = vpop.f32.mrf.mxu0
        %v1959 = vadd.f32 %v1647, %v1958
        %v1960 = vpop.f32.mrf.mxu0
        %1961 = vmatprep.mubr.bf16.mxu0 %v1587
        %1962 = vmatmul.mubr.bf16.gmra.mxu0 %v1580
        %v1963 = vpop.f32.mrf.mxu0
        %v1964 = vadd.f32 %v1647, %v1963
        %v1965 = vpop.f32.mrf.mxu0
        %v1966 = vpop.f32.mrf.mxu0
        %v1967 = vadd.f32 %v1647, %v1966
        %v1968 = vpop.f32.mrf.mxu0
        %1969 = vmatprep.mubr.bf16.mxu0 %v1591
        %1970 = vmatmul.mubr.bf16.gmra.mxu0 %v1585
        %v1971 = vpop.f32.mrf.mxu0
        %v1972 = vadd.f32 %v1647, %v1971
        %v1973 = vpop.f32.mrf.mxu0
        %v1974 = vpop.f32.mrf.mxu0
        %v1975 = vadd.f32 %v1647, %v1974
        %v1976 = vpop.f32.mrf.mxu0
        %1977 = vmatprep.mubr.bf16.mxu0 %v1595
        %1978 = vmatmul.mubr.bf16.gmra.mxu0 %v1589
        %v1979 = vpop.f32.mrf.mxu0
        %v1980 = vadd.f32 %v1647, %v1979
        %v1981 = vpop.f32.mrf.mxu0
        %v1982 = vpop.f32.mrf.mxu0
        %v1983 = vadd.f32 %v1647, %v1982
        %v1984 = vpop.f32.mrf.mxu0
        %1985 = vmatprep.mubr.bf16.mxu0 %v1599
        %1986 = vmatmul.mubr.bf16.gmra.mxu0 %v1593
        %v1987 = vpop.f32.mrf.mxu0
        %v1988 = vadd.f32 %v1647, %v1987
        %v1989 = vpop.f32.mrf.mxu0
        %v1990 = vpop.f32.mrf.mxu0
        %v1991 = vadd.f32 %v1647, %v1990
        %v1992 = vpop.f32.mrf.mxu0
        %1993 = vmatprep.mubr.bf16.mxu0 %v1603
        %1994 = vmatmul.mubr.bf16.gmra.mxu0 %v1597
        %v1995 = vpop.f32.mrf.mxu0
        %v1996 = vadd.f32 %v1647, %v1995
        %v1997 = vpop.f32.mrf.mxu0
        %v1998 = vpop.f32.mrf.mxu0
        %v1999 = vadd.f32 %v1647, %v1998
        %v2000 = vpop.f32.mrf.mxu0
        %2001 = vmatprep.mubr.bf16.mxu0 %v1607
        %2002 = vmatmul.mubr.bf16.gmra.mxu0 %v1601
        %v2003 = vpop.f32.mrf.mxu0
        %v2004 = vadd.f32 %v1647, %v2003
        %v2005 = vpop.f32.mrf.mxu0
        %v2006 = vpop.f32.mrf.mxu0
        %v2007 = vadd.f32 %v1647, %v2006
        %v2008 = vpop.f32.mrf.mxu0
        %2009 = vmatprep.mubr.bf16.mxu0 %v1611
        %2010 = vmatmul.mubr.bf16.gmra.mxu0 %v1605
        %v2011 = vpop.f32.mrf.mxu0
        %v2012 = vadd.f32 %v1647, %v2011
        %v2013 = vpop.f32.mrf.mxu0
        %v2014 = vpop.f32.mrf.mxu0
        %v2015 = vadd.f32 %v1647, %v2014
        %v2016 = vpop.f32.mrf.mxu0
        %2017 = vmatprep.mubr.bf16.mxu0 %v1615
        %2018 = vmatmul.mubr.bf16.gmra.mxu0 %v1609
        %v2019 = vpop.f32.mrf.mxu0
        %v2020 = vadd.f32 %v1647, %v2019
        %v2021 = vpop.f32.mrf.mxu0
        %v2022 = vpop.f32.mrf.mxu0
        %v2023 = vadd.f32 %v1647, %v2022
        %v2024 = vpop.f32.mrf.mxu0
        %2025 = vmatprep.mubr.bf16.mxu0 %v1619
        %2026 = vmatmul.mubr.bf16.gmra.mxu0 %v1613
        %v2027 = vpop.f32.mrf.mxu0
        %v2028 = vadd.f32 %v1647, %v2027
        %v2029 = vpop.f32.mrf.mxu0
        %v2030 = vpop.f32.mrf.mxu0
        %v2031 = vadd.f32 %v1647, %v2030
        %v2032 = vpop.f32.mrf.mxu0
        %2033 = vmatprep.mubr.bf16.mxu0 %v1623
        %2034 = vmatmul.mubr.bf16.gmra.mxu0 %v1617
        %v2035 = vpop.f32.mrf.mxu0
        %v2036 = vadd.f32 %v1647, %v2035
        %v2037 = vpop.f32.mrf.mxu0
        %v2038 = vpop.f32.mrf.mxu0
        %v2039 = vadd.f32 %v1647, %v2038
        %v2040 = vpop.f32.mrf.mxu0
        %2041 = vmatprep.mubr.bf16.mxu0 %v1627
        %2042 = vmatmul.mubr.bf16.gmra.mxu0 %v1621
        %v2043 = vpop.f32.mrf.mxu0
        %v2044 = vadd.f32 %v1647, %v2043
        %v2045 = vpop.f32.mrf.mxu0
        %v2046 = vpop.f32.mrf.mxu0
        %v2047 = vadd.f32 %v1647, %v2046
        %v2048 = vpop.f32.mrf.mxu0
        %2049 = vmatprep.mubr.bf16.mxu0 %v1631
        %2050 = vmatmul.mubr.bf16.gmra.mxu0 %v1625
        %v2051 = vpop.f32.mrf.mxu0
        %v2052 = vadd.f32 %v1647, %v2051
        %v2053 = vpop.f32.mrf.mxu0
        %v2054 = vpop.f32.mrf.mxu0
        %v2055 = vadd.f32 %v1647, %v2054
        %v2056 = vpop.f32.mrf.mxu0
        %2057 = vmatprep.mubr.bf16.mxu0 %v1635
        %2058 = vmatmul.mubr.bf16.gmra.mxu0 %v1629
        %v2059 = vpop.f32.mrf.mxu0
        %v2060 = vadd.f32 %v1647, %v2059
        %v2061 = vpop.f32.mrf.mxu0
        %v2062 = vpop.f32.mrf.mxu0
        %v2063 = vadd.f32 %v1647, %v2062
        %v2064 = vpop.f32.mrf.mxu0
        %2065 = vmatprep.mubr.bf16.mxu0 %v1639
        %2066 = vmatmul.mubr.bf16.gmra.mxu0 %v1633
        %v2067 = vpop.f32.mrf.mxu0
        %v2068 = vadd.f32 %v1647, %v2067
        %v2069 = vpop.f32.mrf.mxu0
        %v2070 = vpop.f32.mrf.mxu0
        %v2071 = vadd.f32 %v1647, %v2070
        %v2072 = vpop.f32.mrf.mxu0
        %2073 = vdwg.mxu0
        %2074 = vmatprep.subr.bf16.mxu0 0
        %2075 = vmatpush1.bf16.msra.mxu0 %v1816
        %2076 = vmatprep.subr.bf16.mxu0 0
        %2077 = vmatpush1.bf16.msra.mxu0 %v1815
        %2078 = vmatprep.subr.bf16.mxu0 0
        %2079 = vmatpush1.bf16.msra.mxu0 %v1814
        %2080 = vmatprep.subr.bf16.mxu0 0
        %2081 = vmatpush1.bf16.msra.mxu0 %v1813
        %2082 = vmatprep.subr.bf16.mxu0 0
        %2083 = vmatpush1.bf16.msra.mxu0 %v1812
        %2084 = vmatprep.subr.bf16.mxu0 0
        %2085 = vmatpush1.bf16.msra.mxu0 %v1811
        %2086 = vmatprep.subr.bf16.mxu0 0
        %2087 = vmatpush1.bf16.msra.mxu0 %v1810
        %2088 = vmatprep.subr.bf16.mxu0 0
        %2089 = vmatpush1.bf16.msra.mxu0 %v1809
        %2090 = vmatprep.subr.bf16.mxu0 0
        %2091 = vmatpush2.bf16.msra.mxu0 %v1824
        %2092 = vmatprep.subr.bf16.mxu0 0
        %2093 = vmatpush2.bf16.msra.mxu0 %v1823
        %2094 = vmatprep.subr.bf16.mxu0 0
        %2095 = vmatpush2.bf16.msra.mxu0 %v1822
        %2096 = vmatprep.subr.bf16.mxu0 0
        %2097 = vmatpush2.bf16.msra.mxu0 %v1821
        %2098 = vmatprep.subr.bf16.mxu0 0
        %2099 = vmatpush2.bf16.msra.mxu0 %v1820
        %2100 = vmatprep.subr.bf16.mxu0 0
        %2101 = vmatpush2.bf16.msra.mxu0 %v1819
        %2102 = vmatprep.subr.bf16.mxu0 0
        %2103 = vmatpush2.bf16.msra.mxu0 %v1818
        %2104 = vmatprep.subr.bf16.mxu0 0
        %2105 = vmatpush2.bf16.msra.mxu0 %v1817
        %2106 = vmatprep.mubr.bf16.mxu0 %v1580
        %2107 = vmatmul.mubr.bf16.gmra.mxu0 %v1579
        %v2108 = vpop.f32.mrf.mxu0
        %v2109 = vadd.f32 %v1948, %v2108
        %v2110 = vpop.f32.mrf.mxu0
        %v2111 = vpop.f32.mrf.mxu0
        %v2112 = vadd.f32 %v1951, %v2111
        %v2113 = vpop.f32.mrf.mxu0
        %2114 = vmatprep.mubr.bf16.mxu0 %v1585
        %2115 = vmatmul.mubr.bf16.gmra.mxu0 %v1584
        %v2116 = vpop.f32.mrf.mxu0
        %v2117 = vadd.f32 %v1956, %v2116
        %v2118 = vpop.f32.mrf.mxu0
        %v2119 = vpop.f32.mrf.mxu0
        %v2120 = vadd.f32 %v1959, %v2119
        %v2121 = vpop.f32.mrf.mxu0
        %2122 = vmatprep.mubr.bf16.mxu0 %v1589
        %2123 = vmatmul.mubr.bf16.gmra.mxu0 %v1588
        %v2124 = vpop.f32.mrf.mxu0
        %v2125 = vadd.f32 %v1964, %v2124
        %v2126 = vpop.f32.mrf.mxu0
        %v2127 = vpop.f32.mrf.mxu0
        %v2128 = vadd.f32 %v1967, %v2127
        %v2129 = vpop.f32.mrf.mxu0
        %2130 = vmatprep.mubr.bf16.mxu0 %v1593
        %2131 = vmatmul.mubr.bf16.gmra.mxu0 %v1592
        %v2132 = vpop.f32.mrf.mxu0
        %v2133 = vadd.f32 %v1972, %v2132
        %v2134 = vpop.f32.mrf.mxu0
        %v2135 = vpop.f32.mrf.mxu0
        %v2136 = vadd.f32 %v1975, %v2135
        %v2137 = vpop.f32.mrf.mxu0
        %2138 = vmatprep.mubr.bf16.mxu0 %v1597
        %2139 = vmatmul.mubr.bf16.gmra.mxu0 %v1596
        %v2140 = vpop.f32.mrf.mxu0
        %v2141 = vadd.f32 %v1980, %v2140
        %v2142 = vpop.f32.mrf.mxu0
        %v2143 = vpop.f32.mrf.mxu0
        %v2144 = vadd.f32 %v1983, %v2143
        %v2145 = vpop.f32.mrf.mxu0
        %2146 = vmatprep.mubr.bf16.mxu0 %v1601
        %2147 = vmatmul.mubr.bf16.gmra.mxu0 %v1600
        %v2148 = vpop.f32.mrf.mxu0
        %v2149 = vadd.f32 %v1988, %v2148
        %v2150 = vpop.f32.mrf.mxu0
        %v2151 = vpop.f32.mrf.mxu0
        %v2152 = vadd.f32 %v1991, %v2151
        %v2153 = vpop.f32.mrf.mxu0
        %2154 = vmatprep.mubr.bf16.mxu0 %v1605
        %2155 = vmatmul.mubr.bf16.gmra.mxu0 %v1604
        %v2156 = vpop.f32.mrf.mxu0
        %v2157 = vadd.f32 %v1996, %v2156
        %v2158 = vpop.f32.mrf.mxu0
        %v2159 = vpop.f32.mrf.mxu0
        %v2160 = vadd.f32 %v1999, %v2159
        %v2161 = vpop.f32.mrf.mxu0
        %2162 = vmatprep.mubr.bf16.mxu0 %v1609
        %2163 = vmatmul.mubr.bf16.gmra.mxu0 %v1608
        %v2164 = vpop.f32.mrf.mxu0
        %v2165 = vadd.f32 %v2004, %v2164
        %v2166 = vpop.f32.mrf.mxu0
        %v2167 = vpop.f32.mrf.mxu0
        %v2168 = vadd.f32 %v2007, %v2167
        %v2169 = vpop.f32.mrf.mxu0
        %2170 = vmatprep.mubr.bf16.mxu0 %v1613
        %2171 = vmatmul.mubr.bf16.gmra.mxu0 %v1612
        %v2172 = vpop.f32.mrf.mxu0
        %v2173 = vadd.f32 %v2012, %v2172
        %v2174 = vpop.f32.mrf.mxu0
        %v2175 = vpop.f32.mrf.mxu0
        %v2176 = vadd.f32 %v2015, %v2175
        %v2177 = vpop.f32.mrf.mxu0
        %2178 = vmatprep.mubr.bf16.mxu0 %v1617
        %2179 = vmatmul.mubr.bf16.gmra.mxu0 %v1616
        %v2180 = vpop.f32.mrf.mxu0
        %v2181 = vadd.f32 %v2020, %v2180
        %v2182 = vpop.f32.mrf.mxu0
        %v2183 = vpop.f32.mrf.mxu0
        %v2184 = vadd.f32 %v2023, %v2183
        %v2185 = vpop.f32.mrf.mxu0
        %2186 = vmatprep.mubr.bf16.mxu0 %v1621
        %2187 = vmatmul.mubr.bf16.gmra.mxu0 %v1620
        %v2188 = vpop.f32.mrf.mxu0
        %v2189 = vadd.f32 %v2028, %v2188
        %v2190 = vpop.f32.mrf.mxu0
        %v2191 = vpop.f32.mrf.mxu0
        %v2192 = vadd.f32 %v2031, %v2191
        %v2193 = vpop.f32.mrf.mxu0
        %2194 = vmatprep.mubr.bf16.mxu0 %v1625
        %2195 = vmatmul.mubr.bf16.gmra.mxu0 %v1624
        %v2196 = vpop.f32.mrf.mxu0
        %v2197 = vadd.f32 %v2036, %v2196
        %v2198 = vpop.f32.mrf.mxu0
        %v2199 = vpop.f32.mrf.mxu0
        %v2200 = vadd.f32 %v2039, %v2199
        %v2201 = vpop.f32.mrf.mxu0
        %2202 = vmatprep.mubr.bf16.mxu0 %v1629
        %2203 = vmatmul.mubr.bf16.gmra.mxu0 %v1628
        %v2204 = vpop.f32.mrf.mxu0
        %v2205 = vadd.f32 %v2044, %v2204
        %v2206 = vpop.f32.mrf.mxu0
        %v2207 = vpop.f32.mrf.mxu0
        %v2208 = vadd.f32 %v2047, %v2207
        %v2209 = vpop.f32.mrf.mxu0
        %2210 = vmatprep.mubr.bf16.mxu0 %v1633
        %2211 = vmatmul.mubr.bf16.gmra.mxu0 %v1632
        %v2212 = vpop.f32.mrf.mxu0
        %v2213 = vadd.f32 %v2052, %v2212
        %v2214 = vpop.f32.mrf.mxu0
        %v2215 = vpop.f32.mrf.mxu0
        %v2216 = vadd.f32 %v2055, %v2215
        %v2217 = vpop.f32.mrf.mxu0
        %2218 = vmatprep.mubr.bf16.mxu0 %v1637
        %2219 = vmatmul.mubr.bf16.gmra.mxu0 %v1636
        %v2220 = vpop.f32.mrf.mxu0
        %v2221 = vadd.f32 %v2060, %v2220
        %v2222 = vpop.f32.mrf.mxu0
        %v2223 = vpop.f32.mrf.mxu0
        %v2224 = vadd.f32 %v2063, %v2223
        %v2225 = vpop.f32.mrf.mxu0
        %2226 = vmatprep.mubr.bf16.mxu0 %v1641
        %2227 = vmatmul.mubr.bf16.gmra.mxu0 %v1640
        %v2228 = vpop.f32.mrf.mxu0
        %v2229 = vadd.f32 %v2068, %v2228
        %v2230 = vpop.f32.mrf.mxu0
        %v2231 = vpop.f32.mrf.mxu0
        %v2232 = vadd.f32 %v2071, %v2231
        %v2233 = vpop.f32.mrf.mxu0
        %2234 = vdwg.mxu0
        %2235 = vmatprep.subr.bf16.mxu0 0
        %2236 = vmatpush1.bf16.msra.mxu0 0
        %2237 = vmatprep.subr.bf16.mxu0 0
        %2238 = vmatpush1.bf16.msra.mxu0 0
        %2239 = vmatprep.subr.bf16.mxu0 0
        %2240 = vmatpush1.bf16.msra.mxu0 0
        %2241 = vmatprep.subr.bf16.mxu0 0
        %2242 = vmatpush1.bf16.msra.mxu0 0
        %2243 = vmatprep.subr.bf16.mxu0 0
        %2244 = vmatpush1.bf16.msra.mxu0 %v1828
        %2245 = vmatprep.subr.bf16.mxu0 0
        %2246 = vmatpush1.bf16.msra.mxu0 %v1827
        %2247 = vmatprep.subr.bf16.mxu0 0
        %2248 = vmatpush1.bf16.msra.mxu0 %v1826
        %2249 = vmatprep.subr.bf16.mxu0 0
        %2250 = vmatpush1.bf16.msra.mxu0 %v1825
        %2251 = vmatprep.subr.bf16.mxu0 0
        %2252 = vmatpush2.bf16.msra.mxu0 0
        %2253 = vmatprep.subr.bf16.mxu0 0
        %2254 = vmatpush2.bf16.msra.mxu0 0
        %2255 = vmatprep.subr.bf16.mxu0 0
        %2256 = vmatpush2.bf16.msra.mxu0 0
        %2257 = vmatprep.subr.bf16.mxu0 0
        %2258 = vmatpush2.bf16.msra.mxu0 0
        %2259 = vmatprep.subr.bf16.mxu0 0
        %2260 = vmatpush2.bf16.msra.mxu0 0
        %2261 = vmatprep.subr.bf16.mxu0 0
        %2262 = vmatpush2.bf16.msra.mxu0 0
        %2263 = vmatprep.subr.bf16.mxu0 0
        %2264 = vmatpush2.bf16.msra.mxu0 0
        %2265 = vmatprep.subr.bf16.mxu0 0
        %2266 = vmatpush2.bf16.msra.mxu0 0
        %2267 = vmatprep.mubr.bf16.mxu0 0
        %2268 = vmatmul.mubr.bf16.gmra.mxu0 %v1866
        %v2269 = vpop.f32.mrf.mxu0
        %v2270 = vadd.f32 %v2109, %v2269
        %v2271 = vpop.f32.mrf.mxu0
        %v2272 = vpop.f32.mrf.mxu0
        %v2273 = vadd.f32 %v2112, %v2272
        %v2274 = vpop.f32.mrf.mxu0
        %2275 = vmatprep.mubr.bf16.mxu0 0
        %2276 = vmatmul.mubr.bf16.gmra.mxu0 %v1869
        %v2277 = vpop.f32.mrf.mxu0
        %v2278 = vadd.f32 %v2117, %v2277
        %v2279 = vpop.f32.mrf.mxu0
        %v2280 = vpop.f32.mrf.mxu0
        %v2281 = vadd.f32 %v2120, %v2280
        %v2282 = vpop.f32.mrf.mxu0
        %2283 = vmatprep.mubr.bf16.mxu0 0
        %2284 = vmatmul.mubr.bf16.gmra.mxu0 %v1872
        %v2285 = vpop.f32.mrf.mxu0
        %v2286 = vadd.f32 %v2125, %v2285
        %v2287 = vpop.f32.mrf.mxu0
        %v2288 = vpop.f32.mrf.mxu0
        %v2289 = vadd.f32 %v2128, %v2288
        %v2290 = vpop.f32.mrf.mxu0
        %2291 = vmatprep.mubr.bf16.mxu0 0
        %2292 = vmatmul.mubr.bf16.gmra.mxu0 %v1875
        %v2293 = vpop.f32.mrf.mxu0
        %v2294 = vadd.f32 %v2133, %v2293
        %v2295 = vpop.f32.mrf.mxu0
        %v2296 = vpop.f32.mrf.mxu0
        %v2297 = vadd.f32 %v2136, %v2296
        %v2298 = vpop.f32.mrf.mxu0
        %2299 = vmatprep.mubr.bf16.mxu0 0
        %2300 = vmatmul.mubr.bf16.gmra.mxu0 %v1878
        %v2301 = vpop.f32.mrf.mxu0
        %v2302 = vadd.f32 %v2141, %v2301
        %v2303 = vpop.f32.mrf.mxu0
        %v2304 = vpop.f32.mrf.mxu0
        %v2305 = vadd.f32 %v2144, %v2304
        %v2306 = vpop.f32.mrf.mxu0
        %2307 = vmatprep.mubr.bf16.mxu0 0
        %2308 = vmatmul.mubr.bf16.gmra.mxu0 %v1881
        %v2309 = vpop.f32.mrf.mxu0
        %v2310 = vadd.f32 %v2149, %v2309
        %v2311 = vpop.f32.mrf.mxu0
        %v2312 = vpop.f32.mrf.mxu0
        %v2313 = vadd.f32 %v2152, %v2312
        %v2314 = vpop.f32.mrf.mxu0
        %2315 = vmatprep.mubr.bf16.mxu0 0
        %2316 = vmatmul.mubr.bf16.gmra.mxu0 %v1884
        %v2317 = vpop.f32.mrf.mxu0
        %v2318 = vadd.f32 %v2157, %v2317
        %v2319 = vpop.f32.mrf.mxu0
        %v2320 = vpop.f32.mrf.mxu0
        %v2321 = vadd.f32 %v2160, %v2320
        %v2322 = vpop.f32.mrf.mxu0
        %2323 = vmatprep.mubr.bf16.mxu0 0
        %2324 = vmatmul.mubr.bf16.gmra.mxu0 %v1887
        %v2325 = vpop.f32.mrf.mxu0
        %v2326 = vadd.f32 %v2165, %v2325
        %v2327 = vpop.f32.mrf.mxu0
        %v2328 = vpop.f32.mrf.mxu0
        %v2329 = vadd.f32 %v2168, %v2328
        %v2330 = vpop.f32.mrf.mxu0
        %2331 = vmatprep.mubr.bf16.mxu0 0
        %2332 = vmatmul.mubr.bf16.gmra.mxu0 %v1890
        %v2333 = vpop.f32.mrf.mxu0
        %v2334 = vadd.f32 %v2173, %v2333
        %v2335 = vpop.f32.mrf.mxu0
        %v2336 = vpop.f32.mrf.mxu0
        %v2337 = vadd.f32 %v2176, %v2336
        %v2338 = vpop.f32.mrf.mxu0
        %2339 = vmatprep.mubr.bf16.mxu0 0
        %2340 = vmatmul.mubr.bf16.gmra.mxu0 %v1893
        %v2341 = vpop.f32.mrf.mxu0
        %v2342 = vadd.f32 %v2181, %v2341
        %v2343 = vpop.f32.mrf.mxu0
        %v2344 = vpop.f32.mrf.mxu0
        %v2345 = vadd.f32 %v2184, %v2344
        %v2346 = vpop.f32.mrf.mxu0
        %2347 = vmatprep.mubr.bf16.mxu0 0
        %2348 = vmatmul.mubr.bf16.gmra.mxu0 %v1896
        %v2349 = vpop.f32.mrf.mxu0
        %v2350 = vadd.f32 %v2189, %v2349
        %v2351 = vpop.f32.mrf.mxu0
        %v2352 = vpop.f32.mrf.mxu0
        %v2353 = vadd.f32 %v2192, %v2352
        %v2354 = vpop.f32.mrf.mxu0
        %2355 = vmatprep.mubr.bf16.mxu0 0
        %2356 = vmatmul.mubr.bf16.gmra.mxu0 %v1899
        %v2357 = vpop.f32.mrf.mxu0
        %v2358 = vadd.f32 %v2197, %v2357
        %v2359 = vpop.f32.mrf.mxu0
        %v2360 = vpop.f32.mrf.mxu0
        %v2361 = vadd.f32 %v2200, %v2360
        %v2362 = vpop.f32.mrf.mxu0
        %2363 = vmatprep.mubr.bf16.mxu0 0
        %2364 = vmatmul.mubr.bf16.gmra.mxu0 %v1902
        %v2365 = vpop.f32.mrf.mxu0
        %v2366 = vadd.f32 %v2205, %v2365
        %v2367 = vpop.f32.mrf.mxu0
        %v2368 = vpop.f32.mrf.mxu0
        %v2369 = vadd.f32 %v2208, %v2368
        %v2370 = vpop.f32.mrf.mxu0
        %2371 = vmatprep.mubr.bf16.mxu0 0
        %2372 = vmatmul.mubr.bf16.gmra.mxu0 %v1905
        %v2373 = vpop.f32.mrf.mxu0
        %v2374 = vadd.f32 %v2213, %v2373
        %v2375 = vpop.f32.mrf.mxu0
        %v2376 = vpop.f32.mrf.mxu0
        %v2377 = vadd.f32 %v2216, %v2376
        %v2378 = vpop.f32.mrf.mxu0
        %2379 = vmatprep.mubr.bf16.mxu0 0
        %2380 = vmatmul.mubr.bf16.gmra.mxu0 %v1908
        %v2381 = vpop.f32.mrf.mxu0
        %v2382 = vadd.f32 %v2221, %v2381
        %v2383 = vpop.f32.mrf.mxu0
        %v2384 = vpop.f32.mrf.mxu0
        %v2385 = vadd.f32 %v2224, %v2384
        %v2386 = vpop.f32.mrf.mxu0
        %2387 = vmatprep.mubr.bf16.mxu0 0
        %2388 = vmatmul.mubr.bf16.gmra.mxu0 %v1911
        %v2389 = vpop.f32.mrf.mxu0
        %v2390 = vadd.f32 %v2229, %v2389
        %v2391 = vpop.f32.mrf.mxu0
        %v2392 = vpop.f32.mrf.mxu0
        %v2393 = vadd.f32 %v2232, %v2392
        %v2394 = vpop.f32.mrf.mxu0
        %2395 = vdwg.mxu0
        %v2396 = vmax.f32 %v2270, 0.0
        %v2397 = vmax.f32 %v2273, 0.0
        %v2398 = vmax.f32 %v2278, 0.0
        %v2399 = vmax.f32 %v2281, 0.0
        %v2400 = vmax.f32 %v2286, 0.0
        %v2401 = vmax.f32 %v2289, 0.0
        %v2402 = vmax.f32 %v2294, 0.0
        %v2403 = vmax.f32 %v2297, 0.0
        %v2404 = vmax.f32 %v2302, 0.0
        %v2405 = vmax.f32 %v2305, 0.0
        %v2406 = vmax.f32 %v2310, 0.0
        %v2407 = vmax.f32 %v2313, 0.0
        %v2408 = vmax.f32 %v2318, 0.0
        %v2409 = vmax.f32 %v2321, 0.0
        %v2410 = vmax.f32 %v2326, 0.0
        %v2411 = vmax.f32 %v2329, 0.0
        %v2412 = vmax.f32 %v2334, 0.0
        %v2413 = vmax.f32 %v2337, 0.0
        %v2414 = vmax.f32 %v2342, 0.0
        %v2415 = vmax.f32 %v2345, 0.0
        %v2416 = vmax.f32 %v2350, 0.0
        %v2417 = vmax.f32 %v2353, 0.0
        %v2418 = vmax.f32 %v2358, 0.0
        %v2419 = vmax.f32 %v2361, 0.0
        %v2420 = vmax.f32 %v2366, 0.0
        %v2421 = vmax.f32 %v2369, 0.0
        %v2422 = vmax.f32 %v2374, 0.0
        %v2423 = vmax.f32 %v2377, 0.0
        %v2424 = vmax.f32 %v2382, 0.0
        %v2425 = vmax.f32 %v2385, 0.0
        %v2426 = vmax.f32 %v2390, 0.0
        %v2427 = vmax.f32 %v2393, 0.0
        %s2428 = scalar_lea.vmem [#allocation3], 24
        %2429 = vst.msk [vmem:[%s2428 + $0x1] sm:$0xff] %vm1476, %v2396
        %2430 = vst.msk [vmem:[%s2428 + $0x9] sm:$0xff] %vm1476, %v2397
        %2431 = vst.msk [vmem:[%s2428 + $0x19] sm:$0xff] %vm1476, %v2398
        %2432 = vst.msk [vmem:[%s2428 + $0x21] sm:$0xff] %vm1476, %v2399
        %2433 = vst.msk [vmem:[%s2428 + $0x31] sm:$0xff] %vm1476, %v2400
        %2434 = vst.msk [vmem:[%s2428 + $0x39] sm:$0xff] %vm1476, %v2401
        %2435 = vst.msk [vmem:[%s2428 + $0x49] sm:$0xff] %vm1476, %v2402
        %2436 = vst.msk [vmem:[%s2428 + $0x51] sm:$0xff] %vm1476, %v2403
        %2437 = vst.msk [vmem:[%s2428 + $0x61] sm:$0xff] %vm1476, %v2404
        %2438 = vst.msk [vmem:[%s2428 + $0x69] sm:$0xff] %vm1476, %v2405
        %2439 = vst.msk [vmem:[%s2428 + $0x79] sm:$0xff] %vm1476, %v2406
        %2440 = vst.msk [vmem:[%s2428 + $0x81] sm:$0xff] %vm1476, %v2407
        %2441 = vst.msk [vmem:[%s2428 + $0x91] sm:$0xff] %vm1476, %v2408
        %2442 = vst.msk [vmem:[%s2428 + $0x99] sm:$0xff] %vm1476, %v2409
        %2443 = vst.msk [vmem:[%s2428 + $0xa9] sm:$0xff] %vm1476, %v2410
        %2444 = vst.msk [vmem:[%s2428 + $0xb1] sm:$0xff] %vm1476, %v2411
        %2445 = vst.msk [vmem:[%s2428 + $0xc1] sm:$0xff] %vm1476, %v2412
        %2446 = vst.msk [vmem:[%s2428 + $0xc9] sm:$0xff] %vm1476, %v2413
        %2447 = vst.msk [vmem:[%s2428 + $0xd9] sm:$0xff] %vm1476, %v2414
        %2448 = vst.msk [vmem:[%s2428 + $0xe1] sm:$0xff] %vm1476, %v2415
        %2449 = vst.msk [vmem:[%s2428 + $0xf1] sm:$0xff] %vm1476, %v2416
        %2450 = vst.msk [vmem:[%s2428 + $0xf9] sm:$0xff] %vm1476, %v2417
        %2451 = vst.msk [vmem:[%s2428 + $0x109] sm:$0xff] %vm1476, %v2418
        %2452 = vst.msk [vmem:[%s2428 + $0x111] sm:$0xff] %vm1476, %v2419
        %2453 = vst.msk [vmem:[%s2428 + $0x121] sm:$0xff] %vm1476, %v2420
        %2454 = vst.msk [vmem:[%s2428 + $0x129] sm:$0xff] %vm1476, %v2421
        %2455 = vst.msk [vmem:[%s2428 + $0x139] sm:$0xff] %vm1476, %v2422
        %2456 = vst.msk [vmem:[%s2428 + $0x141] sm:$0xff] %vm1476, %v2423
        %2457 = vst.msk [vmem:[%s2428 + $0x151] sm:$0xff] %vm1476, %v2424
        %2458 = vst.msk [vmem:[%s2428 + $0x159] sm:$0xff] %vm1476, %v2425
        %2459 = vst.msk [vmem:[%s2428 + $0x169] sm:$0xff] %vm1476, %v2426
        %2460 = vst.msk [vmem:[%s2428 + $0x171] sm:$0xff] %vm1476, %v2427
        %v2461 = vld [vmem:[#allocation3] sm:$0xff]
        %v2462 = vld [vmem:[#allocation3 + $0x8] sm:$0xff]
        %v2463 = vld [vmem:[#allocation3 + $0x10] sm:$0x3]
        %v2464 = vld [vmem:[#allocation3 + $0x18] sm:$0xff]
        %v2465 = vld [vmem:[#allocation3 + $0x20] sm:$0xff]
        %v2466 = vld [vmem:[#allocation3 + $0x28] sm:$0x3]
        %v2467 = vld [vmem:[#allocation3 + $0x30] sm:$0xff]
        %v2468 = vld [vmem:[#allocation3 + $0x38] sm:$0xff]
        %v2469 = vld [vmem:[#allocation3 + $0x40] sm:$0x3]
        %v2470 = vld [vmem:[#allocation3 + $0x48] sm:$0xff]
        %v2471 = vld [vmem:[#allocation3 + $0x50] sm:$0xff]
        %v2472 = vld [vmem:[#allocation3 + $0x58] sm:$0x3]
        %v2473 = vld [vmem:[#allocation3 + $0x60] sm:$0xff]
        %v2474 = vld [vmem:[#allocation3 + $0x68] sm:$0xff]
        %v2475 = vld [vmem:[#allocation3 + $0x70] sm:$0x3]
        %v2476 = vld [vmem:[#allocation3 + $0x78] sm:$0xff]
        %v2477 = vld [vmem:[#allocation3 + $0x80] sm:$0xff]
        %v2478 = vld [vmem:[#allocation3 + $0x88] sm:$0x3]
        %v2479 = vld [vmem:[#allocation3 + $0x90] sm:$0xff]
        %v2480 = vld [vmem:[#allocation3 + $0x98] sm:$0xff]
        %v2481 = vld [vmem:[#allocation3 + $0xa0] sm:$0x3]
        %v2482 = vld [vmem:[#allocation3 + $0xa8] sm:$0xff]
        %v2483 = vld [vmem:[#allocation3 + $0xb0] sm:$0xff]
        %v2484 = vld [vmem:[#allocation3 + $0xb8] sm:$0x3]
        %v2485 = vld [vmem:[#allocation3 + $0xc0] sm:$0xff]
        %v2486 = vld [vmem:[#allocation3 + $0xc8] sm:$0xff]
        %v2487 = vld [vmem:[#allocation3 + $0xd0] sm:$0x3]
        %v2488 = vld [vmem:[#allocation3 + $0xd8] sm:$0xff]
        %v2489 = vld [vmem:[#allocation3 + $0xe0] sm:$0xff]
        %v2490 = vld [vmem:[#allocation3 + $0xe8] sm:$0x3]
        %v2491 = vld [vmem:[#allocation3 + $0xf0] sm:$0xff]
        %v2492 = vld [vmem:[#allocation3 + $0xf8] sm:$0xff]
        %v2493 = vld [vmem:[#allocation3 + $0x100] sm:$0x3]
        %v2494 = vld [vmem:[#allocation3 + $0x108] sm:$0xff]
        %v2495 = vld [vmem:[#allocation3 + $0x110] sm:$0xff]
        %v2496 = vld [vmem:[#allocation3 + $0x118] sm:$0x3]
        %v2497 = vld [vmem:[#allocation3 + $0x120] sm:$0xff]
        %v2498 = vld [vmem:[#allocation3 + $0x128] sm:$0xff]
        %v2499 = vld [vmem:[#allocation3 + $0x130] sm:$0x3]
        %v2500 = vld [vmem:[#allocation3 + $0x138] sm:$0xff]
        %v2501 = vld [vmem:[#allocation3 + $0x140] sm:$0xff]
        %v2502 = vld [vmem:[#allocation3 + $0x148] sm:$0x3]
        %v2503 = vld [vmem:[#allocation3 + $0x150] sm:$0xff]
        %v2504 = vld [vmem:[#allocation3 + $0x158] sm:$0xff]
        %v2505 = vld [vmem:[#allocation3 + $0x160] sm:$0x3]
        %v2506 = vld [vmem:[#allocation3 + $0x168] sm:$0xff]
        %v2507 = vld [vmem:[#allocation3 + $0x170] sm:$0xff]
        %v2508 = vld [vmem:[#allocation3 + $0x178] sm:$0x3]
        %v2509 = vld [vmem:[#allocation3 + $0x180] sm:$0xff]
        %v2510 = vld [vmem:[#allocation3 + $0x188] sm:$0xff]
        %v2511 = vld [vmem:[#allocation3 + $0x190] sm:$0x3]
        %v2512 = vld [vmem:[#allocation3 + $0x198] sm:$0xff]
        %v2513 = vld [vmem:[#allocation3 + $0x1a0] sm:$0xff]
        %v2514 = vld [vmem:[#allocation3 + $0x1a8] sm:$0x3]
        %v2515 = vld [vmem:[%s299] sm:$0xf]
        %v2516 = vld [vmem:[%s299 + $0x4] sm:$0xf]
        %v2517 = vld [vmem:[%s299 + $0x8] sm:$0xf]
        %v2518 = vld [vmem:[%s299 + $0xc] sm:$0xf]
        %v2519 = vld [vmem:[%s299 + $0x10] sm:$0xf]
        %v2520 = vld [vmem:[%s299 + $0x14] sm:$0xf]
        %v2521 = vld [vmem:[%s299 + $0x18] sm:$0xf]
        %v2522 = vld [vmem:[%s299 + $0x1c] sm:$0xf]
        %v2523 = vld [vmem:[%s299 + $0x20] sm:$0xf]
        %v2524 = vld [vmem:[%s299 + $0x24] sm:$0xf]
        %v2525 = vld [vmem:[%s299 + $0x28] sm:$0xf]
        %v2526 = vld [vmem:[%s299 + $0x2c] sm:$0xf]
        %v2527 = vld [vmem:[%s299 + $0x30] sm:$0xf]
        %v2528 = vld [vmem:[%s299 + $0x34] sm:$0xf]
        %v2529 = vld [vmem:[%s299 + $0x38] sm:$0xf]
        %v2530 = vld [vmem:[%s299 + $0x3c] sm:$0xf]
        %v2531 = vld [vmem:[%s299 + $0x40] sm:$0xf]
        %v2532 = vld [vmem:[%s299 + $0x44] sm:$0xf]
        %v2533 = vld [vmem:[%s299 + $0x48] sm:$0xf]
        %v2534 = vld [vmem:[%s299 + $0x4c] sm:$0xf]
        %v2535 = vld [vmem:[%s299 + $0x50] sm:$0xf]
        %v2536 = vld [vmem:[%s299 + $0x54] sm:$0xf]
        %v2537 = vld [vmem:[%s299 + $0x58] sm:$0xf]
        %v2538 = vld [vmem:[%s299 + $0x5c] sm:$0xf]
        %v2539 = vld [vmem:[%s299 + $0x60] sm:$0xf]
        %v2540 = vld [vmem:[%s299 + $0x64] sm:$0xf]
        %v2541 = vld [vmem:[%s299 + $0x68] sm:$0xf]
        %v2542 = vld [vmem:[%s299 + $0x6c] sm:$0xf]
        %v2543 = vld [vmem:[%s299 + $0x70] sm:$0xf]
        %v2544 = vld [vmem:[%s299 + $0x74] sm:$0xf]
        %v2545 = vld [vmem:[%s299 + $0x78] sm:$0xf]
        %v2546 = vld [vmem:[%s299 + $0x7c] sm:$0xf]
        %v2547 = vld [vmem:[%s299 + $0x80] sm:$0xf]
        %v2548 = vld [vmem:[%s299 + $0x84] sm:$0xf]
        %v2549 = vld [vmem:[%s299 + $0x88] sm:$0xf]
        %v2550 = vld [vmem:[%s299 + $0x8c] sm:$0xf]
        %v2551 = vld [vmem:[%s299 + $0x90] sm:$0xf]
        %v2552 = vld [vmem:[%s299 + $0x94] sm:$0xf]
        %v2553 = vld [vmem:[%s299 + $0x98] sm:$0xf]
        %v2554 = vld [vmem:[%s299 + $0x9c] sm:$0xf]
        %v2555 = vld [vmem:[%s299 + $0xa0] sm:$0xf]
        %v2556 = vld [vmem:[%s299 + $0xa4] sm:$0xf]
        %v2557 = vld [vmem:[%s299 + $0xa8] sm:$0xf]
        %v2558 = vld [vmem:[%s299 + $0xac] sm:$0xf]
        %v2559 = vld [vmem:[%s299 + $0xb0] sm:$0xf]
        %v2560 = vld [vmem:[%s299 + $0xb4] sm:$0xf]
        %v2561 = vld [vmem:[%s299 + $0xb8] sm:$0xf]
        %v2562 = vld [vmem:[%s299 + $0xbc] sm:$0xf]
        %v2563 = vld [vmem:[%s299 + $0xc0] sm:$0xf]
        %v2564 = vld [vmem:[%s299 + $0xc4] sm:$0xf]
        %v2565 = vld [vmem:[%s299 + $0xc8] sm:$0xf]
        %v2566 = vld [vmem:[%s299 + $0xcc] sm:$0xf]
        %v2567 = vld [vmem:[%s299 + $0xd0] sm:$0xf]
        %v2568 = vld [vmem:[%s299 + $0xd4] sm:$0xf]
        %v2569 = vld [vmem:[%s299 + $0xd8] sm:$0xf]
        %v2570 = vld [vmem:[%s299 + $0xdc] sm:$0xf]
        %v2571 = vld [vmem:[%s299 + $0xe0] sm:$0xf]
        %v2572 = vld [vmem:[%s299 + $0xe4] sm:$0xf]
        %v2573 = vld [vmem:[%s299 + $0xe8] sm:$0xf]
        %v2574 = vld [vmem:[%s299 + $0xec] sm:$0xf]
        %v2575 = vld [vmem:[%s299 + $0xf0] sm:$0xf]
        %v2576 = vld [vmem:[%s299 + $0xf4] sm:$0xf]
        %v2577 = vld [vmem:[%s299 + $0xf8] sm:$0xf]
        %v2578 = vld [vmem:[%s299 + $0xfc] sm:$0xf]
        %v2579 = vld [vmem:[%s299 + $0x100] sm:$0xf]
        %v2580 = vld [vmem:[%s299 + $0x104] sm:$0xf]
        %v2581 = vld [vmem:[%s299 + $0x108] sm:$0xf]
        %v2582 = vld [vmem:[%s299 + $0x10c] sm:$0xf]
        %v2583 = vld [vmem:[%s299 + $0x110] sm:$0xf]
        %v2584 = vld [vmem:[%s299 + $0x114] sm:$0xf]
        %v2585 = vld [vmem:[%s299 + $0x118] sm:$0xf]
        %v2586 = vld [vmem:[%s299 + $0x11c] sm:$0xf]
        %v2587 = vld [vmem:[%s302] sm:$0x1]
        %v2636 = vrot.slane %v2461, 1
        %v2637 = vrot.slane %v2462, 1
        %v2638 = vsel %vm633, %v2636, %v2637
        %v2639 = vrot.slane %v2463, 1
        %v2640 = vsel %vm633, %v2637, %v2639
        %v2641 = vrot.slane %v2464, 1
        %v2642 = vrot.slane %v2465, 1
        %v2643 = vsel %vm633, %v2641, %v2642
        %v2644 = vrot.slane %v2466, 1
        %v2645 = vsel %vm633, %v2642, %v2644
        %v2646 = vrot.slane %v2467, 1
        %v2647 = vrot.slane %v2468, 1
        %v2648 = vsel %vm633, %v2646, %v2647
        %v2649 = vrot.slane %v2469, 1
        %v2650 = vsel %vm633, %v2647, %v2649
        %v2651 = vrot.slane %v2470, 1
        %v2652 = vrot.slane %v2471, 1
        %v2653 = vsel %vm633, %v2651, %v2652
        %v2654 = vrot.slane %v2472, 1
        %v2655 = vsel %vm633, %v2652, %v2654
        %v2656 = vrot.slane %v2473, 1
        %v2657 = vrot.slane %v2474, 1
        %v2658 = vsel %vm633, %v2656, %v2657
        %v2659 = vrot.slane %v2475, 1
        %v2660 = vsel %vm633, %v2657, %v2659
        %v2661 = vrot.slane %v2476, 1
        %v2662 = vrot.slane %v2477, 1
        %v2663 = vsel %vm633, %v2661, %v2662
        %v2664 = vrot.slane %v2478, 1
        %v2665 = vsel %vm633, %v2662, %v2664
        %v2666 = vrot.slane %v2479, 1
        %v2667 = vrot.slane %v2480, 1
        %v2668 = vsel %vm633, %v2666, %v2667
        %v2669 = vrot.slane %v2481, 1
        %v2670 = vsel %vm633, %v2667, %v2669
        %v2671 = vrot.slane %v2482, 1
        %v2672 = vrot.slane %v2483, 1
        %v2673 = vsel %vm633, %v2671, %v2672
        %v2674 = vrot.slane %v2484, 1
        %v2675 = vsel %vm633, %v2672, %v2674
        %v2676 = vrot.slane %v2485, 1
        %v2677 = vrot.slane %v2486, 1
        %v2678 = vsel %vm633, %v2676, %v2677
        %v2679 = vrot.slane %v2487, 1
        %v2680 = vsel %vm633, %v2677, %v2679
        %v2681 = vrot.slane %v2488, 1
        %v2682 = vrot.slane %v2489, 1
        %v2683 = vsel %vm633, %v2681, %v2682
        %v2684 = vrot.slane %v2490, 1
        %v2685 = vsel %vm633, %v2682, %v2684
        %v2686 = vrot.slane %v2491, 1
        %v2687 = vrot.slane %v2492, 1
        %v2688 = vsel %vm633, %v2686, %v2687
        %v2689 = vrot.slane %v2493, 1
        %v2690 = vsel %vm633, %v2687, %v2689
        %v2691 = vrot.slane %v2494, 1
        %v2692 = vrot.slane %v2495, 1
        %v2693 = vsel %vm633, %v2691, %v2692
        %v2694 = vrot.slane %v2496, 1
        %v2695 = vsel %vm633, %v2692, %v2694
        %v2696 = vrot.slane %v2497, 1
        %v2697 = vrot.slane %v2498, 1
        %v2698 = vsel %vm633, %v2696, %v2697
        %v2699 = vrot.slane %v2499, 1
        %v2700 = vsel %vm633, %v2697, %v2699
        %v2701 = vrot.slane %v2500, 1
        %v2702 = vrot.slane %v2501, 1
        %v2703 = vsel %vm633, %v2701, %v2702
        %v2704 = vrot.slane %v2502, 1
        %v2705 = vsel %vm633, %v2702, %v2704
        %v2706 = vrot.slane %v2503, 1
        %v2707 = vrot.slane %v2504, 1
        %v2708 = vsel %vm633, %v2706, %v2707
        %v2709 = vrot.slane %v2505, 1
        %v2710 = vsel %vm633, %v2707, %v2709
        %v2711 = vrot.slane %v2506, 1
        %v2712 = vrot.slane %v2507, 1
        %v2713 = vsel %vm633, %v2711, %v2712
        %v2714 = vrot.slane %v2508, 1
        %v2715 = vsel %vm633, %v2712, %v2714
        %v2716 = vrot.slane %v2461, 2
        %v2717 = vrot.slane %v2462, 2
        %v2718 = vsel %vm1001, %v2716, %v2717
        %v2719 = vrot.slane %v2463, 2
        %v2720 = vsel %vm1001, %v2717, %v2719
        %v2721 = vrot.slane %v2464, 2
        %v2722 = vrot.slane %v2465, 2
        %v2723 = vsel %vm1001, %v2721, %v2722
        %v2724 = vrot.slane %v2466, 2
        %v2725 = vsel %vm1001, %v2722, %v2724
        %v2726 = vrot.slane %v2467, 2
        %v2727 = vrot.slane %v2468, 2
        %v2728 = vsel %vm1001, %v2726, %v2727
        %v2729 = vrot.slane %v2469, 2
        %v2730 = vsel %vm1001, %v2727, %v2729
        %v2731 = vrot.slane %v2470, 2
        %v2732 = vrot.slane %v2471, 2
        %v2733 = vsel %vm1001, %v2731, %v2732
        %v2734 = vrot.slane %v2472, 2
        %v2735 = vsel %vm1001, %v2732, %v2734
        %v2736 = vrot.slane %v2473, 2
        %v2737 = vrot.slane %v2474, 2
        %v2738 = vsel %vm1001, %v2736, %v2737
        %v2739 = vrot.slane %v2475, 2
        %v2740 = vsel %vm1001, %v2737, %v2739
        %v2741 = vrot.slane %v2476, 2
        %v2742 = vrot.slane %v2477, 2
        %v2743 = vsel %vm1001, %v2741, %v2742
        %v2744 = vrot.slane %v2478, 2
        %v2745 = vsel %vm1001, %v2742, %v2744
        %v2746 = vrot.slane %v2479, 2
        %v2747 = vrot.slane %v2480, 2
        %v2748 = vsel %vm1001, %v2746, %v2747
        %v2749 = vrot.slane %v2481, 2
        %v2750 = vsel %vm1001, %v2747, %v2749
        %v2751 = vrot.slane %v2482, 2
        %v2752 = vrot.slane %v2483, 2
        %v2753 = vsel %vm1001, %v2751, %v2752
        %v2754 = vrot.slane %v2484, 2
        %v2755 = vsel %vm1001, %v2752, %v2754
        %v2756 = vrot.slane %v2485, 2
        %v2757 = vrot.slane %v2486, 2
        %v2758 = vsel %vm1001, %v2756, %v2757
        %v2759 = vrot.slane %v2487, 2
        %v2760 = vsel %vm1001, %v2757, %v2759
        %v2761 = vrot.slane %v2488, 2
        %v2762 = vrot.slane %v2489, 2
        %v2763 = vsel %vm1001, %v2761, %v2762
        %v2764 = vrot.slane %v2490, 2
        %v2765 = vsel %vm1001, %v2762, %v2764
        %v2766 = vrot.slane %v2491, 2
        %v2767 = vrot.slane %v2492, 2
        %v2768 = vsel %vm1001, %v2766, %v2767
        %v2769 = vrot.slane %v2493, 2
        %v2770 = vsel %vm1001, %v2767, %v2769
        %v2771 = vrot.slane %v2494, 2
        %v2772 = vrot.slane %v2495, 2
        %v2773 = vsel %vm1001, %v2771, %v2772
        %v2774 = vrot.slane %v2496, 2
        %v2775 = vsel %vm1001, %v2772, %v2774
        %v2776 = vrot.slane %v2497, 2
        %v2777 = vrot.slane %v2498, 2
        %v2778 = vsel %vm1001, %v2776, %v2777
        %v2779 = vrot.slane %v2499, 2
        %v2780 = vsel %vm1001, %v2777, %v2779
        %v2781 = vrot.slane %v2500, 2
        %v2782 = vrot.slane %v2501, 2
        %v2783 = vsel %vm1001, %v2781, %v2782
        %v2784 = vrot.slane %v2502, 2
        %v2785 = vsel %vm1001, %v2782, %v2784
        %v2786 = vrot.slane %v2503, 2
        %v2787 = vrot.slane %v2504, 2
        %v2788 = vsel %vm1001, %v2786, %v2787
        %v2789 = vrot.slane %v2505, 2
        %v2790 = vsel %vm1001, %v2787, %v2789
        %v2791 = vrot.slane %v2506, 2
        %v2792 = vrot.slane %v2507, 2
        %v2793 = vsel %vm1001, %v2791, %v2792
        %v2794 = vrot.slane %v2508, 2
        %v2795 = vsel %vm1001, %v2792, %v2794
        %v2831 = vrot.slane %v2509, 1
        %v2832 = vrot.slane %v2510, 1
        %v2833 = vsel %vm633, %v2831, %v2832
        %v2834 = vrot.slane %v2511, 1
        %v2835 = vsel %vm633, %v2832, %v2834
        %v2868 = vrot.slane %v2509, 2
        %v2869 = vrot.slane %v2510, 2
        %v2870 = vsel %vm1001, %v2868, %v2869
        %v2871 = vrot.slane %v2511, 2
        %v2872 = vsel %vm1001, %v2869, %v2871
        %v2876 = vrot.slane %v2512, 1
        %v2877 = vrot.slane %v2513, 1
        %v2878 = vsel %vm633, %v2876, %v2877
        %v2879 = vrot.slane %v2514, 1
        %v2880 = vsel %vm633, %v2877, %v2879
        %v2881 = vrot.slane %v2512, 2
        %v2882 = vrot.slane %v2513, 2
        %v2883 = vsel %vm1001, %v2881, %v2882
        %v2884 = vrot.slane %v2514, 2
        %v2885 = vsel %vm1001, %v2882, %v2884
        %2890 = vrot.lane.b32.xlu0 %v2638, 64
        %v2891 = vpop.permute.xlu0 %2890
        %2892 = vrot.lane.b32.xlu0 %v2640, 64
        %v2893 = vpop.permute.xlu0 %2892
        %2894 = vrot.lane.b32.xlu0 %v2643, 64
        %v2895 = vpop.permute.xlu0 %2894
        %2896 = vrot.lane.b32.xlu0 %v2645, 64
        %v2897 = vpop.permute.xlu0 %2896
        %2898 = vrot.lane.b32.xlu0 %v2648, 64
        %v2899 = vpop.permute.xlu0 %2898
        %2900 = vrot.lane.b32.xlu0 %v2650, 64
        %v2901 = vpop.permute.xlu0 %2900
        %2902 = vrot.lane.b32.xlu0 %v2653, 64
        %v2903 = vpop.permute.xlu0 %2902
        %2904 = vrot.lane.b32.xlu0 %v2655, 64
        %v2905 = vpop.permute.xlu0 %2904
        %2906 = vrot.lane.b32.xlu0 %v2658, 64
        %v2907 = vpop.permute.xlu0 %2906
        %2908 = vrot.lane.b32.xlu0 %v2660, 64
        %v2909 = vpop.permute.xlu0 %2908
        %2910 = vrot.lane.b32.xlu0 %v2663, 64
        %v2911 = vpop.permute.xlu0 %2910
        %2912 = vrot.lane.b32.xlu0 %v2665, 64
        %v2913 = vpop.permute.xlu0 %2912
        %2914 = vrot.lane.b32.xlu0 %v2668, 64
        %v2915 = vpop.permute.xlu0 %2914
        %2916 = vrot.lane.b32.xlu0 %v2670, 64
        %v2917 = vpop.permute.xlu0 %2916
        %2918 = vrot.lane.b32.xlu0 %v2673, 64
        %v2919 = vpop.permute.xlu0 %2918
        %2920 = vrot.lane.b32.xlu0 %v2675, 64
        %v2921 = vpop.permute.xlu0 %2920
        %2922 = vrot.lane.b32.xlu0 %v2678, 64
        %v2923 = vpop.permute.xlu0 %2922
        %2924 = vrot.lane.b32.xlu0 %v2680, 64
        %v2925 = vpop.permute.xlu0 %2924
        %2926 = vrot.lane.b32.xlu0 %v2683, 64
        %v2927 = vpop.permute.xlu0 %2926
        %2928 = vrot.lane.b32.xlu0 %v2685, 64
        %v2929 = vpop.permute.xlu0 %2928
        %2930 = vrot.lane.b32.xlu0 %v2688, 64
        %v2931 = vpop.permute.xlu0 %2930
        %2932 = vrot.lane.b32.xlu0 %v2690, 64
        %v2933 = vpop.permute.xlu0 %2932
        %2934 = vrot.lane.b32.xlu0 %v2693, 64
        %v2935 = vpop.permute.xlu0 %2934
        %2936 = vrot.lane.b32.xlu0 %v2695, 64
        %v2937 = vpop.permute.xlu0 %2936
        %2938 = vrot.lane.b32.xlu0 %v2698, 64
        %v2939 = vpop.permute.xlu0 %2938
        %2940 = vrot.lane.b32.xlu0 %v2700, 64
        %v2941 = vpop.permute.xlu0 %2940
        %2942 = vrot.lane.b32.xlu0 %v2703, 64
        %v2943 = vpop.permute.xlu0 %2942
        %2944 = vrot.lane.b32.xlu0 %v2705, 64
        %v2945 = vpop.permute.xlu0 %2944
        %2946 = vrot.lane.b32.xlu0 %v2708, 64
        %v2947 = vpop.permute.xlu0 %2946
        %2948 = vrot.lane.b32.xlu0 %v2710, 64
        %v2949 = vpop.permute.xlu0 %2948
        %2950 = vrot.lane.b32.xlu0 %v2713, 64
        %v2951 = vpop.permute.xlu0 %2950
        %2952 = vrot.lane.b32.xlu0 %v2715, 64
        %v2953 = vpop.permute.xlu0 %2952
        %2986 = vrot.lane.b32.xlu0 %v2464, 64
        %v2987 = vpop.permute.xlu0 %2986
        %2988 = vrot.lane.b32.xlu0 %v2465, 64
        %v2989 = vpop.permute.xlu0 %2988
        %2990 = vrot.lane.b32.xlu0 %v2467, 64
        %v2991 = vpop.permute.xlu0 %2990
        %2992 = vrot.lane.b32.xlu0 %v2468, 64
        %v2993 = vpop.permute.xlu0 %2992
        %2994 = vrot.lane.b32.xlu0 %v2470, 64
        %v2995 = vpop.permute.xlu0 %2994
        %2996 = vrot.lane.b32.xlu0 %v2471, 64
        %v2997 = vpop.permute.xlu0 %2996
        %2998 = vrot.lane.b32.xlu0 %v2473, 64
        %v2999 = vpop.permute.xlu0 %2998
        %3000 = vrot.lane.b32.xlu0 %v2474, 64
        %v3001 = vpop.permute.xlu0 %3000
        %3002 = vrot.lane.b32.xlu0 %v2476, 64
        %v3003 = vpop.permute.xlu0 %3002
        %3004 = vrot.lane.b32.xlu0 %v2477, 64
        %v3005 = vpop.permute.xlu0 %3004
        %3006 = vrot.lane.b32.xlu0 %v2479, 64
        %v3007 = vpop.permute.xlu0 %3006
        %3008 = vrot.lane.b32.xlu0 %v2480, 64
        %v3009 = vpop.permute.xlu0 %3008
        %3010 = vrot.lane.b32.xlu0 %v2482, 64
        %v3011 = vpop.permute.xlu0 %3010
        %3012 = vrot.lane.b32.xlu0 %v2483, 64
        %v3013 = vpop.permute.xlu0 %3012
        %3014 = vrot.lane.b32.xlu0 %v2485, 64
        %v3015 = vpop.permute.xlu0 %3014
        %3016 = vrot.lane.b32.xlu0 %v2486, 64
        %v3017 = vpop.permute.xlu0 %3016
        %3018 = vrot.lane.b32.xlu0 %v2488, 64
        %v3019 = vpop.permute.xlu0 %3018
        %3020 = vrot.lane.b32.xlu0 %v2489, 64
        %v3021 = vpop.permute.xlu0 %3020
        %3022 = vrot.lane.b32.xlu0 %v2491, 64
        %v3023 = vpop.permute.xlu0 %3022
        %3024 = vrot.lane.b32.xlu0 %v2492, 64
        %v3025 = vpop.permute.xlu0 %3024
        %3026 = vrot.lane.b32.xlu0 %v2494, 64
        %v3027 = vpop.permute.xlu0 %3026
        %3028 = vrot.lane.b32.xlu0 %v2495, 64
        %v3029 = vpop.permute.xlu0 %3028
        %3030 = vrot.lane.b32.xlu0 %v2497, 64
        %v3031 = vpop.permute.xlu0 %3030
        %3032 = vrot.lane.b32.xlu0 %v2498, 64
        %v3033 = vpop.permute.xlu0 %3032
        %3034 = vrot.lane.b32.xlu0 %v2500, 64
        %v3035 = vpop.permute.xlu0 %3034
        %3036 = vrot.lane.b32.xlu0 %v2501, 64
        %v3037 = vpop.permute.xlu0 %3036
        %3038 = vrot.lane.b32.xlu0 %v2503, 64
        %v3039 = vpop.permute.xlu0 %3038
        %3040 = vrot.lane.b32.xlu0 %v2504, 64
        %v3041 = vpop.permute.xlu0 %3040
        %3042 = vrot.lane.b32.xlu0 %v2506, 64
        %v3043 = vpop.permute.xlu0 %3042
        %3044 = vrot.lane.b32.xlu0 %v2507, 64
        %v3045 = vpop.permute.xlu0 %3044
        %3046 = vrot.lane.b32.xlu0 %v2509, 64
        %v3047 = vpop.permute.xlu0 %3046
        %3048 = vrot.lane.b32.xlu0 %v2510, 64
        %v3049 = vpop.permute.xlu0 %3048
        %3082 = vrot.lane.b32.xlu0 %v2723, 64
        %v3083 = vpop.permute.xlu0 %3082
        %3084 = vrot.lane.b32.xlu0 %v2725, 64
        %v3085 = vpop.permute.xlu0 %3084
        %3086 = vrot.lane.b32.xlu0 %v2728, 64
        %v3087 = vpop.permute.xlu0 %3086
        %3088 = vrot.lane.b32.xlu0 %v2730, 64
        %v3089 = vpop.permute.xlu0 %3088
        %3090 = vrot.lane.b32.xlu0 %v2733, 64
        %v3091 = vpop.permute.xlu0 %3090
        %3092 = vrot.lane.b32.xlu0 %v2735, 64
        %v3093 = vpop.permute.xlu0 %3092
        %3094 = vrot.lane.b32.xlu0 %v2738, 64
        %v3095 = vpop.permute.xlu0 %3094
        %3096 = vrot.lane.b32.xlu0 %v2740, 64
        %v3097 = vpop.permute.xlu0 %3096
        %3098 = vrot.lane.b32.xlu0 %v2743, 64
        %v3099 = vpop.permute.xlu0 %3098
        %3100 = vrot.lane.b32.xlu0 %v2745, 64
        %v3101 = vpop.permute.xlu0 %3100
        %3102 = vrot.lane.b32.xlu0 %v2748, 64
        %v3103 = vpop.permute.xlu0 %3102
        %3104 = vrot.lane.b32.xlu0 %v2750, 64
        %v3105 = vpop.permute.xlu0 %3104
        %3106 = vrot.lane.b32.xlu0 %v2753, 64
        %v3107 = vpop.permute.xlu0 %3106
        %3108 = vrot.lane.b32.xlu0 %v2755, 64
        %v3109 = vpop.permute.xlu0 %3108
        %3110 = vrot.lane.b32.xlu0 %v2758, 64
        %v3111 = vpop.permute.xlu0 %3110
        %3112 = vrot.lane.b32.xlu0 %v2760, 64
        %v3113 = vpop.permute.xlu0 %3112
        %3114 = vrot.lane.b32.xlu0 %v2763, 64
        %v3115 = vpop.permute.xlu0 %3114
        %3116 = vrot.lane.b32.xlu0 %v2765, 64
        %v3117 = vpop.permute.xlu0 %3116
        %3118 = vrot.lane.b32.xlu0 %v2768, 64
        %v3119 = vpop.permute.xlu0 %3118
        %3120 = vrot.lane.b32.xlu0 %v2770, 64
        %v3121 = vpop.permute.xlu0 %3120
        %3122 = vrot.lane.b32.xlu0 %v2773, 64
        %v3123 = vpop.permute.xlu0 %3122
        %3124 = vrot.lane.b32.xlu0 %v2775, 64
        %v3125 = vpop.permute.xlu0 %3124
        %3126 = vrot.lane.b32.xlu0 %v2778, 64
        %v3127 = vpop.permute.xlu0 %3126
        %3128 = vrot.lane.b32.xlu0 %v2780, 64
        %v3129 = vpop.permute.xlu0 %3128
        %3130 = vrot.lane.b32.xlu0 %v2783, 64
        %v3131 = vpop.permute.xlu0 %3130
        %3132 = vrot.lane.b32.xlu0 %v2785, 64
        %v3133 = vpop.permute.xlu0 %3132
        %3134 = vrot.lane.b32.xlu0 %v2788, 64
        %v3135 = vpop.permute.xlu0 %3134
        %3136 = vrot.lane.b32.xlu0 %v2790, 64
        %v3137 = vpop.permute.xlu0 %3136
        %3138 = vrot.lane.b32.xlu0 %v2793, 64
        %v3139 = vpop.permute.xlu0 %3138
        %3140 = vrot.lane.b32.xlu0 %v2795, 64
        %v3141 = vpop.permute.xlu0 %3140
        %3142 = vrot.lane.b32.xlu0 %v2870, 64
        %v3143 = vpop.permute.xlu0 %3142
        %3144 = vrot.lane.b32.xlu0 %v2872, 64
        %v3145 = vpop.permute.xlu0 %3144
        %3178 = vrot.lane.b32.xlu0 %v2833, 64
        %v3179 = vpop.permute.xlu0 %3178
        %3180 = vrot.lane.b32.xlu0 %v2835, 64
        %v3181 = vpop.permute.xlu0 %3180
        %3182 = vrot.lane.b32.xlu0 %v2878, 64
        %v3183 = vpop.permute.xlu0 %3182
        %3184 = vrot.lane.b32.xlu0 %v2880, 64
        %v3185 = vpop.permute.xlu0 %3184
        %v3190 = vsel %vm1476, %v2461, %v2891
        %v3191 = vsel %vm1476, %v2462, %v2893
        %v3192 = vsel %vm1476, %v2464, %v2895
        %v3193 = vsel %vm1476, %v2465, %v2897
        %v3194 = vsel %vm1476, %v2467, %v2899
        %v3195 = vsel %vm1476, %v2468, %v2901
        %v3196 = vsel %vm1476, %v2470, %v2903
        %v3197 = vsel %vm1476, %v2471, %v2905
        %v3198 = vsel %vm1476, %v2473, %v2907
        %v3199 = vsel %vm1476, %v2474, %v2909
        %v3200 = vsel %vm1476, %v2476, %v2911
        %v3201 = vsel %vm1476, %v2477, %v2913
        %v3202 = vsel %vm1476, %v2479, %v2915
        %v3203 = vsel %vm1476, %v2480, %v2917
        %v3204 = vsel %vm1476, %v2482, %v2919
        %v3205 = vsel %vm1476, %v2483, %v2921
        %v3206 = vsel %vm1476, %v2485, %v2923
        %v3207 = vsel %vm1476, %v2486, %v2925
        %v3208 = vsel %vm1476, %v2488, %v2927
        %v3209 = vsel %vm1476, %v2489, %v2929
        %v3210 = vsel %vm1476, %v2491, %v2931
        %v3211 = vsel %vm1476, %v2492, %v2933
        %v3212 = vsel %vm1476, %v2494, %v2935
        %v3213 = vsel %vm1476, %v2495, %v2937
        %v3214 = vsel %vm1476, %v2497, %v2939
        %v3215 = vsel %vm1476, %v2498, %v2941
        %v3216 = vsel %vm1476, %v2500, %v2943
        %v3217 = vsel %vm1476, %v2501, %v2945
        %v3218 = vsel %vm1476, %v2503, %v2947
        %v3219 = vsel %vm1476, %v2504, %v2949
        %v3220 = vsel %vm1476, %v2506, %v2951
        %v3221 = vsel %vm1476, %v2507, %v2953
        %v3222 = vsel %vm1476, %v2718, %v2987
        %v3223 = vsel %vm1476, %v2720, %v2989
        %v3224 = vsel %vm1476, %v2723, %v2991
        %v3225 = vsel %vm1476, %v2725, %v2993
        %v3226 = vsel %vm1476, %v2728, %v2995
        %v3227 = vsel %vm1476, %v2730, %v2997
        %v3228 = vsel %vm1476, %v2733, %v2999
        %v3229 = vsel %vm1476, %v2735, %v3001
        %v3230 = vsel %vm1476, %v2738, %v3003
        %v3231 = vsel %vm1476, %v2740, %v3005
        %v3232 = vsel %vm1476, %v2743, %v3007
        %v3233 = vsel %vm1476, %v2745, %v3009
        %v3234 = vsel %vm1476, %v2748, %v3011
        %v3235 = vsel %vm1476, %v2750, %v3013
        %v3236 = vsel %vm1476, %v2753, %v3015
        %v3237 = vsel %vm1476, %v2755, %v3017
        %v3238 = vsel %vm1476, %v2758, %v3019
        %v3239 = vsel %vm1476, %v2760, %v3021
        %v3240 = vsel %vm1476, %v2763, %v3023
        %v3241 = vsel %vm1476, %v2765, %v3025
        %v3242 = vsel %vm1476, %v2768, %v3027
        %v3243 = vsel %vm1476, %v2770, %v3029
        %v3244 = vsel %vm1476, %v2773, %v3031
        %v3245 = vsel %vm1476, %v2775, %v3033
        %v3246 = vsel %vm1476, %v2778, %v3035
        %v3247 = vsel %vm1476, %v2780, %v3037
        %v3248 = vsel %vm1476, %v2783, %v3039
        %v3249 = vsel %vm1476, %v2785, %v3041
        %v3250 = vsel %vm1476, %v2788, %v3043
        %v3251 = vsel %vm1476, %v2790, %v3045
        %v3252 = vsel %vm1476, %v2793, %v3047
        %v3253 = vsel %vm1476, %v2795, %v3049
        %v3254 = vsel %vm1476, %v2643, %v3083
        %v3255 = vsel %vm1476, %v2645, %v3085
        %v3256 = vsel %vm1476, %v2648, %v3087
        %v3257 = vsel %vm1476, %v2650, %v3089
        %v3258 = vsel %vm1476, %v2653, %v3091
        %v3259 = vsel %vm1476, %v2655, %v3093
        %v3260 = vsel %vm1476, %v2658, %v3095
        %v3261 = vsel %vm1476, %v2660, %v3097
        %v3262 = vsel %vm1476, %v2663, %v3099
        %v3263 = vsel %vm1476, %v2665, %v3101
        %v3264 = vsel %vm1476, %v2668, %v3103
        %v3265 = vsel %vm1476, %v2670, %v3105
        %v3266 = vsel %vm1476, %v2673, %v3107
        %v3267 = vsel %vm1476, %v2675, %v3109
        %v3268 = vsel %vm1476, %v2678, %v3111
        %v3269 = vsel %vm1476, %v2680, %v3113
        %v3270 = vsel %vm1476, %v2683, %v3115
        %v3271 = vsel %vm1476, %v2685, %v3117
        %v3272 = vsel %vm1476, %v2688, %v3119
        %v3273 = vsel %vm1476, %v2690, %v3121
        %v3274 = vsel %vm1476, %v2693, %v3123
        %v3275 = vsel %vm1476, %v2695, %v3125
        %v3276 = vsel %vm1476, %v2698, %v3127
        %v3277 = vsel %vm1476, %v2700, %v3129
        %v3278 = vsel %vm1476, %v2703, %v3131
        %v3279 = vsel %vm1476, %v2705, %v3133
        %v3280 = vsel %vm1476, %v2708, %v3135
        %v3281 = vsel %vm1476, %v2710, %v3137
        %v3282 = vsel %vm1476, %v2713, %v3139
        %v3283 = vsel %vm1476, %v2715, %v3141
        %v3284 = vsel %vm1476, %v2833, %v3143
        %v3285 = vsel %vm1476, %v2835, %v3145
        %v3286 = vsel %vm1476, %v2509, %v3179
        %v3287 = vsel %vm1476, %v2510, %v3181
        %v3288 = vsel %vm1476, %v2512, %v3183
        %v3289 = vsel %vm1476, %v2513, %v3185
        %v3290 = vpack.c.bf16 %v3191, %v3190
        %v3291 = vpack.c.bf16 %v3223, %v3222
        %v3292 = vpack.c.bf16 %v3255, %v3254
        %v3293 = vpack.c.bf16 %v3195, %v3194
        %v3294 = vpack.c.bf16 %v2730, %v2728
        %v3295 = vpack.c.bf16 %v3193, %v3192
        %v3296 = vpack.c.bf16 %v3225, %v3224
        %v3297 = vpack.c.bf16 %v3257, %v3256
        %v3298 = vpack.c.bf16 %v3197, %v3196
        %v3299 = vpack.c.bf16 %v2735, %v2733
        %v3300 = vpack.c.bf16 %v3227, %v3226
        %v3301 = vpack.c.bf16 %v3259, %v3258
        %v3302 = vpack.c.bf16 %v3199, %v3198
        %v3303 = vpack.c.bf16 %v2740, %v2738
        %v3304 = vpack.c.bf16 %v3229, %v3228
        %v3305 = vpack.c.bf16 %v3261, %v3260
        %v3306 = vpack.c.bf16 %v3201, %v3200
        %v3307 = vpack.c.bf16 %v2745, %v2743
        %v3308 = vpack.c.bf16 %v3231, %v3230
        %v3309 = vpack.c.bf16 %v3263, %v3262
        %v3310 = vpack.c.bf16 %v3203, %v3202
        %v3311 = vpack.c.bf16 %v2750, %v2748
        %v3312 = vpack.c.bf16 %v3233, %v3232
        %v3313 = vpack.c.bf16 %v3265, %v3264
        %v3314 = vpack.c.bf16 %v3205, %v3204
        %v3315 = vpack.c.bf16 %v2755, %v2753
        %v3316 = vpack.c.bf16 %v3235, %v3234
        %v3317 = vpack.c.bf16 %v3267, %v3266
        %v3318 = vpack.c.bf16 %v3207, %v3206
        %v3319 = vpack.c.bf16 %v2760, %v2758
        %v3320 = vpack.c.bf16 %v3237, %v3236
        %v3321 = vpack.c.bf16 %v3269, %v3268
        %v3322 = vpack.c.bf16 %v3209, %v3208
        %v3323 = vpack.c.bf16 %v2765, %v2763
        %v3324 = vpack.c.bf16 %v3239, %v3238
        %v3325 = vpack.c.bf16 %v3271, %v3270
        %v3326 = vpack.c.bf16 %v3211, %v3210
        %v3327 = vpack.c.bf16 %v2770, %v2768
        %v3328 = vpack.c.bf16 %v3241, %v3240
        %v3329 = vpack.c.bf16 %v3273, %v3272
        %v3330 = vpack.c.bf16 %v3213, %v3212
        %v3331 = vpack.c.bf16 %v2775, %v2773
        %v3332 = vpack.c.bf16 %v3243, %v3242
        %v3333 = vpack.c.bf16 %v3275, %v3274
        %v3334 = vpack.c.bf16 %v3215, %v3214
        %v3335 = vpack.c.bf16 %v2780, %v2778
        %v3336 = vpack.c.bf16 %v3245, %v3244
        %v3337 = vpack.c.bf16 %v3277, %v3276
        %v3338 = vpack.c.bf16 %v3217, %v3216
        %v3339 = vpack.c.bf16 %v2785, %v2783
        %v3340 = vpack.c.bf16 %v3247, %v3246
        %v3341 = vpack.c.bf16 %v3279, %v3278
        %v3342 = vpack.c.bf16 %v3219, %v3218
        %v3343 = vpack.c.bf16 %v2790, %v2788
        %v3344 = vpack.c.bf16 %v3249, %v3248
        %v3345 = vpack.c.bf16 %v3281, %v3280
        %v3346 = vpack.c.bf16 %v3221, %v3220
        %v3347 = vpack.c.bf16 %v2795, %v2793
        %v3348 = vpack.c.bf16 %v3251, %v3250
        %v3349 = vpack.c.bf16 %v3283, %v3282
        %v3350 = vpack.c.bf16 %v3287, %v3286
        %v3351 = vpack.c.bf16 %v2872, %v2870
        %v3352 = vpack.c.bf16 %v3253, %v3252
        %v3353 = vpack.c.bf16 %v3285, %v3284
        %v3354 = vpack.c.bf16 %v3289, %v3288
        %v3355 = vpack.c.bf16 %v2885, %v2883
        %v3357 = vlaneseq
        %v3358 = vshrl.u32 %v3357, 7
        %v3359 = vsub.s32 0, %v3358
        %v3360 = vrot.slane %v2587, %v3359
        %v3434 = vunpack.c.l.b16 %v2515
        %v3435 = vunpack.c.l.b16 %v2516
        %v3436 = vunpack.c.l.b16 %v2517
        %v3437 = vunpack.c.l.b16 %v2518
        %v3438 = vunpack.c.l.b16 %v2519
        %v3439 = vunpack.c.l.b16 %v2520
        %v3440 = vunpack.c.l.b16 %v2521
        %v3441 = vunpack.c.l.b16 %v2522
        %v3442 = vunpack.c.l.b16 %v2523
        %v3443 = vunpack.c.l.b16 %v2524
        %v3444 = vunpack.c.l.b16 %v2525
        %v3445 = vunpack.c.l.b16 %v2526
        %v3446 = vunpack.c.l.b16 %v2527
        %v3447 = vunpack.c.l.b16 %v2528
        %v3448 = vunpack.c.l.b16 %v2529
        %v3449 = vunpack.c.l.b16 %v2530
        %v3450 = vunpack.c.l.b16 %v2531
        %v3451 = vunpack.c.l.b16 %v2532
        %v3452 = vunpack.c.l.b16 %v2533
        %v3453 = vunpack.c.l.b16 %v2534
        %v3454 = vunpack.c.l.b16 %v2535
        %v3455 = vunpack.c.l.b16 %v2536
        %v3456 = vunpack.c.l.b16 %v2537
        %v3457 = vunpack.c.l.b16 %v2538
        %v3458 = vunpack.c.l.b16 %v2539
        %v3459 = vunpack.c.l.b16 %v2540
        %v3460 = vunpack.c.l.b16 %v2541
        %v3461 = vunpack.c.l.b16 %v2542
        %v3462 = vunpack.c.l.b16 %v2543
        %v3463 = vunpack.c.l.b16 %v2544
        %v3464 = vunpack.c.l.b16 %v2545
        %v3465 = vunpack.c.l.b16 %v2546
        %v3466 = vunpack.c.l.b16 %v2547
        %v3467 = vunpack.c.l.b16 %v2548
        %v3468 = vunpack.c.l.b16 %v2549
        %v3469 = vunpack.c.l.b16 %v2550
        %v3470 = vunpack.c.l.b16 %v2551
        %v3471 = vunpack.c.l.b16 %v2552
        %v3472 = vunpack.c.l.b16 %v2553
        %v3473 = vunpack.c.l.b16 %v2554
        %v3474 = vunpack.c.l.b16 %v2555
        %v3475 = vunpack.c.l.b16 %v2556
        %v3476 = vunpack.c.l.b16 %v2557
        %v3477 = vunpack.c.l.b16 %v2558
        %v3478 = vunpack.c.l.b16 %v2559
        %v3479 = vunpack.c.l.b16 %v2560
        %v3480 = vunpack.c.l.b16 %v2561
        %v3481 = vunpack.c.l.b16 %v2562
        %v3482 = vunpack.c.l.b16 %v2563
        %v3483 = vunpack.c.l.b16 %v2564
        %v3484 = vunpack.c.l.b16 %v2565
        %v3485 = vunpack.c.l.b16 %v2566
        %v3486 = vunpack.c.l.b16 %v2567
        %v3487 = vunpack.c.l.b16 %v2568
        %v3488 = vunpack.c.l.b16 %v2569
        %v3489 = vunpack.c.l.b16 %v2570
        %v3490 = vunpack.c.l.b16 %v2571
        %v3491 = vunpack.c.l.b16 %v2572
        %v3492 = vunpack.c.l.b16 %v2573
        %v3493 = vunpack.c.l.b16 %v2574
        %v3494 = vunpack.c.l.b16 %v2575
        %v3495 = vunpack.c.l.b16 %v2576
        %v3496 = vunpack.c.l.b16 %v2577
        %v3497 = vunpack.c.l.b16 %v2578
        %v3498 = vunpack.c.l.b16 %v2579
        %v3499 = vunpack.c.l.b16 %v2580
        %v3500 = vunpack.c.l.b16 %v2581
        %v3501 = vunpack.c.l.b16 %v2582
        %v3502 = vunpack.c.l.b16 %v2583
        %v3503 = vunpack.c.l.b16 %v2584
        %v3504 = vunpack.c.l.b16 %v2585
        %v3505 = vunpack.c.l.b16 %v2586
        %v3506 = vpack.c.b16 %v3435, %v3434
        %v3507 = vpack.c.b16 %v3437, %v3436
        %v3508 = vpack.c.b16 %v3439, %v3438
        %v3509 = vpack.c.b16 %v3441, %v3440
        %v3510 = vpack.c.b16 %v3443, %v3442
        %v3511 = vpack.c.b16 %v3445, %v3444
        %v3512 = vpack.c.b16 %v3447, %v3446
        %v3513 = vpack.c.b16 %v3449, %v3448
        %v3514 = vpack.c.b16 %v3451, %v3450
        %v3515 = vpack.c.b16 %v3453, %v3452
        %v3516 = vpack.c.b16 %v3455, %v3454
        %v3517 = vpack.c.b16 %v3457, %v3456
        %v3518 = vpack.c.b16 %v3459, %v3458
        %v3519 = vpack.c.b16 %v3461, %v3460
        %v3520 = vpack.c.b16 %v3463, %v3462
        %v3521 = vpack.c.b16 %v3465, %v3464
        %v3522 = vpack.c.b16 %v3467, %v3466
        %v3523 = vpack.c.b16 %v3469, %v3468
        %v3524 = vpack.c.b16 %v3471, %v3470
        %v3525 = vpack.c.b16 %v3473, %v3472
        %v3526 = vpack.c.b16 %v3475, %v3474
        %v3527 = vpack.c.b16 %v3477, %v3476
        %v3528 = vpack.c.b16 %v3479, %v3478
        %v3529 = vpack.c.b16 %v3481, %v3480
        %v3530 = vpack.c.b16 %v3483, %v3482
        %v3531 = vpack.c.b16 %v3485, %v3484
        %v3532 = vpack.c.b16 %v3487, %v3486
        %v3533 = vpack.c.b16 %v3489, %v3488
        %v3534 = vpack.c.b16 %v3491, %v3490
        %v3535 = vpack.c.b16 %v3493, %v3492
        %v3536 = vpack.c.b16 %v3495, %v3494
        %v3537 = vpack.c.b16 %v3497, %v3496
        %v3538 = vpack.c.b16 %v3499, %v3498
        %v3539 = vpack.c.b16 %v3501, %v3500
        %v3540 = vpack.c.b16 %v3503, %v3502
        %v3541 = vpack.c.b16 %v3505, %v3504
        %v3579 = vsel %vm1476, %v3294, 0
        %v3582 = vsel %vm1476, %v3299, 0
        %v3585 = vsel %vm1476, %v3303, 0
        %v3588 = vsel %vm1476, %v3307, 0
        %v3591 = vsel %vm1476, %v3311, 0
        %v3594 = vsel %vm1476, %v3315, 0
        %v3597 = vsel %vm1476, %v3319, 0
        %v3600 = vsel %vm1476, %v3323, 0
        %v3603 = vsel %vm1476, %v3327, 0
        %v3606 = vsel %vm1476, %v3331, 0
        %v3609 = vsel %vm1476, %v3335, 0
        %v3612 = vsel %vm1476, %v3339, 0
        %v3615 = vsel %vm1476, %v3343, 0
        %v3618 = vsel %vm1476, %v3347, 0
        %v3621 = vsel %vm1476, %v3351, 0
        %v3624 = vsel %vm1476, %v3355, 0
        %3626 = vmatprep.subr.bf16.mxu0 0
        %3627 = vmatpush1.bf16.msra.mxu0 %v3513
        %3628 = vmatprep.subr.bf16.mxu0 0
        %3629 = vmatpush1.bf16.msra.mxu0 %v3512
        %3630 = vmatprep.subr.bf16.mxu0 0
        %3631 = vmatpush1.bf16.msra.mxu0 %v3511
        %3632 = vmatprep.subr.bf16.mxu0 0
        %3633 = vmatpush1.bf16.msra.mxu0 %v3510
        %3634 = vmatprep.subr.bf16.mxu0 0
        %3635 = vmatpush1.bf16.msra.mxu0 %v3509
        %3636 = vmatprep.subr.bf16.mxu0 0
        %3637 = vmatpush1.bf16.msra.mxu0 %v3508
        %3638 = vmatprep.subr.bf16.mxu0 0
        %3639 = vmatpush1.bf16.msra.mxu0 %v3507
        %3640 = vmatprep.subr.bf16.mxu0 0
        %3641 = vmatpush1.bf16.msra.mxu0 %v3506
        %3642 = vmatprep.subr.bf16.mxu0 0
        %3643 = vmatpush2.bf16.msra.mxu0 %v3521
        %3644 = vmatprep.subr.bf16.mxu0 0
        %3645 = vmatpush2.bf16.msra.mxu0 %v3520
        %3646 = vmatprep.subr.bf16.mxu0 0
        %3647 = vmatpush2.bf16.msra.mxu0 %v3519
        %3648 = vmatprep.subr.bf16.mxu0 0
        %3649 = vmatpush2.bf16.msra.mxu0 %v3518
        %3650 = vmatprep.subr.bf16.mxu0 0
        %3651 = vmatpush2.bf16.msra.mxu0 %v3517
        %3652 = vmatprep.subr.bf16.mxu0 0
        %3653 = vmatpush2.bf16.msra.mxu0 %v3516
        %3654 = vmatprep.subr.bf16.mxu0 0
        %3655 = vmatpush2.bf16.msra.mxu0 %v3515
        %3656 = vmatprep.subr.bf16.mxu0 0
        %3657 = vmatpush2.bf16.msra.mxu0 %v3514
        %3658 = vmatprep.mubr.bf16.mxu0 %v3291
        %3659 = vmatmul.mubr.bf16.gmra.mxu0 %v3290
        %v3660 = vpop.f32.mrf.mxu0
        %v3661 = vadd.f32 %v3360, %v3660
        %v3662 = vpop.f32.mrf.mxu0
        %v3663 = vpop.f32.mrf.mxu0
        %v3664 = vadd.f32 %v3360, %v3663
        %v3665 = vpop.f32.mrf.mxu0
        %3666 = vmatprep.mubr.bf16.mxu0 %v3296
        %3667 = vmatmul.mubr.bf16.gmra.mxu0 %v3295
        %v3668 = vpop.f32.mrf.mxu0
        %v3669 = vadd.f32 %v3360, %v3668
        %v3670 = vpop.f32.mrf.mxu0
        %v3671 = vpop.f32.mrf.mxu0
        %v3672 = vadd.f32 %v3360, %v3671
        %v3673 = vpop.f32.mrf.mxu0
        %3674 = vmatprep.mubr.bf16.mxu0 %v3300
        %3675 = vmatmul.mubr.bf16.gmra.mxu0 %v3293
        %v3676 = vpop.f32.mrf.mxu0
        %v3677 = vadd.f32 %v3360, %v3676
        %v3678 = vpop.f32.mrf.mxu0
        %v3679 = vpop.f32.mrf.mxu0
        %v3680 = vadd.f32 %v3360, %v3679
        %v3681 = vpop.f32.mrf.mxu0
        %3682 = vmatprep.mubr.bf16.mxu0 %v3304
        %3683 = vmatmul.mubr.bf16.gmra.mxu0 %v3298
        %v3684 = vpop.f32.mrf.mxu0
        %v3685 = vadd.f32 %v3360, %v3684
        %v3686 = vpop.f32.mrf.mxu0
        %v3687 = vpop.f32.mrf.mxu0
        %v3688 = vadd.f32 %v3360, %v3687
        %v3689 = vpop.f32.mrf.mxu0
        %3690 = vmatprep.mubr.bf16.mxu0 %v3308
        %3691 = vmatmul.mubr.bf16.gmra.mxu0 %v3302
        %v3692 = vpop.f32.mrf.mxu0
        %v3693 = vadd.f32 %v3360, %v3692
        %v3694 = vpop.f32.mrf.mxu0
        %v3695 = vpop.f32.mrf.mxu0
        %v3696 = vadd.f32 %v3360, %v3695
        %v3697 = vpop.f32.mrf.mxu0
        %3698 = vmatprep.mubr.bf16.mxu0 %v3312
        %3699 = vmatmul.mubr.bf16.gmra.mxu0 %v3306
        %v3700 = vpop.f32.mrf.mxu0
        %v3701 = vadd.f32 %v3360, %v3700
        %v3702 = vpop.f32.mrf.mxu0
        %v3703 = vpop.f32.mrf.mxu0
        %v3704 = vadd.f32 %v3360, %v3703
        %v3705 = vpop.f32.mrf.mxu0
        %3706 = vmatprep.mubr.bf16.mxu0 %v3316
        %3707 = vmatmul.mubr.bf16.gmra.mxu0 %v3310
        %v3708 = vpop.f32.mrf.mxu0
        %v3709 = vadd.f32 %v3360, %v3708
        %v3710 = vpop.f32.mrf.mxu0
        %v3711 = vpop.f32.mrf.mxu0
        %v3712 = vadd.f32 %v3360, %v3711
        %v3713 = vpop.f32.mrf.mxu0
        %3714 = vmatprep.mubr.bf16.mxu0 %v3320
        %3715 = vmatmul.mubr.bf16.gmra.mxu0 %v3314
        %v3716 = vpop.f32.mrf.mxu0
        %v3717 = vadd.f32 %v3360, %v3716
        %v3718 = vpop.f32.mrf.mxu0
        %v3719 = vpop.f32.mrf.mxu0
        %v3720 = vadd.f32 %v3360, %v3719
        %v3721 = vpop.f32.mrf.mxu0
        %3722 = vmatprep.mubr.bf16.mxu0 %v3324
        %3723 = vmatmul.mubr.bf16.gmra.mxu0 %v3318
        %v3724 = vpop.f32.mrf.mxu0
        %v3725 = vadd.f32 %v3360, %v3724
        %v3726 = vpop.f32.mrf.mxu0
        %v3727 = vpop.f32.mrf.mxu0
        %v3728 = vadd.f32 %v3360, %v3727
        %v3729 = vpop.f32.mrf.mxu0
        %3730 = vmatprep.mubr.bf16.mxu0 %v3328
        %3731 = vmatmul.mubr.bf16.gmra.mxu0 %v3322
        %v3732 = vpop.f32.mrf.mxu0
        %v3733 = vadd.f32 %v3360, %v3732
        %v3734 = vpop.f32.mrf.mxu0
        %v3735 = vpop.f32.mrf.mxu0
        %v3736 = vadd.f32 %v3360, %v3735
        %v3737 = vpop.f32.mrf.mxu0
        %3738 = vmatprep.mubr.bf16.mxu0 %v3332
        %3739 = vmatmul.mubr.bf16.gmra.mxu0 %v3326
        %v3740 = vpop.f32.mrf.mxu0
        %v3741 = vadd.f32 %v3360, %v3740
        %v3742 = vpop.f32.mrf.mxu0
        %v3743 = vpop.f32.mrf.mxu0
        %v3744 = vadd.f32 %v3360, %v3743
        %v3745 = vpop.f32.mrf.mxu0
        %3746 = vmatprep.mubr.bf16.mxu0 %v3336
        %3747 = vmatmul.mubr.bf16.gmra.mxu0 %v3330
        %v3748 = vpop.f32.mrf.mxu0
        %v3749 = vadd.f32 %v3360, %v3748
        %v3750 = vpop.f32.mrf.mxu0
        %v3751 = vpop.f32.mrf.mxu0
        %v3752 = vadd.f32 %v3360, %v3751
        %v3753 = vpop.f32.mrf.mxu0
        %3754 = vmatprep.mubr.bf16.mxu0 %v3340
        %3755 = vmatmul.mubr.bf16.gmra.mxu0 %v3334
        %v3756 = vpop.f32.mrf.mxu0
        %v3757 = vadd.f32 %v3360, %v3756
        %v3758 = vpop.f32.mrf.mxu0
        %v3759 = vpop.f32.mrf.mxu0
        %v3760 = vadd.f32 %v3360, %v3759
        %v3761 = vpop.f32.mrf.mxu0
        %3762 = vmatprep.mubr.bf16.mxu0 %v3344
        %3763 = vmatmul.mubr.bf16.gmra.mxu0 %v3338
        %v3764 = vpop.f32.mrf.mxu0
        %v3765 = vadd.f32 %v3360, %v3764
        %v3766 = vpop.f32.mrf.mxu0
        %v3767 = vpop.f32.mrf.mxu0
        %v3768 = vadd.f32 %v3360, %v3767
        %v3769 = vpop.f32.mrf.mxu0
        %3770 = vmatprep.mubr.bf16.mxu0 %v3348
        %3771 = vmatmul.mubr.bf16.gmra.mxu0 %v3342
        %v3772 = vpop.f32.mrf.mxu0
        %v3773 = vadd.f32 %v3360, %v3772
        %v3774 = vpop.f32.mrf.mxu0
        %v3775 = vpop.f32.mrf.mxu0
        %v3776 = vadd.f32 %v3360, %v3775
        %v3777 = vpop.f32.mrf.mxu0
        %3778 = vmatprep.mubr.bf16.mxu0 %v3352
        %3779 = vmatmul.mubr.bf16.gmra.mxu0 %v3346
        %v3780 = vpop.f32.mrf.mxu0
        %v3781 = vadd.f32 %v3360, %v3780
        %v3782 = vpop.f32.mrf.mxu0
        %v3783 = vpop.f32.mrf.mxu0
        %v3784 = vadd.f32 %v3360, %v3783
        %v3785 = vpop.f32.mrf.mxu0
        %3786 = vdwg.mxu0
        %3787 = vmatprep.subr.bf16.mxu0 0
        %3788 = vmatpush1.bf16.msra.mxu0 %v3529
        %3789 = vmatprep.subr.bf16.mxu0 0
        %3790 = vmatpush1.bf16.msra.mxu0 %v3528
        %3791 = vmatprep.subr.bf16.mxu0 0
        %3792 = vmatpush1.bf16.msra.mxu0 %v3527
        %3793 = vmatprep.subr.bf16.mxu0 0
        %3794 = vmatpush1.bf16.msra.mxu0 %v3526
        %3795 = vmatprep.subr.bf16.mxu0 0
        %3796 = vmatpush1.bf16.msra.mxu0 %v3525
        %3797 = vmatprep.subr.bf16.mxu0 0
        %3798 = vmatpush1.bf16.msra.mxu0 %v3524
        %3799 = vmatprep.subr.bf16.mxu0 0
        %3800 = vmatpush1.bf16.msra.mxu0 %v3523
        %3801 = vmatprep.subr.bf16.mxu0 0
        %3802 = vmatpush1.bf16.msra.mxu0 %v3522
        %3803 = vmatprep.subr.bf16.mxu0 0
        %3804 = vmatpush2.bf16.msra.mxu0 %v3537
        %3805 = vmatprep.subr.bf16.mxu0 0
        %3806 = vmatpush2.bf16.msra.mxu0 %v3536
        %3807 = vmatprep.subr.bf16.mxu0 0
        %3808 = vmatpush2.bf16.msra.mxu0 %v3535
        %3809 = vmatprep.subr.bf16.mxu0 0
        %3810 = vmatpush2.bf16.msra.mxu0 %v3534
        %3811 = vmatprep.subr.bf16.mxu0 0
        %3812 = vmatpush2.bf16.msra.mxu0 %v3533
        %3813 = vmatprep.subr.bf16.mxu0 0
        %3814 = vmatpush2.bf16.msra.mxu0 %v3532
        %3815 = vmatprep.subr.bf16.mxu0 0
        %3816 = vmatpush2.bf16.msra.mxu0 %v3531
        %3817 = vmatprep.subr.bf16.mxu0 0
        %3818 = vmatpush2.bf16.msra.mxu0 %v3530
        %3819 = vmatprep.mubr.bf16.mxu0 %v3293
        %3820 = vmatmul.mubr.bf16.gmra.mxu0 %v3292
        %v3821 = vpop.f32.mrf.mxu0
        %v3822 = vadd.f32 %v3661, %v3821
        %v3823 = vpop.f32.mrf.mxu0
        %v3824 = vpop.f32.mrf.mxu0
        %v3825 = vadd.f32 %v3664, %v3824
        %v3826 = vpop.f32.mrf.mxu0
        %3827 = vmatprep.mubr.bf16.mxu0 %v3298
        %3828 = vmatmul.mubr.bf16.gmra.mxu0 %v3297
        %v3829 = vpop.f32.mrf.mxu0
        %v3830 = vadd.f32 %v3669, %v3829
        %v3831 = vpop.f32.mrf.mxu0
        %v3832 = vpop.f32.mrf.mxu0
        %v3833 = vadd.f32 %v3672, %v3832
        %v3834 = vpop.f32.mrf.mxu0
        %3835 = vmatprep.mubr.bf16.mxu0 %v3302
        %3836 = vmatmul.mubr.bf16.gmra.mxu0 %v3301
        %v3837 = vpop.f32.mrf.mxu0
        %v3838 = vadd.f32 %v3677, %v3837
        %v3839 = vpop.f32.mrf.mxu0
        %v3840 = vpop.f32.mrf.mxu0
        %v3841 = vadd.f32 %v3680, %v3840
        %v3842 = vpop.f32.mrf.mxu0
        %3843 = vmatprep.mubr.bf16.mxu0 %v3306
        %3844 = vmatmul.mubr.bf16.gmra.mxu0 %v3305
        %v3845 = vpop.f32.mrf.mxu0
        %v3846 = vadd.f32 %v3685, %v3845
        %v3847 = vpop.f32.mrf.mxu0
        %v3848 = vpop.f32.mrf.mxu0
        %v3849 = vadd.f32 %v3688, %v3848
        %v3850 = vpop.f32.mrf.mxu0
        %3851 = vmatprep.mubr.bf16.mxu0 %v3310
        %3852 = vmatmul.mubr.bf16.gmra.mxu0 %v3309
        %v3853 = vpop.f32.mrf.mxu0
        %v3854 = vadd.f32 %v3693, %v3853
        %v3855 = vpop.f32.mrf.mxu0
        %v3856 = vpop.f32.mrf.mxu0
        %v3857 = vadd.f32 %v3696, %v3856
        %v3858 = vpop.f32.mrf.mxu0
        %3859 = vmatprep.mubr.bf16.mxu0 %v3314
        %3860 = vmatmul.mubr.bf16.gmra.mxu0 %v3313
        %v3861 = vpop.f32.mrf.mxu0
        %v3862 = vadd.f32 %v3701, %v3861
        %v3863 = vpop.f32.mrf.mxu0
        %v3864 = vpop.f32.mrf.mxu0
        %v3865 = vadd.f32 %v3704, %v3864
        %v3866 = vpop.f32.mrf.mxu0
        %3867 = vmatprep.mubr.bf16.mxu0 %v3318
        %3868 = vmatmul.mubr.bf16.gmra.mxu0 %v3317
        %v3869 = vpop.f32.mrf.mxu0
        %v3870 = vadd.f32 %v3709, %v3869
        %v3871 = vpop.f32.mrf.mxu0
        %v3872 = vpop.f32.mrf.mxu0
        %v3873 = vadd.f32 %v3712, %v3872
        %v3874 = vpop.f32.mrf.mxu0
        %3875 = vmatprep.mubr.bf16.mxu0 %v3322
        %3876 = vmatmul.mubr.bf16.gmra.mxu0 %v3321
        %v3877 = vpop.f32.mrf.mxu0
        %v3878 = vadd.f32 %v3717, %v3877
        %v3879 = vpop.f32.mrf.mxu0
        %v3880 = vpop.f32.mrf.mxu0
        %v3881 = vadd.f32 %v3720, %v3880
        %v3882 = vpop.f32.mrf.mxu0
        %3883 = vmatprep.mubr.bf16.mxu0 %v3326
        %3884 = vmatmul.mubr.bf16.gmra.mxu0 %v3325
        %v3885 = vpop.f32.mrf.mxu0
        %v3886 = vadd.f32 %v3725, %v3885
        %v3887 = vpop.f32.mrf.mxu0
        %v3888 = vpop.f32.mrf.mxu0
        %v3889 = vadd.f32 %v3728, %v3888
        %v3890 = vpop.f32.mrf.mxu0
        %3891 = vmatprep.mubr.bf16.mxu0 %v3330
        %3892 = vmatmul.mubr.bf16.gmra.mxu0 %v3329
        %v3893 = vpop.f32.mrf.mxu0
        %v3894 = vadd.f32 %v3733, %v3893
        %v3895 = vpop.f32.mrf.mxu0
        %v3896 = vpop.f32.mrf.mxu0
        %v3897 = vadd.f32 %v3736, %v3896
        %v3898 = vpop.f32.mrf.mxu0
        %3899 = vmatprep.mubr.bf16.mxu0 %v3334
        %3900 = vmatmul.mubr.bf16.gmra.mxu0 %v3333
        %v3901 = vpop.f32.mrf.mxu0
        %v3902 = vadd.f32 %v3741, %v3901
        %v3903 = vpop.f32.mrf.mxu0
        %v3904 = vpop.f32.mrf.mxu0
        %v3905 = vadd.f32 %v3744, %v3904
        %v3906 = vpop.f32.mrf.mxu0
        %3907 = vmatprep.mubr.bf16.mxu0 %v3338
        %3908 = vmatmul.mubr.bf16.gmra.mxu0 %v3337
        %v3909 = vpop.f32.mrf.mxu0
        %v3910 = vadd.f32 %v3749, %v3909
        %v3911 = vpop.f32.mrf.mxu0
        %v3912 = vpop.f32.mrf.mxu0
        %v3913 = vadd.f32 %v3752, %v3912
        %v3914 = vpop.f32.mrf.mxu0
        %3915 = vmatprep.mubr.bf16.mxu0 %v3342
        %3916 = vmatmul.mubr.bf16.gmra.mxu0 %v3341
        %v3917 = vpop.f32.mrf.mxu0
        %v3918 = vadd.f32 %v3757, %v3917
        %v3919 = vpop.f32.mrf.mxu0
        %v3920 = vpop.f32.mrf.mxu0
        %v3921 = vadd.f32 %v3760, %v3920
        %v3922 = vpop.f32.mrf.mxu0
        %3923 = vmatprep.mubr.bf16.mxu0 %v3346
        %3924 = vmatmul.mubr.bf16.gmra.mxu0 %v3345
        %v3925 = vpop.f32.mrf.mxu0
        %v3926 = vadd.f32 %v3765, %v3925
        %v3927 = vpop.f32.mrf.mxu0
        %v3928 = vpop.f32.mrf.mxu0
        %v3929 = vadd.f32 %v3768, %v3928
        %v3930 = vpop.f32.mrf.mxu0
        %3931 = vmatprep.mubr.bf16.mxu0 %v3350
        %3932 = vmatmul.mubr.bf16.gmra.mxu0 %v3349
        %v3933 = vpop.f32.mrf.mxu0
        %v3934 = vadd.f32 %v3773, %v3933
        %v3935 = vpop.f32.mrf.mxu0
        %v3936 = vpop.f32.mrf.mxu0
        %v3937 = vadd.f32 %v3776, %v3936
        %v3938 = vpop.f32.mrf.mxu0
        %3939 = vmatprep.mubr.bf16.mxu0 %v3354
        %3940 = vmatmul.mubr.bf16.gmra.mxu0 %v3353
        %v3941 = vpop.f32.mrf.mxu0
        %v3942 = vadd.f32 %v3781, %v3941
        %v3943 = vpop.f32.mrf.mxu0
        %v3944 = vpop.f32.mrf.mxu0
        %v3945 = vadd.f32 %v3784, %v3944
        %v3946 = vpop.f32.mrf.mxu0
        %3947 = vdwg.mxu0
        %3948 = vmatprep.subr.bf16.mxu0 0
        %3949 = vmatpush1.bf16.msra.mxu0 0
        %3950 = vmatprep.subr.bf16.mxu0 0
        %3951 = vmatpush1.bf16.msra.mxu0 0
        %3952 = vmatprep.subr.bf16.mxu0 0
        %3953 = vmatpush1.bf16.msra.mxu0 0
        %3954 = vmatprep.subr.bf16.mxu0 0
        %3955 = vmatpush1.bf16.msra.mxu0 0
        %3956 = vmatprep.subr.bf16.mxu0 0
        %3957 = vmatpush1.bf16.msra.mxu0 %v3541
        %3958 = vmatprep.subr.bf16.mxu0 0
        %3959 = vmatpush1.bf16.msra.mxu0 %v3540
        %3960 = vmatprep.subr.bf16.mxu0 0
        %3961 = vmatpush1.bf16.msra.mxu0 %v3539
        %3962 = vmatprep.subr.bf16.mxu0 0
        %3963 = vmatpush1.bf16.msra.mxu0 %v3538
        %3964 = vmatprep.subr.bf16.mxu0 0
        %3965 = vmatpush2.bf16.msra.mxu0 0
        %3966 = vmatprep.subr.bf16.mxu0 0
        %3967 = vmatpush2.bf16.msra.mxu0 0
        %3968 = vmatprep.subr.bf16.mxu0 0
        %3969 = vmatpush2.bf16.msra.mxu0 0
        %3970 = vmatprep.subr.bf16.mxu0 0
        %3971 = vmatpush2.bf16.msra.mxu0 0
        %3972 = vmatprep.subr.bf16.mxu0 0
        %3973 = vmatpush2.bf16.msra.mxu0 0
        %3974 = vmatprep.subr.bf16.mxu0 0
        %3975 = vmatpush2.bf16.msra.mxu0 0
        %3976 = vmatprep.subr.bf16.mxu0 0
        %3977 = vmatpush2.bf16.msra.mxu0 0
        %3978 = vmatprep.subr.bf16.mxu0 0
        %3979 = vmatpush2.bf16.msra.mxu0 0
        %3980 = vmatprep.mubr.bf16.mxu0 0
        %3981 = vmatmul.mubr.bf16.gmra.mxu0 %v3579
        %v3982 = vpop.f32.mrf.mxu0
        %v3983 = vadd.f32 %v3822, %v3982
        %v3984 = vpop.f32.mrf.mxu0
        %v3985 = vpop.f32.mrf.mxu0
        %v3986 = vadd.f32 %v3825, %v3985
        %v3987 = vpop.f32.mrf.mxu0
        %3988 = vmatprep.mubr.bf16.mxu0 0
        %3989 = vmatmul.mubr.bf16.gmra.mxu0 %v3582
        %v3990 = vpop.f32.mrf.mxu0
        %v3991 = vadd.f32 %v3830, %v3990
        %v3992 = vpop.f32.mrf.mxu0
        %v3993 = vpop.f32.mrf.mxu0
        %v3994 = vadd.f32 %v3833, %v3993
        %v3995 = vpop.f32.mrf.mxu0
        %3996 = vmatprep.mubr.bf16.mxu0 0
        %3997 = vmatmul.mubr.bf16.gmra.mxu0 %v3585
        %v3998 = vpop.f32.mrf.mxu0
        %v3999 = vadd.f32 %v3838, %v3998
        %v4000 = vpop.f32.mrf.mxu0
        %v4001 = vpop.f32.mrf.mxu0
        %v4002 = vadd.f32 %v3841, %v4001
        %v4003 = vpop.f32.mrf.mxu0
        %4004 = vmatprep.mubr.bf16.mxu0 0
        %4005 = vmatmul.mubr.bf16.gmra.mxu0 %v3588
        %v4006 = vpop.f32.mrf.mxu0
        %v4007 = vadd.f32 %v3846, %v4006
        %v4008 = vpop.f32.mrf.mxu0
        %v4009 = vpop.f32.mrf.mxu0
        %v4010 = vadd.f32 %v3849, %v4009
        %v4011 = vpop.f32.mrf.mxu0
        %4012 = vmatprep.mubr.bf16.mxu0 0
        %4013 = vmatmul.mubr.bf16.gmra.mxu0 %v3591
        %v4014 = vpop.f32.mrf.mxu0
        %v4015 = vadd.f32 %v3854, %v4014
        %v4016 = vpop.f32.mrf.mxu0
        %v4017 = vpop.f32.mrf.mxu0
        %v4018 = vadd.f32 %v3857, %v4017
        %v4019 = vpop.f32.mrf.mxu0
        %4020 = vmatprep.mubr.bf16.mxu0 0
        %4021 = vmatmul.mubr.bf16.gmra.mxu0 %v3594
        %v4022 = vpop.f32.mrf.mxu0
        %v4023 = vadd.f32 %v3862, %v4022
        %v4024 = vpop.f32.mrf.mxu0
        %v4025 = vpop.f32.mrf.mxu0
        %v4026 = vadd.f32 %v3865, %v4025
        %v4027 = vpop.f32.mrf.mxu0
        %4028 = vmatprep.mubr.bf16.mxu0 0
        %4029 = vmatmul.mubr.bf16.gmra.mxu0 %v3597
        %v4030 = vpop.f32.mrf.mxu0
        %v4031 = vadd.f32 %v3870, %v4030
        %v4032 = vpop.f32.mrf.mxu0
        %v4033 = vpop.f32.mrf.mxu0
        %v4034 = vadd.f32 %v3873, %v4033
        %v4035 = vpop.f32.mrf.mxu0
        %4036 = vmatprep.mubr.bf16.mxu0 0
        %4037 = vmatmul.mubr.bf16.gmra.mxu0 %v3600
        %v4038 = vpop.f32.mrf.mxu0
        %v4039 = vadd.f32 %v3878, %v4038
        %v4040 = vpop.f32.mrf.mxu0
        %v4041 = vpop.f32.mrf.mxu0
        %v4042 = vadd.f32 %v3881, %v4041
        %v4043 = vpop.f32.mrf.mxu0
        %4044 = vmatprep.mubr.bf16.mxu0 0
        %4045 = vmatmul.mubr.bf16.gmra.mxu0 %v3603
        %v4046 = vpop.f32.mrf.mxu0
        %v4047 = vadd.f32 %v3886, %v4046
        %v4048 = vpop.f32.mrf.mxu0
        %v4049 = vpop.f32.mrf.mxu0
        %v4050 = vadd.f32 %v3889, %v4049
        %v4051 = vpop.f32.mrf.mxu0
        %4052 = vmatprep.mubr.bf16.mxu0 0
        %4053 = vmatmul.mubr.bf16.gmra.mxu0 %v3606
        %v4054 = vpop.f32.mrf.mxu0
        %v4055 = vadd.f32 %v3894, %v4054
        %v4056 = vpop.f32.mrf.mxu0
        %v4057 = vpop.f32.mrf.mxu0
        %v4058 = vadd.f32 %v3897, %v4057
        %v4059 = vpop.f32.mrf.mxu0
        %4060 = vmatprep.mubr.bf16.mxu0 0
        %4061 = vmatmul.mubr.bf16.gmra.mxu0 %v3609
        %v4062 = vpop.f32.mrf.mxu0
        %v4063 = vadd.f32 %v3902, %v4062
        %v4064 = vpop.f32.mrf.mxu0
        %v4065 = vpop.f32.mrf.mxu0
        %v4066 = vadd.f32 %v3905, %v4065
        %v4067 = vpop.f32.mrf.mxu0
        %4068 = vmatprep.mubr.bf16.mxu0 0
        %4069 = vmatmul.mubr.bf16.gmra.mxu0 %v3612
        %v4070 = vpop.f32.mrf.mxu0
        %v4071 = vadd.f32 %v3910, %v4070
        %v4072 = vpop.f32.mrf.mxu0
        %v4073 = vpop.f32.mrf.mxu0
        %v4074 = vadd.f32 %v3913, %v4073
        %v4075 = vpop.f32.mrf.mxu0
        %4076 = vmatprep.mubr.bf16.mxu0 0
        %4077 = vmatmul.mubr.bf16.gmra.mxu0 %v3615
        %v4078 = vpop.f32.mrf.mxu0
        %v4079 = vadd.f32 %v3918, %v4078
        %v4080 = vpop.f32.mrf.mxu0
        %v4081 = vpop.f32.mrf.mxu0
        %v4082 = vadd.f32 %v3921, %v4081
        %v4083 = vpop.f32.mrf.mxu0
        %4084 = vmatprep.mubr.bf16.mxu0 0
        %4085 = vmatmul.mubr.bf16.gmra.mxu0 %v3618
        %v4086 = vpop.f32.mrf.mxu0
        %v4087 = vadd.f32 %v3926, %v4086
        %v4088 = vpop.f32.mrf.mxu0
        %v4089 = vpop.f32.mrf.mxu0
        %v4090 = vadd.f32 %v3929, %v4089
        %v4091 = vpop.f32.mrf.mxu0
        %4092 = vmatprep.mubr.bf16.mxu0 0
        %4093 = vmatmul.mubr.bf16.gmra.mxu0 %v3621
        %v4094 = vpop.f32.mrf.mxu0
        %v4095 = vadd.f32 %v3934, %v4094
        %v4096 = vpop.f32.mrf.mxu0
        %v4097 = vpop.f32.mrf.mxu0
        %v4098 = vadd.f32 %v3937, %v4097
        %v4099 = vpop.f32.mrf.mxu0
        %4100 = vmatprep.mubr.bf16.mxu0 0
        %4101 = vmatmul.mubr.bf16.gmra.mxu0 %v3624
        %v4102 = vpop.f32.mrf.mxu0
        %v4103 = vadd.f32 %v3942, %v4102
        %v4104 = vpop.f32.mrf.mxu0
        %v4105 = vpop.f32.mrf.mxu0
        %v4106 = vadd.f32 %v3945, %v4105
        %v4107 = vpop.f32.mrf.mxu0
        %4108 = vdwg.mxu0
        %v4109 = vadd.f32 %v3983, %v636
        %v4110 = vadd.f32 %v3986, %v638
        %v4111 = vadd.f32 %v3991, %v641
        %v4112 = vadd.f32 %v3994, %v643
        %v4113 = vadd.f32 %v3999, %v646
        %v4114 = vadd.f32 %v4002, %v648
        %v4115 = vadd.f32 %v4007, %v651
        %v4116 = vadd.f32 %v4010, %v653
        %v4117 = vadd.f32 %v4015, %v656
        %v4118 = vadd.f32 %v4018, %v658
        %v4119 = vadd.f32 %v4023, %v661
        %v4120 = vadd.f32 %v4026, %v663
        %v4121 = vadd.f32 %v4031, %v666
        %v4122 = vadd.f32 %v4034, %v668
        %v4123 = vadd.f32 %v4039, %v671
        %v4124 = vadd.f32 %v4042, %v673
        %v4125 = vadd.f32 %v4047, %v676
        %v4126 = vadd.f32 %v4050, %v678
        %v4127 = vadd.f32 %v4055, %v681
        %v4128 = vadd.f32 %v4058, %v683
        %v4129 = vadd.f32 %v4063, %v686
        %v4130 = vadd.f32 %v4066, %v688
        %v4131 = vadd.f32 %v4071, %v691
        %v4132 = vadd.f32 %v4074, %v693
        %v4133 = vadd.f32 %v4079, %v696
        %v4134 = vadd.f32 %v4082, %v698
        %v4135 = vadd.f32 %v4087, %v701
        %v4136 = vadd.f32 %v4090, %v703
        %v4137 = vadd.f32 %v4095, %v706
        %v4138 = vadd.f32 %v4098, %v708
        %v4139 = vadd.f32 %v4103, %v711
        %v4140 = vadd.f32 %v4106, %v713
        %p4141 = scmp.lt.s32.totalorder %s24, 0
        // Predicated region
        $region45: #{tpu_custom_call.1} parent=39 // pred_check
          %p4142 = pneg %p4141
        $region46: #{tpu_custom_call.1} parent=39 // pred_check_branch
          %4144 = sbr.rel (%p4142) target = $region48
        $region47: #{tpu_custom_call.1} parent=39 // pred_region
          %s4145 = scalar_lea.vmem [#allocation2], 24
          %4146 = vst.msk [vmem:[%s4145 + $0x1] sm:$0xff] %vm1476, %v4109
          %4147 = vst.msk [vmem:[%s4145 + $0x9] sm:$0xff] %vm1476, %v4110
          %4148 = vst.msk [vmem:[%s4145 + $0x19] sm:$0xff] %vm1476, %v4111
          %4149 = vst.msk [vmem:[%s4145 + $0x21] sm:$0xff] %vm1476, %v4112
          %4150 = vst.msk [vmem:[%s4145 + $0x31] sm:$0xff] %vm1476, %v4113
          %4151 = vst.msk [vmem:[%s4145 + $0x39] sm:$0xff] %vm1476, %v4114
          %4152 = vst.msk [vmem:[%s4145 + $0x49] sm:$0xff] %vm1476, %v4115
          %4153 = vst.msk [vmem:[%s4145 + $0x51] sm:$0xff] %vm1476, %v4116
          %4154 = vst.msk [vmem:[%s4145 + $0x61] sm:$0xff] %vm1476, %v4117
          %4155 = vst.msk [vmem:[%s4145 + $0x69] sm:$0xff] %vm1476, %v4118
          %4156 = vst.msk [vmem:[%s4145 + $0x79] sm:$0xff] %vm1476, %v4119
          %4157 = vst.msk [vmem:[%s4145 + $0x81] sm:$0xff] %vm1476, %v4120
          %4158 = vst.msk [vmem:[%s4145 + $0x91] sm:$0xff] %vm1476, %v4121
          %4159 = vst.msk [vmem:[%s4145 + $0x99] sm:$0xff] %vm1476, %v4122
          %4160 = vst.msk [vmem:[%s4145 + $0xa9] sm:$0xff] %vm1476, %v4123
          %4161 = vst.msk [vmem:[%s4145 + $0xb1] sm:$0xff] %vm1476, %v4124
          %4162 = vst.msk [vmem:[%s4145 + $0xc1] sm:$0xff] %vm1476, %v4125
          %4163 = vst.msk [vmem:[%s4145 + $0xc9] sm:$0xff] %vm1476, %v4126
          %4164 = vst.msk [vmem:[%s4145 + $0xd9] sm:$0xff] %vm1476, %v4127
          %4165 = vst.msk [vmem:[%s4145 + $0xe1] sm:$0xff] %vm1476, %v4128
          %4166 = vst.msk [vmem:[%s4145 + $0xf1] sm:$0xff] %vm1476, %v4129
          %4167 = vst.msk [vmem:[%s4145 + $0xf9] sm:$0xff] %vm1476, %v4130
          %4168 = vst.msk [vmem:[%s4145 + $0x109] sm:$0xff] %vm1476, %v4131
          %4169 = vst.msk [vmem:[%s4145 + $0x111] sm:$0xff] %vm1476, %v4132
          %4170 = vst.msk [vmem:[%s4145 + $0x121] sm:$0xff] %vm1476, %v4133
          %4171 = vst.msk [vmem:[%s4145 + $0x129] sm:$0xff] %vm1476, %v4134
          %4172 = vst.msk [vmem:[%s4145 + $0x139] sm:$0xff] %vm1476, %v4135
          %4173 = vst.msk [vmem:[%s4145 + $0x141] sm:$0xff] %vm1476, %v4136
          %4174 = vst.msk [vmem:[%s4145 + $0x151] sm:$0xff] %vm1476, %v4137
          %4175 = vst.msk [vmem:[%s4145 + $0x159] sm:$0xff] %vm1476, %v4138
          %4176 = vst.msk [vmem:[%s4145 + $0x169] sm:$0xff] %vm1476, %v4139
          %4177 = vst.msk [vmem:[%s4145 + $0x171] sm:$0xff] %vm1476, %v4140
        $region48: #{tpu_custom_call.1} parent=39 // pred_fallthru
          _
        // Predicated region
        $region49: #{tpu_custom_call.1} parent=39 // pred_check
          %p4178 = pneg %p304
        $region50: #{tpu_custom_call.1} parent=39 // pred_check_branch
          %4180 = sbr.rel (%p4178) target = $region52
        $region51: #{tpu_custom_call.1} parent=39 // pred_region
          %4181 = vxpose.xlu0.b32.start [1/16] %v4109, 128
          %4182 = vxpose.xlu0.b32.cont [2/16] %v4110, 128
          %4183 = vxpose.xlu0.b32.cont [3/16] %v4111, 128
          %4184 = vxpose.xlu0.b32.cont [4/16] %v4112, 128
          %4185 = vxpose.xlu0.b32.cont [5/16] %v4113, 128
          %4186 = vxpose.xlu0.b32.cont [6/16] %v4114, 128
          %4187 = vxpose.xlu0.b32.cont [7/16] %v4115, 128
          %4188 = vxpose.xlu0.b32.cont [8/16] %v4116, 128
          %4189 = vxpose.xlu0.b32.cont [9/16] %v4117, 128
          %4190 = vxpose.xlu0.b32.cont [10/16] %v4118, 128
          %4191 = vxpose.xlu0.b32.cont [11/16] %v4119, 128
          %4192 = vxpose.xlu0.b32.cont [12/16] %v4120, 128
          %4193 = vxpose.xlu0.b32.cont [13/16] %v4121, 128
          %4194 = vxpose.xlu0.b32.cont [14/16] %v4122, 128
          %4195 = vxpose.xlu0.b32.cont [15/16] %v4123, 128
          %4196 = vxpose.xlu0.b32.end [16/16] %v4124, 128
          %v4197 = vpop.trf.xlu0
          %v4198 = vpop.trf.xlu0
          %v4199 = vpop.trf.xlu0
          %v4200 = vpop.trf.xlu0
          %v4201 = vpop.trf.xlu0
          %v4202 = vpop.trf.xlu0
          %v4203 = vpop.trf.xlu0
          %v4204 = vpop.trf.xlu0
          %v4205 = vpop.trf.xlu0
          %v4206 = vpop.trf.xlu0
          %v4207 = vpop.trf.xlu0
          %v4208 = vpop.trf.xlu0
          %v4209 = vpop.trf.xlu0
          %v4210 = vpop.trf.xlu0
          %v4211 = vpop.trf.xlu0
          %v4212 = vpop.trf.xlu0
          %4213 = vxpose.xlu0.b32.start [1/16] %v4125, 128
          %4214 = vxpose.xlu0.b32.cont [2/16] %v4126, 128
          %4215 = vxpose.xlu0.b32.cont [3/16] %v4127, 128
          %4216 = vxpose.xlu0.b32.cont [4/16] %v4128, 128
          %4217 = vxpose.xlu0.b32.cont [5/16] %v4129, 128
          %4218 = vxpose.xlu0.b32.cont [6/16] %v4130, 128
          %4219 = vxpose.xlu0.b32.cont [7/16] %v4131, 128
          %4220 = vxpose.xlu0.b32.cont [8/16] %v4132, 128
          %4221 = vxpose.xlu0.b32.cont [9/16] %v4133, 128
          %4222 = vxpose.xlu0.b32.cont [10/16] %v4134, 128
          %4223 = vxpose.xlu0.b32.cont [11/16] %v4135, 128
          %4224 = vxpose.xlu0.b32.cont [12/16] %v4136, 128
          %4225 = vxpose.xlu0.b32.cont [13/16] %v4137, 128
          %4226 = vxpose.xlu0.b32.cont [14/16] %v4138, 128
          %4227 = vxpose.xlu0.b32.cont [15/16] %v4139, 128
          %4228 = vxpose.xlu0.b32.end [16/16] %v4140, 128
          %v4229 = vpop.trf.xlu0
          %v4230 = vpop.trf.xlu0
          %v4231 = vpop.trf.xlu0
          %v4232 = vpop.trf.xlu0
          %v4233 = vpop.trf.xlu0
          %v4234 = vpop.trf.xlu0
          %v4235 = vpop.trf.xlu0
          %v4236 = vpop.trf.xlu0
          %v4237 = vpop.trf.xlu0
          %v4238 = vpop.trf.xlu0
          %v4239 = vpop.trf.xlu0
          %v4240 = vpop.trf.xlu0
          %v4241 = vpop.trf.xlu0
          %v4242 = vpop.trf.xlu0
          %v4243 = vpop.trf.xlu0
          %v4244 = vpop.trf.xlu0
          %4245 = vst [vmem:[%s281] sm:$0xff] %v4197
          %4246 = vst [vmem:[%s281 + $0x8] sm:$0xff] %v4229
          %4247 = vst [vmem:[%s281 + $0x10] sm:$0xff] %v4198
          %4248 = vst [vmem:[%s281 + $0x18] sm:$0xff] %v4230
          %4249 = vst [vmem:[%s281 + $0x20] sm:$0xff] %v4199
          %4250 = vst [vmem:[%s281 + $0x28] sm:$0xff] %v4231
          %4251 = vst [vmem:[%s281 + $0x30] sm:$0xff] %v4200
          %4252 = vst [vmem:[%s281 + $0x38] sm:$0xff] %v4232
          %4253 = vst [vmem:[%s281 + $0x40] sm:$0xff] %v4201
          %4254 = vst [vmem:[%s281 + $0x48] sm:$0xff] %v4233
          %4255 = vst [vmem:[%s281 + $0x50] sm:$0xff] %v4202
          %4256 = vst [vmem:[%s281 + $0x58] sm:$0xff] %v4234
          %4257 = vst [vmem:[%s281 + $0x60] sm:$0xff] %v4203
          %4258 = vst [vmem:[%s281 + $0x68] sm:$0xff] %v4235
          %4259 = vst [vmem:[%s281 + $0x70] sm:$0xff] %v4204
          %4260 = vst [vmem:[%s281 + $0x78] sm:$0xff] %v4236
        $region52: #{tpu_custom_call.1} parent=39 // pred_fallthru
          _
        %s4261 = sand.u32 %s169, 1
        %s4262 = scalar_lea.sflag [#allocation5], %s4261
        %s4263 = sand.u32 %s169, 1
        %s4264 = smul.addr %s4263, 128
        %s4265 = scalar_lea.vmem [#allocation4], %s4264
        // Predicated region
        $region53: #{tpu_custom_call.1} parent=39 // pred_check
          %p4266 = pneg %p179
        $region54: #{tpu_custom_call.1} parent=39 // pred_check_branch
          %4268 = sbr.rel (%p4266) target = $region56
        $region55: #{tpu_custom_call.1} parent=39 // pred_region
          %s4270 = ssub.s32 2048, 2048
          %4271 = vsyncadd %s4262, %s4270
          %s4272 = smul.addr %s23, 16
          %s4273 = smul.addr %s4272, 128
          %s4274 = scalar_lea.hbm %s5, %s4273
          %s4275 = sshll.u32 %s4265, 4
          %s4276 = int_to_ptr.vmem [resolvable:$true] %s4275
          %4281 = dma.vmem_to_hbm [thread:$0]  %s4276, 2048, %s4274, %s4262, 256, 256, 16
        $region56: #{tpu_custom_call.1} parent=39 // pred_fallthru
          _
      $region40: #{tpu_custom_call.1} parent=5 // pred_fallthru
        _
      %p4282 = scmp.le.s32.totalorder 2, %s14
      // Predicated region
      $region57: #{tpu_custom_call.1} parent=5 // pred_check
        %p4283 = pneg %p4282
      $region58: #{tpu_custom_call.1} parent=5 // pred_check_branch
        %4285 = sbr.rel (%p4283) target = $region60
      $region59: #{tpu_custom_call.1} parent=5 // pred_region
        %s4286 = ssub.s32 %s14, 2
        // Predicated region
        $region61: #{tpu_custom_call.1} parent=59 // pred_check
          %p4287 = pneg %p185
        $region62: #{tpu_custom_call.1} parent=59 // pred_check_branch
          %4289 = sbr.rel (%p4287) target = $region64
        $region63: #{tpu_custom_call.1} parent=59 // pred_region
          %s4290 = sand.u32 %s170, 1
          %s4291 = scalar_lea.sflag [#allocation5], %s4290
          %s4292 = sand.u32 %s170, 1
          %s4293 = smul.addr %s4292, 128
          %s4294 = scalar_lea.vmem [#allocation4], %s4293
          %4295 = dma.done %s4291, 2048
        $region64: #{tpu_custom_call.1} parent=59 // pred_fallthru
          _
      $region60: #{tpu_custom_call.1} parent=5 // pred_fallthru
        _
    $region6: #{tpu_custom_call.1} parent=1 // loop_footer
      %s18 = sadd.s32 1, %s14
    $region7: #{tpu_custom_call.1} parent=1 // loop_footer_branch
      %13 = sbr.rel target = $region3
    $region8: #{tpu_custom_call.1} parent=1 // loop_exit
      _
    %4296 = vsyncpa [#allocation5], 1
    %s4297 = scalar_lea.sflag [#allocation5], 1
    %4298 = vsyncpa %s4297, 1

</llo_original>
